<compile_context>
chip_gen: v7x
topology: tpu7x:2x2x1
jax: 0.10.0
libtpu: 0.0.40
codegen_flags: <defaults>
</compile_context>

<pallas_src>
import jax
import jax.numpy as jnp
from jax.experimental import pallas as pl
from jax.experimental.pallas import tpu as pltpu


IN_FEATURES = 352        # 318 board features + 34 extra features
H1 = 1024
H2 = 1024
H3_PAD = 128             # fc3 out 100 -> padded to 128 lanes
H10_PAD = 128            # fc10 out 100 -> padded to 128 lanes
OUT_PAD = 128            # fc11 out 2  -> padded to 128 lanes (lane-dense store)


def _transgang_kernel(x_ref,
                      w1_ref, b1_ref,
                      w2_ref, b2_ref,
                      w3_ref, b3_ref,
                      w10a_ref, w10b_ref, b10_ref,
                      w11_ref, b11_ref,
                      out_ref):
    x = x_ref[...]                                            # (TB, 352) bf16
    # fc1 + relu   (the x[:, :318] slice is folded into zero rows of w1)
    y = jnp.dot(x, w1_ref[...], preferred_element_type=jnp.float32)
    y = jnp.maximum(y + b1_ref[...], 0.0).astype(jnp.bfloat16)
    # fc2 + relu
    y = jnp.dot(y, w2_ref[...], preferred_element_type=jnp.float32)
    y = jnp.maximum(y + b2_ref[...], 0.0).astype(jnp.bfloat16)
    # fc3 + relu   (output padded 100 -> 128; pad cols have zero weight/bias)
    y = jnp.dot(y, w3_ref[...], preferred_element_type=jnp.float32)
    y = jnp.maximum(y + b3_ref[...], 0.0).astype(jnp.bfloat16)
    # fc10(cat(y, x[:, 318:])) == y @ W10a + x @ W10b_pad + b10
    h = (jnp.dot(y, w10a_ref[...], preferred_element_type=jnp.float32)
         + jnp.dot(x, w10b_ref[...], preferred_element_type=jnp.float32)
         + b10_ref[...])
    h = jnp.maximum(h, 0.0).astype(jnp.bfloat16)
    # fc11 (output padded 2 -> 128; real logits live in cols 0..1)
    out = jnp.dot(h, w11_ref[...], preferred_element_type=jnp.float32) + b11_ref[...]
    out_ref[...] = out.astype(out_ref.dtype)


def transgang_forward(x, params, *, tb=256):
    """x: [B, 352] float32.  Returns [B, 2] float32."""
    B = x.shape[0]
    assert x.shape[1] == IN_FEATURES
    (w1, b1, w2, b2, w3, b3, w10a, w10b, b10, w11, b11) = params
    w_args = (w1, b1, w2, b2, w3, b3, w10a, w10b, b10, w11, b11)

    # Batch tile: multiple of 8 sublanes, capped at `tb`; pad batch to fit.
    tb = min(tb, max(8, ((B + 7) // 8) * 8))
    b_pad = pl.cdiv(B, tb) * tb
    if b_pad != B:
        x = jnp.pad(x, ((0, b_pad - B), (0, 0)))
    x = x.astype(jnp.bfloat16)

    grid = (b_pad // tb,)

    batch_map = lambda i: (i, 0)       # activation / output tiles move with i
    resident_map = lambda i: (0, 0)    # weights/biases stay pinned in VMEM

    x_spec = pl.BlockSpec((tb, IN_FEATURES), batch_map)
    out_spec = pl.BlockSpec((tb, OUT_PAD), batch_map)
    in_specs = [x_spec] + [pl.BlockSpec(a.shape, resident_map) for a in w_args]

    flops = 2 * b_pad * (IN_FEATURES * H1 + H1 * H2 + H2 * H3_PAD
                         + H3_PAD * H10_PAD + IN_FEATURES * H10_PAD
                         + H10_PAD * OUT_PAD)
    bytes_accessed = (sum(int(a.size) * a.dtype.itemsize for a in w_args)
                      + b_pad * IN_FEATURES * 2        # bf16 input
                      + b_pad * OUT_PAD * 4)           # f32 output

    out = pl.pallas_call(
        _transgang_kernel,
        out_shape=jax.ShapeDtypeStruct((b_pad, OUT_PAD), jnp.float32),
        grid=grid,
        in_specs=in_specs,
        out_specs=out_spec,
        compiler_params=pltpu.CompilerParams(
            dimension_semantics=("parallel",)),
        cost_estimate=pl.CostEstimate(
            flops=flops, transcendentals=0, bytes_accessed=bytes_accessed),
    )(x, *w_args)
    return out[:B, :2]


def init_params(key):
    """Deterministic synthetic init, pre-processed into kernel layout.

    Weight layout: [in, out] (transposed vs. nn.Linear); biases [1, out] f32;
    weights bf16; narrow dims zero-padded to 128; the 318/34 input split is
    folded into zero rows of w1 / w10b.
    """
    def linear(key, fan_in, fan_out):
        kw, kb = jax.random.split(key)
        bound = 1.0 / jnp.sqrt(jnp.float32(fan_in))
        w = jax.random.uniform(kw, (fan_in, fan_out), jnp.float32, -bound, bound)
        b = jax.random.uniform(kb, (1, fan_out), jnp.float32, -bound, bound)
        return w, b

    k1, k2, k3, k10, k11 = jax.random.split(key, 5)
    w1, b1 = linear(k1, 318, 1024)     # fc1
    w2, b2 = linear(k2, 1024, 1024)    # fc2
    w3, b3 = linear(k3, 1024, 100)     # fc3
    w10, b10 = linear(k10, 134, 100)   # fc10: in = 100 + 34
    w11, b11 = linear(k11, 100, 2)     # fc11

    # fc1: fold x[:, :318] slice into zero rows 318..351.
    w1p = jnp.zeros((IN_FEATURES, H1), jnp.float32).at[:318, :].set(w1)
    # fc3: pad output 100 -> 128 lanes.
    w3p = jnp.zeros((H2, H3_PAD), jnp.float32).at[:, :100].set(w3)
    b3p = jnp.zeros((1, H3_PAD), jnp.float32).at[:, :100].set(b3)
    # fc10 split: rows 0..99 act on y (padded), rows 100..133 act on
    # x[:, 318:] (folded into a [352, 128] weight with zero rows 0..317).
    w10a = jnp.zeros((H3_PAD, H10_PAD), jnp.float32).at[:100, :100].set(w10[:100])
    w10b = jnp.zeros((IN_FEATURES, H10_PAD), jnp.float32).at[318:, :100].set(w10[100:])
    b10p = jnp.zeros((1, H10_PAD), jnp.float32).at[:, :100].set(b10)
    # fc11: pad 100 -> 128 in, 2 -> 128 out (lane-dense output store).
    w11p = jnp.zeros((H10_PAD, OUT_PAD), jnp.float32).at[:100, :2].set(w11)
    b11p = jnp.zeros((1, OUT_PAD), jnp.float32).at[:, :2].set(b11)

    bf16 = jnp.bfloat16
    return (w1p.astype(bf16), b1,
            w2.astype(bf16), b2,
            w3p.astype(bf16), b3p,
            w10a.astype(bf16), w10b.astype(bf16), b10p,
            w11p.astype(bf16), b11p)


def reference_forward(x, params):
    """Pure-JAX reference mirroring the kernel numerics (bf16 operands, f32 acc)."""
    (w1, b1, w2, b2, w3, b3, w10a, w10b, b10, w11, b11) = params
    f32 = jnp.float32
    xb = x.astype(jnp.bfloat16).astype(f32)

    def dense(a, w, b):
        return a.astype(f32) @ w.astype(f32) + b

    y = jax.nn.relu(dense(xb, w1, b1)).astype(jnp.bfloat16)
    y = jax.nn.relu(dense(y, w2, b2)).astype(jnp.bfloat16)
    y = jax.nn.relu(dense(y, w3, b3)).astype(jnp.bfloat16)
    h = jax.nn.relu(y.astype(f32) @ w10a.astype(f32)
                    + xb @ w10b.astype(f32) + b10).astype(jnp.bfloat16)
    out = h.astype(f32) @ w11.astype(f32) + b11
    return out[:, :2]


if __name__ == "__main__":
    key = jax.random.PRNGKey(0)
    kx, kp = jax.random.split(key)

    B = 8
    x = jax.random.normal(kx, (B, IN_FEATURES), jnp.float32)
    params = init_params(kp)

    out = transgang_forward(x, params)
    out = jax.block_until_ready(out)
    assert out.shape == (B, 2)

    ref = reference_forward(x, params)
    assert jnp.allclose(out, ref, atol=2e-2, rtol=2e-2), "mismatch vs JAX reference"

    print("KERNEL_OK")
</pallas_src>

<mosaic_0001>
module attributes {stable_mosaic.version = 11 : i64} {
  func.func @_transgang_kernel(%arg0: i32, %arg1: memref<8x352xbf16, #tpu.memory_space<vmem>>, %arg2: memref<352x1024xbf16, #tpu.memory_space<vmem>>, %arg3: memref<1x1024xf32, #tpu.memory_space<vmem>>, %arg4: memref<1024x1024xbf16, #tpu.memory_space<vmem>>, %arg5: memref<1x1024xf32, #tpu.memory_space<vmem>>, %arg6: memref<1024x128xbf16, #tpu.memory_space<vmem>>, %arg7: memref<1x128xf32, #tpu.memory_space<vmem>>, %arg8: memref<128x128xbf16, #tpu.memory_space<vmem>>, %arg9: memref<352x128xbf16, #tpu.memory_space<vmem>>, %arg10: memref<1x128xf32, #tpu.memory_space<vmem>>, %arg11: memref<128x128xbf16, #tpu.memory_space<vmem>>, %arg12: memref<1x128xf32, #tpu.memory_space<vmem>>, %arg13: memref<8x128xf32, #tpu.memory_space<vmem>>) attributes {dimension_semantics = [#tpu.dimension_semantics<parallel>], iteration_bounds = array<i64: 1>, scalar_prefetch = 0 : i64, scratch_operands = 0 : i64, tpu.core_type = #tpu.core_type<tc>, window_params = [{transform_indices = @transform_0, window_bounds = array<i64: 8, 352>}, {pipeline_mode = #tpu.pipeline_mode<synchronous>, transform_indices = @transform_1, window_bounds = array<i64: 352, 1024>}, {pipeline_mode = #tpu.pipeline_mode<synchronous>, transform_indices = @transform_2, window_bounds = array<i64: 1, 1024>}, {pipeline_mode = #tpu.pipeline_mode<synchronous>, transform_indices = @transform_3, window_bounds = array<i64: 1024, 1024>}, {pipeline_mode = #tpu.pipeline_mode<synchronous>, transform_indices = @transform_4, window_bounds = array<i64: 1, 1024>}, {pipeline_mode = #tpu.pipeline_mode<synchronous>, transform_indices = @transform_5, window_bounds = array<i64: 1024, 128>}, {pipeline_mode = #tpu.pipeline_mode<synchronous>, transform_indices = @transform_6, window_bounds = array<i64: 1, 128>}, {pipeline_mode = #tpu.pipeline_mode<synchronous>, transform_indices = @transform_7, window_bounds = array<i64: 128, 128>}, {pipeline_mode = #tpu.pipeline_mode<synchronous>, transform_indices = @transform_8, window_bounds = array<i64: 352, 128>}, {pipeline_mode = #tpu.pipeline_mode<synchronous>, transform_indices = @transform_9, window_bounds = array<i64: 1, 128>}, {pipeline_mode = #tpu.pipeline_mode<synchronous>, transform_indices = @transform_10, window_bounds = array<i64: 128, 128>}, {pipeline_mode = #tpu.pipeline_mode<synchronous>, transform_indices = @transform_11, window_bounds = array<i64: 1, 128>}, {transform_indices = @transform_12, window_bounds = array<i64: 8, 128>}]} {
    %c0 = arith.constant 0 : index
    %c0_0 = arith.constant 0 : index
    %0 = vector.load %arg1[%c0, %c0_0] : memref<8x352xbf16, #tpu.memory_space<vmem>>, vector<8x352xbf16>
    %c0_1 = arith.constant 0 : index
    %c0_2 = arith.constant 0 : index
    %1 = vector.load %arg2[%c0_1, %c0_2] : memref<352x1024xbf16, #tpu.memory_space<vmem>>, vector<352x1024xbf16>
    %cst = arith.constant dense<0.000000e+00> : vector<8x1024xf32>
    %2 = tpu.matmul %0, %1, %cst {dimension_numbers = #tpu.dot_dimension_numbers<[1], [0], [0], [1], [0, 0, 1, 1], [], []>} : vector<8x352xbf16>, vector<352x1024xbf16>, vector<8x1024xf32> -> vector<8x1024xf32>
    %c0_3 = arith.constant 0 : index
    %c0_4 = arith.constant 0 : index
    %3 = vector.load %arg3[%c0_3, %c0_4] : memref<1x1024xf32, #tpu.memory_space<vmem>>, vector<1x1024xf32>
    %4 = vector.broadcast %3 : vector<1x1024xf32> to vector<8x1024xf32>
    %5 = arith.addf %2, %4 : vector<8x1024xf32>
    %cst_5 = arith.constant 0.000000e+00 : f32
    %6 = vector.broadcast %cst_5 : f32 to vector<8x1024xf32>
    %7 = arith.maximumf %5, %6 : vector<8x1024xf32>
    %8 = arith.truncf %7 : vector<8x1024xf32> to vector<8x1024xbf16>
    %c0_6 = arith.constant 0 : index
    %c0_7 = arith.constant 0 : index
    %9 = vector.load %arg4[%c0_6, %c0_7] : memref<1024x1024xbf16, #tpu.memory_space<vmem>>, vector<1024x1024xbf16>
    %cst_8 = arith.constant dense<0.000000e+00> : vector<8x1024xf32>
    %10 = tpu.matmul %8, %9, %cst_8 {dimension_numbers = #tpu.dot_dimension_numbers<[1], [0], [0], [1], [0, 0, 1, 1], [], []>} : vector<8x1024xbf16>, vector<1024x1024xbf16>, vector<8x1024xf32> -> vector<8x1024xf32>
    %c0_9 = arith.constant 0 : index
    %c0_10 = arith.constant 0 : index
    %11 = vector.load %arg5[%c0_9, %c0_10] : memref<1x1024xf32, #tpu.memory_space<vmem>>, vector<1x1024xf32>
    %12 = vector.broadcast %11 : vector<1x1024xf32> to vector<8x1024xf32>
    %13 = arith.addf %10, %12 : vector<8x1024xf32>
    %cst_11 = arith.constant 0.000000e+00 : f32
    %14 = vector.broadcast %cst_11 : f32 to vector<8x1024xf32>
    %15 = arith.maximumf %13, %14 : vector<8x1024xf32>
    %16 = arith.truncf %15 : vector<8x1024xf32> to vector<8x1024xbf16>
    %c0_12 = arith.constant 0 : index
    %c0_13 = arith.constant 0 : index
    %17 = vector.load %arg6[%c0_12, %c0_13] : memref<1024x128xbf16, #tpu.memory_space<vmem>>, vector<1024x128xbf16>
    %cst_14 = arith.constant dense<0.000000e+00> : vector<8x128xf32>
    %18 = tpu.matmul %16, %17, %cst_14 {dimension_numbers = #tpu.dot_dimension_numbers<[1], [0], [0], [1], [0, 0, 1, 1], [], []>} : vector<8x1024xbf16>, vector<1024x128xbf16>, vector<8x128xf32> -> vector<8x128xf32>
    %c0_15 = arith.constant 0 : index
    %c0_16 = arith.constant 0 : index
    %19 = vector.load %arg7[%c0_15, %c0_16] : memref<1x128xf32, #tpu.memory_space<vmem>>, vector<1x128xf32>
    %20 = vector.broadcast %19 : vector<1x128xf32> to vector<8x128xf32>
    %21 = arith.addf %18, %20 : vector<8x128xf32>
    %cst_17 = arith.constant 0.000000e+00 : f32
    %22 = vector.broadcast %cst_17 : f32 to vector<8x128xf32>
    %23 = arith.maximumf %21, %22 : vector<8x128xf32>
    %24 = arith.truncf %23 : vector<8x128xf32> to vector<8x128xbf16>
    %c0_18 = arith.constant 0 : index
    %c0_19 = arith.constant 0 : index
    %25 = vector.load %arg8[%c0_18, %c0_19] : memref<128x128xbf16, #tpu.memory_space<vmem>>, vector<128x128xbf16>
    %cst_20 = arith.constant dense<0.000000e+00> : vector<8x128xf32>
    %26 = tpu.matmul %24, %25, %cst_20 {dimension_numbers = #tpu.dot_dimension_numbers<[1], [0], [0], [1], [0, 0, 1, 1], [], []>} : vector<8x128xbf16>, vector<128x128xbf16>, vector<8x128xf32> -> vector<8x128xf32>
    %c0_21 = arith.constant 0 : index
    %c0_22 = arith.constant 0 : index
    %27 = vector.load %arg9[%c0_21, %c0_22] : memref<352x128xbf16, #tpu.memory_space<vmem>>, vector<352x128xbf16>
    %cst_23 = arith.constant dense<0.000000e+00> : vector<8x128xf32>
    %28 = tpu.matmul %0, %27, %cst_23 {dimension_numbers = #tpu.dot_dimension_numbers<[1], [0], [0], [1], [0, 0, 1, 1], [], []>} : vector<8x352xbf16>, vector<352x128xbf16>, vector<8x128xf32> -> vector<8x128xf32>
    %29 = arith.addf %26, %28 : vector<8x128xf32>
    %c0_24 = arith.constant 0 : index
    %c0_25 = arith.constant 0 : index
    %30 = vector.load %arg10[%c0_24, %c0_25] : memref<1x128xf32, #tpu.memory_space<vmem>>, vector<1x128xf32>
    %31 = vector.broadcast %30 : vector<1x128xf32> to vector<8x128xf32>
    %32 = arith.addf %29, %31 : vector<8x128xf32>
    %cst_26 = arith.constant 0.000000e+00 : f32
    %33 = vector.broadcast %cst_26 : f32 to vector<8x128xf32>
    %34 = arith.maximumf %32, %33 : vector<8x128xf32>
    %35 = arith.truncf %34 : vector<8x128xf32> to vector<8x128xbf16>
    %c0_27 = arith.constant 0 : index
    %c0_28 = arith.constant 0 : index
    %36 = vector.load %arg11[%c0_27, %c0_28] : memref<128x128xbf16, #tpu.memory_space<vmem>>, vector<128x128xbf16>
    %cst_29 = arith.constant dense<0.000000e+00> : vector<8x128xf32>
    %37 = tpu.matmul %35, %36, %cst_29 {dimension_numbers = #tpu.dot_dimension_numbers<[1], [0], [0], [1], [0, 0, 1, 1], [], []>} : vector<8x128xbf16>, vector<128x128xbf16>, vector<8x128xf32> -> vector<8x128xf32>
    %c0_30 = arith.constant 0 : index
    %c0_31 = arith.constant 0 : index
    %38 = vector.load %arg12[%c0_30, %c0_31] : memref<1x128xf32, #tpu.memory_space<vmem>>, vector<1x128xf32>
    %39 = vector.broadcast %38 : vector<1x128xf32> to vector<8x128xf32>
    %40 = arith.addf %37, %39 : vector<8x128xf32>
    %c0_32 = arith.constant 0 : index
    %c0_33 = arith.constant 0 : index
    %41 = vector.load %arg13[%c0_32, %c0_33] : memref<8x128xf32, #tpu.memory_space<vmem>>, vector<8x128xf32>
    tpu.vector_store %arg13[%c0_32, %c0_33], %40 {strides = array<i32>} : memref<8x128xf32, #tpu.memory_space<vmem>>, vector<8x128xf32>,
    return
  }
  func.func @transform_0(%arg0: i32) -> (i32, i32) {
    %c0_i32 = arith.constant 0 : i32
    %c0_i32_0 = arith.constant 0 : i32
    return %arg0, %c0_i32 : i32, i32
  }
  func.func @transform_1(%arg0: i32) -> (i32, i32) {
    %c0_i32 = arith.constant 0 : i32
    %c0_i32_0 = arith.constant 0 : i32
    %c0_i32_1 = arith.constant 0 : i32
    return %c0_i32, %c0_i32_0 : i32, i32
  }
  func.func @transform_2(%arg0: i32) -> (i32, i32) {
    %c0_i32 = arith.constant 0 : i32
    %c0_i32_0 = arith.constant 0 : i32
    %c0_i32_1 = arith.constant 0 : i32
    return %c0_i32, %c0_i32_0 : i32, i32
  }
  func.func @transform_3(%arg0: i32) -> (i32, i32) {
    %c0_i32 = arith.constant 0 : i32
    %c0_i32_0 = arith.constant 0 : i32
    %c0_i32_1 = arith.constant 0 : i32
    return %c0_i32, %c0_i32_0 : i32, i32
  }
  func.func @transform_4(%arg0: i32) -> (i32, i32) {
    %c0_i32 = arith.constant 0 : i32
    %c0_i32_0 = arith.constant 0 : i32
    %c0_i32_1 = arith.constant 0 : i32
    return %c0_i32, %c0_i32_0 : i32, i32
  }
  func.func @transform_5(%arg0: i32) -> (i32, i32) {
    %c0_i32 = arith.constant 0 : i32
    %c0_i32_0 = arith.constant 0 : i32
    %c0_i32_1 = arith.constant 0 : i32
    return %c0_i32, %c0_i32_0 : i32, i32
  }
  func.func @transform_6(%arg0: i32) -> (i32, i32) {
    %c0_i32 = arith.constant 0 : i32
    %c0_i32_0 = arith.constant 0 : i32
    %c0_i32_1 = arith.constant 0 : i32
    return %c0_i32, %c0_i32_0 : i32, i32
  }
  func.func @transform_7(%arg0: i32) -> (i32, i32) {
    %c0_i32 = arith.constant 0 : i32
    %c0_i32_0 = arith.constant 0 : i32
    %c0_i32_1 = arith.constant 0 : i32
    return %c0_i32, %c0_i32_0 : i32, i32
  }
  func.func @transform_8(%arg0: i32) -> (i32, i32) {
    %c0_i32 = arith.constant 0 : i32
    %c0_i32_0 = arith.constant 0 : i32
    %c0_i32_1 = arith.constant 0 : i32
    return %c0_i32, %c0_i32_0 : i32, i32
  }
  func.func @transform_9(%arg0: i32) -> (i32, i32) {
    %c0_i32 = arith.constant 0 : i32
    %c0_i32_0 = arith.constant 0 : i32
    %c0_i32_1 = arith.constant 0 : i32
    return %c0_i32, %c0_i32_0 : i32, i32
  }
  func.func @transform_10(%arg0: i32) -> (i32, i32) {
    %c0_i32 = arith.constant 0 : i32
    %c0_i32_0 = arith.constant 0 : i32
    %c0_i32_1 = arith.constant 0 : i32
    return %c0_i32, %c0_i32_0 : i32, i32
  }
  func.func @transform_11(%arg0: i32) -> (i32, i32) {
    %c0_i32 = arith.constant 0 : i32
    %c0_i32_0 = arith.constant 0 : i32
    %c0_i32_1 = arith.constant 0 : i32
    return %c0_i32, %c0_i32_0 : i32, i32
  }
  func.func @transform_12(%arg0: i32) -> (i32, i32) {
    %c0_i32 = arith.constant 0 : i32
    %c0_i32_0 = arith.constant 0 : i32
    return %arg0, %c0_i32 : i32, i32
  }
}

</mosaic_0001>

<llo_original>
// kernel: tpu_custom_call.1
$region0: #{tpu_custom_call.1}
  #allocation0 [shape = 'u32[]', space=smem, size = 0x4, offset = 0x4, fixed_abs, tag = 'smem constant byte address 0x4 - core index']
  #allocation1 [shape = 'u32[144,128]{1,0:T(1,128)}', space=vmem, size = 0x12000, scoped, tag = 'internal scratch']
  %s0 = inlined_call_operand.hbm [shape: bf16[8,352], index: 0, kind: input, shape index: {}]
  %s1 = inlined_call_operand.hbm [shape: bf16[352,1024], index: 1, kind: input, shape index: {}]
  %s2 = inlined_call_operand.hbm [shape: f32[1,1024], index: 2, kind: input, shape index: {}]
  %s3 = inlined_call_operand.hbm [shape: bf16[1024,1024], index: 3, kind: input, shape index: {}]
  %s4 = inlined_call_operand.hbm [shape: f32[1,1024], index: 4, kind: input, shape index: {}]
  %s5 = inlined_call_operand.hbm [shape: bf16[1024,128], index: 5, kind: input, shape index: {}]
  %s6 = inlined_call_operand.hbm [shape: f32[1,128], index: 6, kind: input, shape index: {}]
  %s7 = inlined_call_operand.hbm [shape: bf16[128,128], index: 7, kind: input, shape index: {}]
  %s8 = inlined_call_operand.hbm [shape: bf16[352,128], index: 8, kind: input, shape index: {}]
  %s9 = inlined_call_operand.hbm [shape: f32[1,128], index: 9, kind: input, shape index: {}]
  %s10 = inlined_call_operand.hbm [shape: bf16[128,128], index: 10, kind: input, shape index: {}]
  %s11 = inlined_call_operand.hbm [shape: f32[1,128], index: 11, kind: input, shape index: {}]
  %s12 = inlined_call_operand.hbm [shape: f32[8,128], index: 12, kind: output, shape index: {}]
  %s13 = sld [smem:[#allocation0]]
  $region106: #{tpu_custom_call.1} parent=0
    _
  %s15 = ssub.s32 1, %s13
  %s16 = scalar_select 0, %s15, %s13
  $region1: #{tpu_custom_call.1} parent=0
    #allocation2 [shape = 'u8[6144]{0}', space=vmem, size = 0x1800, scoped, tag = 'input window, operand 0, single buffered']
    #allocation3 [shape = 's32[1]{0}', space=sflag, size = 0x4, scoped, tag = 'scoped memory for tpu_custom_call.1']
    #allocation4 [shape = 's32[1]{0}', space=sflag, size = 0x4, scoped, tag = 'scoped memory for tpu_custom_call.1']
    #allocation5 [shape = 'u8[720896]{0}', space=vmem, size = 0xb0000, scoped, tag = 'input window, operand 1, single buffered']
    #allocation6 [shape = 's32[1]{0}', space=sflag, size = 0x4, scoped, tag = 'scoped memory for tpu_custom_call.1']
    #allocation7 [shape = 'u8[4096]{0}', space=vmem, size = 0x1000, scoped, tag = 'input window, operand 2, single buffered']
    #allocation8 [shape = 'u8[2097152]{0}', space=vmem, size = 0x200000, scoped, tag = 'input window, operand 3, single buffered']
    #allocation9 [shape = 's32[1]{0}', space=sflag, size = 0x4, scoped, tag = 'scoped memory for tpu_custom_call.1']
    #allocation10 [shape = 'u8[4096]{0}', space=vmem, size = 0x1000, scoped, tag = 'input window, operand 4, single buffered']
    #allocation11 [shape = 'u8[262144]{0}', space=vmem, size = 0x40000, scoped, tag = 'input window, operand 5, single buffered']
    #allocation12 [shape = 's32[1]{0}', space=sflag, size = 0x4, scoped, tag = 'scoped memory for tpu_custom_call.1']
    #allocation13 [shape = 'u8[512]{0}', space=vmem, size = 0x400, scoped, tag = 'input window, operand 6, single buffered']
    #allocation14 [shape = 'u8[32768]{0}', space=vmem, size = 0x8000, scoped, tag = 'input window, operand 7, single buffered']
    #allocation15 [shape = 's32[1]{0}', space=sflag, size = 0x4, scoped, tag = 'scoped memory for tpu_custom_call.1']
    #allocation16 [shape = 'u8[90112]{0}', space=vmem, size = 0x16000, scoped, tag = 'input window, operand 8, single buffered']
    #allocation17 [shape = 'u8[512]{0}', space=vmem, size = 0x400, scoped, tag = 'input window, operand 9, single buffered']
    #allocation18 [shape = 's32[1]{0}', space=sflag, size = 0x4, scoped, tag = 'scoped memory for tpu_custom_call.1']
    #allocation19 [shape = 'u8[32768]{0}', space=vmem, size = 0x8000, scoped, tag = 'input window, operand 10, single buffered']
    #allocation20 [shape = 'u8[512]{0}', space=vmem, size = 0x400, scoped, tag = 'input window, operand 11, single buffered']
    #allocation21 [shape = 's32[1]{0}', space=sflag, size = 0x4, scoped, tag = 'scoped memory for tpu_custom_call.1']
    #allocation22 [shape = 'u8[4096]{0}', space=vmem, size = 0x1000, scoped, tag = 'output window, operand 0, single buffered']
    %17 = vsyncpa [#allocation3], 0
    %18 = vsyncpa [#allocation6], 0
    %19 = vsyncpa [#allocation9], 0
    %20 = vsyncpa [#allocation12], 0
    %21 = vsyncpa [#allocation15], 0
    %22 = vsyncpa [#allocation18], 0
    %23 = vsyncpa [#allocation21], 0
    %24 = vsyncpa [#allocation4], 0
    // Predicated region
    $region2: #{tpu_custom_call.1} parent=1 // pred_check
      _
    $region3: #{tpu_custom_call.1} parent=1 // pred_check_branch
      %26 = sbr.rel (0) target = $region5
    $region4: #{tpu_custom_call.1} parent=1 // pred_region
      %s28 = ssub.s32 192, 192
      %29 = vsyncadd [#allocation3], %s28
      %s31 = sshll.u32 [#allocation2], 4
      %s32 = int_to_ptr.vmem [resolvable:$true] %s31
      %34 = dma.hbm_to_vmem [thread:$0]  %s0, 192, %s32, [#allocation3]
    $region5: #{tpu_custom_call.1} parent=1 // pred_fallthru
      _
    // Predicated region
    $region6: #{tpu_custom_call.1} parent=1 // pred_check
      _
    $region7: #{tpu_custom_call.1} parent=1 // pred_check_branch
      %36 = sbr.rel (0) target = $region9
    $region8: #{tpu_custom_call.1} parent=1 // pred_region
      %s38 = ssub.s32 22528, 22528
      %39 = vsyncadd [#allocation6], %s38
      %s40 = sshll.u32 [#allocation5], 4
      %s41 = int_to_ptr.vmem [resolvable:$true] %s40
      %46 = dma.hbm_to_vmem [thread:$0]  %s1, 22528, %s41, [#allocation6], 512, 512, 32
    $region9: #{tpu_custom_call.1} parent=1 // pred_fallthru
      _
    // Predicated region
    $region10: #{tpu_custom_call.1} parent=1 // pred_check
      _
    $region11: #{tpu_custom_call.1} parent=1 // pred_check_branch
      %48 = sbr.rel (0) target = $region13
    $region12: #{tpu_custom_call.1} parent=1 // pred_region
      %s50 = ssub.s32 128, 128
      %51 = vsyncadd [#allocation6], %s50
      %s53 = sshll.u32 [#allocation7], 4
      %s54 = int_to_ptr.vmem [resolvable:$true] %s53
      %56 = dma.hbm_to_vmem [thread:$0]  %s2, 128, %s54, [#allocation6]
    $region13: #{tpu_custom_call.1} parent=1 // pred_fallthru
      _
    // Predicated region
    $region14: #{tpu_custom_call.1} parent=1 // pred_check
      _
    $region15: #{tpu_custom_call.1} parent=1 // pred_check_branch
      %58 = sbr.rel (0) target = $region17
    $region16: #{tpu_custom_call.1} parent=1 // pred_region
      %s60 = ssub.s32 65536, 65536
      %61 = vsyncadd [#allocation9], %s60
      %s62 = sshll.u32 [#allocation8], 4
      %s63 = int_to_ptr.vmem [resolvable:$true] %s62
      %68 = dma.hbm_to_vmem [thread:$0]  %s3, 65536, %s63, [#allocation9], 512, 512, 32
    $region17: #{tpu_custom_call.1} parent=1 // pred_fallthru
      _
    // Predicated region
    $region18: #{tpu_custom_call.1} parent=1 // pred_check
      _
    $region19: #{tpu_custom_call.1} parent=1 // pred_check_branch
      %70 = sbr.rel (0) target = $region21
    $region20: #{tpu_custom_call.1} parent=1 // pred_region
      %s72 = ssub.s32 128, 128
      %73 = vsyncadd [#allocation9], %s72
      %s75 = sshll.u32 [#allocation10], 4
      %s76 = int_to_ptr.vmem [resolvable:$true] %s75
      %78 = dma.hbm_to_vmem [thread:$0]  %s4, 128, %s76, [#allocation9]
    $region21: #{tpu_custom_call.1} parent=1 // pred_fallthru
      _
    // Predicated region
    $region22: #{tpu_custom_call.1} parent=1 // pred_check
      _
    $region23: #{tpu_custom_call.1} parent=1 // pred_check_branch
      %80 = sbr.rel (0) target = $region25
    $region24: #{tpu_custom_call.1} parent=1 // pred_region
      %s82 = ssub.s32 8192, 8192
      %83 = vsyncadd [#allocation12], %s82
      %s84 = sshll.u32 [#allocation11], 4
      %s85 = int_to_ptr.vmem [resolvable:$true] %s84
      %90 = dma.hbm_to_vmem [thread:$0]  %s5, 8192, %s85, [#allocation12], 64, 64, 4
    $region25: #{tpu_custom_call.1} parent=1 // pred_fallthru
      _
    // Predicated region
    $region26: #{tpu_custom_call.1} parent=1 // pred_check
      _
    $region27: #{tpu_custom_call.1} parent=1 // pred_check_branch
      %92 = sbr.rel (0) target = $region29
    $region28: #{tpu_custom_call.1} parent=1 // pred_region
      %s94 = ssub.s32 16, 16
      %95 = vsyncadd [#allocation12], %s94
      %s97 = sshll.u32 [#allocation13], 4
      %s98 = int_to_ptr.vmem [resolvable:$true] %s97
      %100 = dma.hbm_to_vmem [thread:$0]  %s6, 16, %s98, [#allocation12]
    $region29: #{tpu_custom_call.1} parent=1 // pred_fallthru
      _
    // Predicated region
    $region30: #{tpu_custom_call.1} parent=1 // pred_check
      _
    $region31: #{tpu_custom_call.1} parent=1 // pred_check_branch
      %102 = sbr.rel (0) target = $region33
    $region32: #{tpu_custom_call.1} parent=1 // pred_region
      %s104 = ssub.s32 1024, 1024
      %105 = vsyncadd [#allocation15], %s104
      %s106 = sshll.u32 [#allocation14], 4
      %s107 = int_to_ptr.vmem [resolvable:$true] %s106
      %112 = dma.hbm_to_vmem [thread:$0]  %s7, 1024, %s107, [#allocation15], 64, 64, 4
    $region33: #{tpu_custom_call.1} parent=1 // pred_fallthru
      _
    // Predicated region
    $region34: #{tpu_custom_call.1} parent=1 // pred_check
      _
    $region35: #{tpu_custom_call.1} parent=1 // pred_check_branch
      %114 = sbr.rel (0) target = $region37
    $region36: #{tpu_custom_call.1} parent=1 // pred_region
      %s116 = ssub.s32 2816, 2816
      %117 = vsyncadd [#allocation15], %s116
      %s118 = sshll.u32 [#allocation16], 4
      %s119 = int_to_ptr.vmem [resolvable:$true] %s118
      %124 = dma.hbm_to_vmem [thread:$0]  %s8, 2816, %s119, [#allocation15], 64, 64, 4
    $region37: #{tpu_custom_call.1} parent=1 // pred_fallthru
      _
    // Predicated region
    $region38: #{tpu_custom_call.1} parent=1 // pred_check
      _
    $region39: #{tpu_custom_call.1} parent=1 // pred_check_branch
      %126 = sbr.rel (0) target = $region41
    $region40: #{tpu_custom_call.1} parent=1 // pred_region
      %s128 = ssub.s32 16, 16
      %129 = vsyncadd [#allocation18], %s128
      %s131 = sshll.u32 [#allocation17], 4
      %s132 = int_to_ptr.vmem [resolvable:$true] %s131
      %134 = dma.hbm_to_vmem [thread:$0]  %s9, 16, %s132, [#allocation18]
    $region41: #{tpu_custom_call.1} parent=1 // pred_fallthru
      _
    // Predicated region
    $region42: #{tpu_custom_call.1} parent=1 // pred_check
      _
    $region43: #{tpu_custom_call.1} parent=1 // pred_check_branch
      %136 = sbr.rel (0) target = $region45
    $region44: #{tpu_custom_call.1} parent=1 // pred_region
      %s138 = ssub.s32 1024, 1024
      %139 = vsyncadd [#allocation18], %s138
      %s140 = sshll.u32 [#allocation19], 4
      %s141 = int_to_ptr.vmem [resolvable:$true] %s140
      %146 = dma.hbm_to_vmem [thread:$0]  %s10, 1024, %s141, [#allocation18], 64, 64, 4
    $region45: #{tpu_custom_call.1} parent=1 // pred_fallthru
      _
    // Predicated region
    $region46: #{tpu_custom_call.1} parent=1 // pred_check
      _
    $region47: #{tpu_custom_call.1} parent=1 // pred_check_branch
      %148 = sbr.rel (0) target = $region49
    $region48: #{tpu_custom_call.1} parent=1 // pred_region
      %s150 = ssub.s32 16, 16
      %151 = vsyncadd [#allocation21], %s150
      %s153 = sshll.u32 [#allocation20], 4
      %s154 = int_to_ptr.vmem [resolvable:$true] %s153
      %156 = dma.hbm_to_vmem [thread:$0]  %s11, 16, %s154, [#allocation21]
    $region49: #{tpu_custom_call.1} parent=1 // pred_fallthru
      _
    // Predicated region
    $region50: #{tpu_custom_call.1} parent=1 // pred_check
      _
    $region51: #{tpu_custom_call.1} parent=1 // pred_check_branch
      %158 = sbr.rel (0) target = $region53
    $region52: #{tpu_custom_call.1} parent=1 // pred_region
      %159 = dma.done [#allocation3], 192
    $region53: #{tpu_custom_call.1} parent=1 // pred_fallthru
      _
    // Predicated region
    $region54: #{tpu_custom_call.1} parent=1 // pred_check
      _
    $region55: #{tpu_custom_call.1} parent=1 // pred_check_branch
      %161 = sbr.rel (0) target = $region57
    $region56: #{tpu_custom_call.1} parent=1 // pred_region
      %162 = dma.done [#allocation6], 22528
    $region57: #{tpu_custom_call.1} parent=1 // pred_fallthru
      _
    // Predicated region
    $region58: #{tpu_custom_call.1} parent=1 // pred_check
      _
    $region59: #{tpu_custom_call.1} parent=1 // pred_check_branch
      %164 = sbr.rel (0) target = $region61
    $region60: #{tpu_custom_call.1} parent=1 // pred_region
      %165 = dma.done [#allocation6], 128
    $region61: #{tpu_custom_call.1} parent=1 // pred_fallthru
      _
    // Predicated region
    $region62: #{tpu_custom_call.1} parent=1 // pred_check
      _
    $region63: #{tpu_custom_call.1} parent=1 // pred_check_branch
      %167 = sbr.rel (0) target = $region65
    $region64: #{tpu_custom_call.1} parent=1 // pred_region
      %168 = dma.done [#allocation9], 65536
    $region65: #{tpu_custom_call.1} parent=1 // pred_fallthru
      _
    // Predicated region
    $region66: #{tpu_custom_call.1} parent=1 // pred_check
      _
    $region67: #{tpu_custom_call.1} parent=1 // pred_check_branch
      %170 = sbr.rel (0) target = $region69
    $region68: #{tpu_custom_call.1} parent=1 // pred_region
      %171 = dma.done [#allocation9], 128
    $region69: #{tpu_custom_call.1} parent=1 // pred_fallthru
      _
    // Predicated region
    $region70: #{tpu_custom_call.1} parent=1 // pred_check
      _
    $region71: #{tpu_custom_call.1} parent=1 // pred_check_branch
      %173 = sbr.rel (0) target = $region73
    $region72: #{tpu_custom_call.1} parent=1 // pred_region
      %174 = dma.done [#allocation12], 8192
    $region73: #{tpu_custom_call.1} parent=1 // pred_fallthru
      _
    // Predicated region
    $region74: #{tpu_custom_call.1} parent=1 // pred_check
      _
    $region75: #{tpu_custom_call.1} parent=1 // pred_check_branch
      %176 = sbr.rel (0) target = $region77
    $region76: #{tpu_custom_call.1} parent=1 // pred_region
      %177 = dma.done [#allocation12], 16
    $region77: #{tpu_custom_call.1} parent=1 // pred_fallthru
      _
    // Predicated region
    $region78: #{tpu_custom_call.1} parent=1 // pred_check
      _
    $region79: #{tpu_custom_call.1} parent=1 // pred_check_branch
      %179 = sbr.rel (0) target = $region81
    $region80: #{tpu_custom_call.1} parent=1 // pred_region
      %180 = dma.done [#allocation15], 1024
    $region81: #{tpu_custom_call.1} parent=1 // pred_fallthru
      _
    // Predicated region
    $region82: #{tpu_custom_call.1} parent=1 // pred_check
      _
    $region83: #{tpu_custom_call.1} parent=1 // pred_check_branch
      %182 = sbr.rel (0) target = $region85
    $region84: #{tpu_custom_call.1} parent=1 // pred_region
      %183 = dma.done [#allocation15], 2816
    $region85: #{tpu_custom_call.1} parent=1 // pred_fallthru
      _
    // Predicated region
    $region86: #{tpu_custom_call.1} parent=1 // pred_check
      _
    $region87: #{tpu_custom_call.1} parent=1 // pred_check_branch
      %185 = sbr.rel (0) target = $region89
    $region88: #{tpu_custom_call.1} parent=1 // pred_region
      %186 = dma.done [#allocation18], 16
    $region89: #{tpu_custom_call.1} parent=1 // pred_fallthru
      _
    // Predicated region
    $region90: #{tpu_custom_call.1} parent=1 // pred_check
      _
    $region91: #{tpu_custom_call.1} parent=1 // pred_check_branch
      %188 = sbr.rel (0) target = $region93
    $region92: #{tpu_custom_call.1} parent=1 // pred_region
      %189 = dma.done [#allocation18], 1024
    $region93: #{tpu_custom_call.1} parent=1 // pred_fallthru
      _
    // Predicated region
    $region94: #{tpu_custom_call.1} parent=1 // pred_check
      _
    $region95: #{tpu_custom_call.1} parent=1 // pred_check_branch
      %191 = sbr.rel (0) target = $region97
    $region96: #{tpu_custom_call.1} parent=1 // pred_region
      %192 = dma.done [#allocation21], 16
    $region97: #{tpu_custom_call.1} parent=1 // pred_fallthru
      _
    %v194 = vld [vmem:[#allocation2] sm:$0xff]
    %v195 = vld [vmem:[#allocation2 + $0x8] sm:$0xf]
    %v196 = vld [vmem:[#allocation5] sm:$0xff]
    %v197 = vld [vmem:[#allocation5 + $0x8] sm:$0xff]
    %v198 = vld [vmem:[#allocation5 + $0x10] sm:$0xff]
    %v199 = vld [vmem:[#allocation5 + $0x18] sm:$0xff]
    %v200 = vld [vmem:[#allocation5 + $0x20] sm:$0xff]
    %v201 = vld [vmem:[#allocation5 + $0x28] sm:$0xff]
    %v202 = vld [vmem:[#allocation5 + $0x30] sm:$0xff]
    %v203 = vld [vmem:[#allocation5 + $0x38] sm:$0xff]
    %v204 = vld [vmem:[#allocation5 + $0x40] sm:$0xff]
    %v205 = vld [vmem:[#allocation5 + $0x48] sm:$0xff]
    %v206 = vld [vmem:[#allocation5 + $0x50] sm:$0xff]
    %v207 = vld [vmem:[#allocation5 + $0x58] sm:$0xff]
    %v208 = vld [vmem:[#allocation5 + $0x60] sm:$0xff]
    %v209 = vld [vmem:[#allocation5 + $0x68] sm:$0xff]
    %v210 = vld [vmem:[#allocation5 + $0x70] sm:$0xff]
    %v211 = vld [vmem:[#allocation5 + $0x78] sm:$0xff]
    %v212 = vld [vmem:[#allocation5 + $0x80] sm:$0xff]
    %v213 = vld [vmem:[#allocation5 + $0x88] sm:$0xff]
    %v214 = vld [vmem:[#allocation5 + $0x90] sm:$0xff]
    %v215 = vld [vmem:[#allocation5 + $0x98] sm:$0xff]
    %v216 = vld [vmem:[#allocation5 + $0xa0] sm:$0xff]
    %v217 = vld [vmem:[#allocation5 + $0xa8] sm:$0xff]
    %v218 = vld [vmem:[#allocation5 + $0xb0] sm:$0xff]
    %v219 = vld [vmem:[#allocation5 + $0xb8] sm:$0xff]
    %v220 = vld [vmem:[#allocation5 + $0xc0] sm:$0xff]
    %v221 = vld [vmem:[#allocation5 + $0xc8] sm:$0xff]
    %v222 = vld [vmem:[#allocation5 + $0xd0] sm:$0xff]
    %v223 = vld [vmem:[#allocation5 + $0xd8] sm:$0xff]
    %v224 = vld [vmem:[#allocation5 + $0xe0] sm:$0xff]
    %v225 = vld [vmem:[#allocation5 + $0xe8] sm:$0xff]
    %v226 = vld [vmem:[#allocation5 + $0xf0] sm:$0xff]
    %v227 = vld [vmem:[#allocation5 + $0xf8] sm:$0xff]
    %v228 = vld [vmem:[#allocation5 + $0x100] sm:$0xff]
    %v229 = vld [vmem:[#allocation5 + $0x108] sm:$0xff]
    %v230 = vld [vmem:[#allocation5 + $0x110] sm:$0xff]
    %v231 = vld [vmem:[#allocation5 + $0x118] sm:$0xff]
    %v232 = vld [vmem:[#allocation5 + $0x120] sm:$0xff]
    %v233 = vld [vmem:[#allocation5 + $0x128] sm:$0xff]
    %v234 = vld [vmem:[#allocation5 + $0x130] sm:$0xff]
    %v235 = vld [vmem:[#allocation5 + $0x138] sm:$0xff]
    %v236 = vld [vmem:[#allocation5 + $0x140] sm:$0xff]
    %v237 = vld [vmem:[#allocation5 + $0x148] sm:$0xff]
    %v238 = vld [vmem:[#allocation5 + $0x150] sm:$0xff]
    %v239 = vld [vmem:[#allocation5 + $0x158] sm:$0xff]
    %v240 = vld [vmem:[#allocation5 + $0x160] sm:$0xff]
    %v241 = vld [vmem:[#allocation5 + $0x168] sm:$0xff]
    %v242 = vld [vmem:[#allocation5 + $0x170] sm:$0xff]
    %v243 = vld [vmem:[#allocation5 + $0x178] sm:$0xff]
    %v244 = vld [vmem:[#allocation5 + $0x180] sm:$0xff]
    %v245 = vld [vmem:[#allocation5 + $0x188] sm:$0xff]
    %v246 = vld [vmem:[#allocation5 + $0x190] sm:$0xff]
    %v247 = vld [vmem:[#allocation5 + $0x198] sm:$0xff]
    %v248 = vld [vmem:[#allocation5 + $0x1a0] sm:$0xff]
    %v249 = vld [vmem:[#allocation5 + $0x1a8] sm:$0xff]
    %v250 = vld [vmem:[#allocation5 + $0x1b0] sm:$0xff]
    %v251 = vld [vmem:[#allocation5 + $0x1b8] sm:$0xff]
    %v252 = vld [vmem:[#allocation5 + $0x1c0] sm:$0xff]
    %v253 = vld [vmem:[#allocation5 + $0x1c8] sm:$0xff]
    %v254 = vld [vmem:[#allocation5 + $0x1d0] sm:$0xff]
    %v255 = vld [vmem:[#allocation5 + $0x1d8] sm:$0xff]
    %v256 = vld [vmem:[#allocation5 + $0x1e0] sm:$0xff]
    %v257 = vld [vmem:[#allocation5 + $0x1e8] sm:$0xff]
    %v258 = vld [vmem:[#allocation5 + $0x1f0] sm:$0xff]
    %v259 = vld [vmem:[#allocation5 + $0x1f8] sm:$0xff]
    %v260 = vld [vmem:[#allocation5 + $0x200] sm:$0xff]
    %v261 = vld [vmem:[#allocation5 + $0x208] sm:$0xff]
    %v262 = vld [vmem:[#allocation5 + $0x210] sm:$0xff]
    %v263 = vld [vmem:[#allocation5 + $0x218] sm:$0xff]
    %v264 = vld [vmem:[#allocation5 + $0x220] sm:$0xff]
    %v265 = vld [vmem:[#allocation5 + $0x228] sm:$0xff]
    %v266 = vld [vmem:[#allocation5 + $0x230] sm:$0xff]
    %v267 = vld [vmem:[#allocation5 + $0x238] sm:$0xff]
    %v268 = vld [vmem:[#allocation5 + $0x240] sm:$0xff]
    %v269 = vld [vmem:[#allocation5 + $0x248] sm:$0xff]
    %v270 = vld [vmem:[#allocation5 + $0x250] sm:$0xff]
    %v271 = vld [vmem:[#allocation5 + $0x258] sm:$0xff]
    %v272 = vld [vmem:[#allocation5 + $0x260] sm:$0xff]
    %v273 = vld [vmem:[#allocation5 + $0x268] sm:$0xff]
    %v274 = vld [vmem:[#allocation5 + $0x270] sm:$0xff]
    %v275 = vld [vmem:[#allocation5 + $0x278] sm:$0xff]
    %v276 = vld [vmem:[#allocation5 + $0x280] sm:$0xff]
    %v277 = vld [vmem:[#allocation5 + $0x288] sm:$0xff]
    %v278 = vld [vmem:[#allocation5 + $0x290] sm:$0xff]
    %v279 = vld [vmem:[#allocation5 + $0x298] sm:$0xff]
    %v280 = vld [vmem:[#allocation5 + $0x2a0] sm:$0xff]
    %v281 = vld [vmem:[#allocation5 + $0x2a8] sm:$0xff]
    %v282 = vld [vmem:[#allocation5 + $0x2b0] sm:$0xff]
    %v283 = vld [vmem:[#allocation5 + $0x2b8] sm:$0xff]
    %v284 = vld [vmem:[#allocation5 + $0x2c0] sm:$0xff]
    %v285 = vld [vmem:[#allocation5 + $0x2c8] sm:$0xff]
    %v286 = vld [vmem:[#allocation5 + $0x2d0] sm:$0xff]
    %v287 = vld [vmem:[#allocation5 + $0x2d8] sm:$0xff]
    %v288 = vld [vmem:[#allocation5 + $0x2e0] sm:$0xff]
    %v289 = vld [vmem:[#allocation5 + $0x2e8] sm:$0xff]
    %v290 = vld [vmem:[#allocation5 + $0x2f0] sm:$0xff]
    %v291 = vld [vmem:[#allocation5 + $0x2f8] sm:$0xff]
    %v292 = vld [vmem:[#allocation5 + $0x300] sm:$0xff]
    %v293 = vld [vmem:[#allocation5 + $0x308] sm:$0xff]
    %v294 = vld [vmem:[#allocation5 + $0x310] sm:$0xff]
    %v295 = vld [vmem:[#allocation5 + $0x318] sm:$0xff]
    %v296 = vld [vmem:[#allocation5 + $0x320] sm:$0xff]
    %v297 = vld [vmem:[#allocation5 + $0x328] sm:$0xff]
    %v298 = vld [vmem:[#allocation5 + $0x330] sm:$0xff]
    %v299 = vld [vmem:[#allocation5 + $0x338] sm:$0xff]
    %v300 = vld [vmem:[#allocation5 + $0x340] sm:$0xff]
    %v301 = vld [vmem:[#allocation5 + $0x348] sm:$0xff]
    %v302 = vld [vmem:[#allocation5 + $0x350] sm:$0xff]
    %v303 = vld [vmem:[#allocation5 + $0x358] sm:$0xff]
    %v304 = vld [vmem:[#allocation5 + $0x360] sm:$0xff]
    %v305 = vld [vmem:[#allocation5 + $0x368] sm:$0xff]
    %v306 = vld [vmem:[#allocation5 + $0x370] sm:$0xff]
    %v307 = vld [vmem:[#allocation5 + $0x378] sm:$0xff]
    %v308 = vld [vmem:[#allocation5 + $0x380] sm:$0xff]
    %v309 = vld [vmem:[#allocation5 + $0x388] sm:$0xff]
    %v310 = vld [vmem:[#allocation5 + $0x390] sm:$0xff]
    %v311 = vld [vmem:[#allocation5 + $0x398] sm:$0xff]
    %v312 = vld [vmem:[#allocation5 + $0x3a0] sm:$0xff]
    %v313 = vld [vmem:[#allocation5 + $0x3a8] sm:$0xff]
    %v314 = vld [vmem:[#allocation5 + $0x3b0] sm:$0xff]
    %v315 = vld [vmem:[#allocation5 + $0x3b8] sm:$0xff]
    %v316 = vld [vmem:[#allocation5 + $0x3c0] sm:$0xff]
    %v317 = vld [vmem:[#allocation5 + $0x3c8] sm:$0xff]
    %v318 = vld [vmem:[#allocation5 + $0x3d0] sm:$0xff]
    %v319 = vld [vmem:[#allocation5 + $0x3d8] sm:$0xff]
    %v320 = vld [vmem:[#allocation5 + $0x3e0] sm:$0xff]
    %v321 = vld [vmem:[#allocation5 + $0x3e8] sm:$0xff]
    %v322 = vld [vmem:[#allocation5 + $0x3f0] sm:$0xff]
    %v323 = vld [vmem:[#allocation5 + $0x3f8] sm:$0xff]
    %v324 = vld [vmem:[#allocation5 + $0x400] sm:$0xff]
    %v325 = vld [vmem:[#allocation5 + $0x408] sm:$0xff]
    %v326 = vld [vmem:[#allocation5 + $0x410] sm:$0xff]
    %v327 = vld [vmem:[#allocation5 + $0x418] sm:$0xff]
    %v328 = vld [vmem:[#allocation5 + $0x420] sm:$0xff]
    %v329 = vld [vmem:[#allocation5 + $0x428] sm:$0xff]
    %v330 = vld [vmem:[#allocation5 + $0x430] sm:$0xff]
    %v331 = vld [vmem:[#allocation5 + $0x438] sm:$0xff]
    %v332 = vld [vmem:[#allocation5 + $0x440] sm:$0xff]
    %v333 = vld [vmem:[#allocation5 + $0x448] sm:$0xff]
    %v334 = vld [vmem:[#allocation5 + $0x450] sm:$0xff]
    %v335 = vld [vmem:[#allocation5 + $0x458] sm:$0xff]
    %v336 = vld [vmem:[#allocation5 + $0x460] sm:$0xff]
    %v337 = vld [vmem:[#allocation5 + $0x468] sm:$0xff]
    %v338 = vld [vmem:[#allocation5 + $0x470] sm:$0xff]
    %v339 = vld [vmem:[#allocation5 + $0x478] sm:$0xff]
    %v340 = vld [vmem:[#allocation5 + $0x480] sm:$0xff]
    %v341 = vld [vmem:[#allocation5 + $0x488] sm:$0xff]
    %v342 = vld [vmem:[#allocation5 + $0x490] sm:$0xff]
    %v343 = vld [vmem:[#allocation5 + $0x498] sm:$0xff]
    %v344 = vld [vmem:[#allocation5 + $0x4a0] sm:$0xff]
    %v345 = vld [vmem:[#allocation5 + $0x4a8] sm:$0xff]
    %v346 = vld [vmem:[#allocation5 + $0x4b0] sm:$0xff]
    %v347 = vld [vmem:[#allocation5 + $0x4b8] sm:$0xff]
    %v348 = vld [vmem:[#allocation5 + $0x4c0] sm:$0xff]
    %v349 = vld [vmem:[#allocation5 + $0x4c8] sm:$0xff]
    %v350 = vld [vmem:[#allocation5 + $0x4d0] sm:$0xff]
    %v351 = vld [vmem:[#allocation5 + $0x4d8] sm:$0xff]
    %v352 = vld [vmem:[#allocation5 + $0x4e0] sm:$0xff]
    %v353 = vld [vmem:[#allocation5 + $0x4e8] sm:$0xff]
    %v354 = vld [vmem:[#allocation5 + $0x4f0] sm:$0xff]
    %v355 = vld [vmem:[#allocation5 + $0x4f8] sm:$0xff]
    %v356 = vld [vmem:[#allocation5 + $0x500] sm:$0xff]
    %v357 = vld [vmem:[#allocation5 + $0x508] sm:$0xff]
    %v358 = vld [vmem:[#allocation5 + $0x510] sm:$0xff]
    %v359 = vld [vmem:[#allocation5 + $0x518] sm:$0xff]
    %v360 = vld [vmem:[#allocation5 + $0x520] sm:$0xff]
    %v361 = vld [vmem:[#allocation5 + $0x528] sm:$0xff]
    %v362 = vld [vmem:[#allocation5 + $0x530] sm:$0xff]
    %v363 = vld [vmem:[#allocation5 + $0x538] sm:$0xff]
    %v364 = vld [vmem:[#allocation5 + $0x540] sm:$0xff]
    %v365 = vld [vmem:[#allocation5 + $0x548] sm:$0xff]
    %v366 = vld [vmem:[#allocation5 + $0x550] sm:$0xff]
    %v367 = vld [vmem:[#allocation5 + $0x558] sm:$0xff]
    %v368 = vld [vmem:[#allocation5 + $0x560] sm:$0xff]
    %v369 = vld [vmem:[#allocation5 + $0x568] sm:$0xff]
    %v370 = vld [vmem:[#allocation5 + $0x570] sm:$0xff]
    %v371 = vld [vmem:[#allocation5 + $0x578] sm:$0xff]
    %v372 = vld [vmem:[#allocation7] sm:$0xff]
    %v374 = vlaneseq
    %v375 = vshrl.u32 %v374, 7
    %v376 = vsub.s32 0, %v375
    %v377 = vrot.slane %v372, %v376
    %v378 = vlaneseq
    %v379 = vshrl.u32 %v378, 7
    %v380 = vsub.s32 1, %v379
    %v381 = vrot.slane %v372, %v380
    %v382 = vlaneseq
    %v383 = vshrl.u32 %v382, 7
    %v384 = vsub.s32 2, %v383
    %v385 = vrot.slane %v372, %v384
    %v386 = vlaneseq
    %v387 = vshrl.u32 %v386, 7
    %v388 = vsub.s32 3, %v387
    %v389 = vrot.slane %v372, %v388
    %v390 = vlaneseq
    %v391 = vshrl.u32 %v390, 7
    %v392 = vsub.s32 4, %v391
    %v393 = vrot.slane %v372, %v392
    %v394 = vlaneseq
    %v395 = vshrl.u32 %v394, 7
    %v396 = vsub.s32 5, %v395
    %v397 = vrot.slane %v372, %v396
    %v398 = vlaneseq
    %v399 = vshrl.u32 %v398, 7
    %v400 = vsub.s32 6, %v399
    %v401 = vrot.slane %v372, %v400
    %v402 = vlaneseq
    %v403 = vshrl.u32 %v402, 7
    %v404 = vsub.s32 7, %v403
    %v405 = vrot.slane %v372, %v404
    %v416 = vunpack.c.l.b16 %v194
    %v417 = vunpack.c.h.b16 %v194
    %v418 = vunpack.c.l.b16 %v195
    %v419 = vpack.c.b16 %v416, %v416
    %v420 = vpack.c.b16 %v417, %v417
    %v421 = vpack.c.b16 %v418, %v418
    %v600 = vunpack.c.l.b16 %v196
    %v601 = vunpack.c.h.b16 %v196
    %v602 = vunpack.c.l.b16 %v197
    %v603 = vunpack.c.h.b16 %v197
    %v604 = vunpack.c.l.b16 %v198
    %v605 = vunpack.c.h.b16 %v198
    %v606 = vunpack.c.l.b16 %v199
    %v607 = vunpack.c.h.b16 %v199
    %v608 = vunpack.c.l.b16 %v200
    %v609 = vunpack.c.h.b16 %v200
    %v610 = vunpack.c.l.b16 %v201
    %v611 = vunpack.c.h.b16 %v201
    %v612 = vunpack.c.l.b16 %v202
    %v613 = vunpack.c.h.b16 %v202
    %v614 = vunpack.c.l.b16 %v203
    %v615 = vunpack.c.h.b16 %v203
    %v616 = vunpack.c.l.b16 %v204
    %v617 = vunpack.c.h.b16 %v204
    %v618 = vunpack.c.l.b16 %v205
    %v619 = vunpack.c.h.b16 %v205
    %v620 = vunpack.c.l.b16 %v206
    %v621 = vunpack.c.h.b16 %v206
    %v622 = vunpack.c.l.b16 %v207
    %v623 = vunpack.c.h.b16 %v207
    %v624 = vunpack.c.l.b16 %v208
    %v625 = vunpack.c.h.b16 %v208
    %v626 = vunpack.c.l.b16 %v209
    %v627 = vunpack.c.h.b16 %v209
    %v628 = vunpack.c.l.b16 %v210
    %v629 = vunpack.c.h.b16 %v210
    %v630 = vunpack.c.l.b16 %v211
    %v631 = vunpack.c.h.b16 %v211
    %v632 = vunpack.c.l.b16 %v212
    %v633 = vunpack.c.h.b16 %v212
    %v634 = vunpack.c.l.b16 %v213
    %v635 = vunpack.c.h.b16 %v213
    %v636 = vunpack.c.l.b16 %v214
    %v637 = vunpack.c.h.b16 %v214
    %v638 = vunpack.c.l.b16 %v215
    %v639 = vunpack.c.h.b16 %v215
    %v640 = vunpack.c.l.b16 %v216
    %v641 = vunpack.c.h.b16 %v216
    %v642 = vunpack.c.l.b16 %v217
    %v643 = vunpack.c.h.b16 %v217
    %v644 = vunpack.c.l.b16 %v218
    %v645 = vunpack.c.h.b16 %v218
    %v646 = vunpack.c.l.b16 %v219
    %v647 = vunpack.c.h.b16 %v219
    %v648 = vunpack.c.l.b16 %v220
    %v649 = vunpack.c.h.b16 %v220
    %v650 = vunpack.c.l.b16 %v221
    %v651 = vunpack.c.h.b16 %v221
    %v652 = vunpack.c.l.b16 %v222
    %v653 = vunpack.c.h.b16 %v222
    %v654 = vunpack.c.l.b16 %v223
    %v655 = vunpack.c.h.b16 %v223
    %v656 = vunpack.c.l.b16 %v224
    %v657 = vunpack.c.h.b16 %v224
    %v658 = vunpack.c.l.b16 %v225
    %v659 = vunpack.c.h.b16 %v225
    %v660 = vunpack.c.l.b16 %v226
    %v661 = vunpack.c.h.b16 %v226
    %v662 = vunpack.c.l.b16 %v227
    %v663 = vunpack.c.h.b16 %v227
    %v664 = vunpack.c.l.b16 %v228
    %v665 = vunpack.c.h.b16 %v228
    %v666 = vunpack.c.l.b16 %v229
    %v667 = vunpack.c.h.b16 %v229
    %v668 = vunpack.c.l.b16 %v230
    %v669 = vunpack.c.h.b16 %v230
    %v670 = vunpack.c.l.b16 %v231
    %v671 = vunpack.c.h.b16 %v231
    %v672 = vunpack.c.l.b16 %v232
    %v673 = vunpack.c.h.b16 %v232
    %v674 = vunpack.c.l.b16 %v233
    %v675 = vunpack.c.h.b16 %v233
    %v676 = vunpack.c.l.b16 %v234
    %v677 = vunpack.c.h.b16 %v234
    %v678 = vunpack.c.l.b16 %v235
    %v679 = vunpack.c.h.b16 %v235
    %v680 = vunpack.c.l.b16 %v236
    %v681 = vunpack.c.h.b16 %v236
    %v682 = vunpack.c.l.b16 %v237
    %v683 = vunpack.c.h.b16 %v237
    %v684 = vunpack.c.l.b16 %v238
    %v685 = vunpack.c.h.b16 %v238
    %v686 = vunpack.c.l.b16 %v239
    %v687 = vunpack.c.h.b16 %v239
    %v688 = vunpack.c.l.b16 %v240
    %v689 = vunpack.c.h.b16 %v240
    %v690 = vunpack.c.l.b16 %v241
    %v691 = vunpack.c.h.b16 %v241
    %v692 = vunpack.c.l.b16 %v242
    %v693 = vunpack.c.h.b16 %v242
    %v694 = vunpack.c.l.b16 %v243
    %v695 = vunpack.c.h.b16 %v243
    %v696 = vunpack.c.l.b16 %v244
    %v697 = vunpack.c.h.b16 %v244
    %v698 = vunpack.c.l.b16 %v245
    %v699 = vunpack.c.h.b16 %v245
    %v700 = vunpack.c.l.b16 %v246
    %v701 = vunpack.c.h.b16 %v246
    %v702 = vunpack.c.l.b16 %v247
    %v703 = vunpack.c.h.b16 %v247
    %v704 = vunpack.c.l.b16 %v248
    %v705 = vunpack.c.h.b16 %v248
    %v706 = vunpack.c.l.b16 %v249
    %v707 = vunpack.c.h.b16 %v249
    %v708 = vunpack.c.l.b16 %v250
    %v709 = vunpack.c.h.b16 %v250
    %v710 = vunpack.c.l.b16 %v251
    %v711 = vunpack.c.h.b16 %v251
    %v712 = vunpack.c.l.b16 %v252
    %v713 = vunpack.c.h.b16 %v252
    %v714 = vunpack.c.l.b16 %v253
    %v715 = vunpack.c.h.b16 %v253
    %v716 = vunpack.c.l.b16 %v254
    %v717 = vunpack.c.h.b16 %v254
    %v718 = vunpack.c.l.b16 %v255
    %v719 = vunpack.c.h.b16 %v255
    %v720 = vunpack.c.l.b16 %v256
    %v721 = vunpack.c.h.b16 %v256
    %v722 = vunpack.c.l.b16 %v257
    %v723 = vunpack.c.h.b16 %v257
    %v724 = vunpack.c.l.b16 %v258
    %v725 = vunpack.c.h.b16 %v258
    %v726 = vunpack.c.l.b16 %v259
    %v727 = vunpack.c.h.b16 %v259
    %v728 = vunpack.c.l.b16 %v260
    %v729 = vunpack.c.h.b16 %v260
    %v730 = vunpack.c.l.b16 %v261
    %v731 = vunpack.c.h.b16 %v261
    %v732 = vunpack.c.l.b16 %v262
    %v733 = vunpack.c.h.b16 %v262
    %v734 = vunpack.c.l.b16 %v263
    %v735 = vunpack.c.h.b16 %v263
    %v736 = vunpack.c.l.b16 %v264
    %v737 = vunpack.c.h.b16 %v264
    %v738 = vunpack.c.l.b16 %v265
    %v739 = vunpack.c.h.b16 %v265
    %v740 = vunpack.c.l.b16 %v266
    %v741 = vunpack.c.h.b16 %v266
    %v742 = vunpack.c.l.b16 %v267
    %v743 = vunpack.c.h.b16 %v267
    %v744 = vunpack.c.l.b16 %v268
    %v745 = vunpack.c.h.b16 %v268
    %v746 = vunpack.c.l.b16 %v269
    %v747 = vunpack.c.h.b16 %v269
    %v748 = vunpack.c.l.b16 %v270
    %v749 = vunpack.c.h.b16 %v270
    %v750 = vunpack.c.l.b16 %v271
    %v751 = vunpack.c.h.b16 %v271
    %v752 = vunpack.c.l.b16 %v272
    %v753 = vunpack.c.h.b16 %v272
    %v754 = vunpack.c.l.b16 %v273
    %v755 = vunpack.c.h.b16 %v273
    %v756 = vunpack.c.l.b16 %v274
    %v757 = vunpack.c.h.b16 %v274
    %v758 = vunpack.c.l.b16 %v275
    %v759 = vunpack.c.h.b16 %v275
    %v760 = vunpack.c.l.b16 %v276
    %v761 = vunpack.c.h.b16 %v276
    %v762 = vunpack.c.l.b16 %v277
    %v763 = vunpack.c.h.b16 %v277
    %v764 = vunpack.c.l.b16 %v278
    %v765 = vunpack.c.h.b16 %v278
    %v766 = vunpack.c.l.b16 %v279
    %v767 = vunpack.c.h.b16 %v279
    %v768 = vunpack.c.l.b16 %v280
    %v769 = vunpack.c.h.b16 %v280
    %v770 = vunpack.c.l.b16 %v281
    %v771 = vunpack.c.h.b16 %v281
    %v772 = vunpack.c.l.b16 %v282
    %v773 = vunpack.c.h.b16 %v282
    %v774 = vunpack.c.l.b16 %v283
    %v775 = vunpack.c.h.b16 %v283
    %v776 = vunpack.c.l.b16 %v284
    %v777 = vunpack.c.h.b16 %v284
    %v778 = vunpack.c.l.b16 %v285
    %v779 = vunpack.c.h.b16 %v285
    %v780 = vunpack.c.l.b16 %v286
    %v781 = vunpack.c.h.b16 %v286
    %v782 = vunpack.c.l.b16 %v287
    %v783 = vunpack.c.h.b16 %v287
    %v784 = vunpack.c.l.b16 %v288
    %v785 = vunpack.c.h.b16 %v288
    %v786 = vunpack.c.l.b16 %v289
    %v787 = vunpack.c.h.b16 %v289
    %v788 = vunpack.c.l.b16 %v290
    %v789 = vunpack.c.h.b16 %v290
    %v790 = vunpack.c.l.b16 %v291
    %v791 = vunpack.c.h.b16 %v291
    %v792 = vunpack.c.l.b16 %v292
    %v793 = vunpack.c.h.b16 %v292
    %v794 = vunpack.c.l.b16 %v293
    %v795 = vunpack.c.h.b16 %v293
    %v796 = vunpack.c.l.b16 %v294
    %v797 = vunpack.c.h.b16 %v294
    %v798 = vunpack.c.l.b16 %v295
    %v799 = vunpack.c.h.b16 %v295
    %v800 = vunpack.c.l.b16 %v296
    %v801 = vunpack.c.h.b16 %v296
    %v802 = vunpack.c.l.b16 %v297
    %v803 = vunpack.c.h.b16 %v297
    %v804 = vunpack.c.l.b16 %v298
    %v805 = vunpack.c.h.b16 %v298
    %v806 = vunpack.c.l.b16 %v299
    %v807 = vunpack.c.h.b16 %v299
    %v808 = vunpack.c.l.b16 %v300
    %v809 = vunpack.c.h.b16 %v300
    %v810 = vunpack.c.l.b16 %v301
    %v811 = vunpack.c.h.b16 %v301
    %v812 = vunpack.c.l.b16 %v302
    %v813 = vunpack.c.h.b16 %v302
    %v814 = vunpack.c.l.b16 %v303
    %v815 = vunpack.c.h.b16 %v303
    %v816 = vunpack.c.l.b16 %v304
    %v817 = vunpack.c.h.b16 %v304
    %v818 = vunpack.c.l.b16 %v305
    %v819 = vunpack.c.h.b16 %v305
    %v820 = vunpack.c.l.b16 %v306
    %v821 = vunpack.c.h.b16 %v306
    %v822 = vunpack.c.l.b16 %v307
    %v823 = vunpack.c.h.b16 %v307
    %v824 = vunpack.c.l.b16 %v308
    %v825 = vunpack.c.h.b16 %v308
    %v826 = vunpack.c.l.b16 %v309
    %v827 = vunpack.c.h.b16 %v309
    %v828 = vunpack.c.l.b16 %v310
    %v829 = vunpack.c.h.b16 %v310
    %v830 = vunpack.c.l.b16 %v311
    %v831 = vunpack.c.h.b16 %v311
    %v832 = vunpack.c.l.b16 %v312
    %v833 = vunpack.c.h.b16 %v312
    %v834 = vunpack.c.l.b16 %v313
    %v835 = vunpack.c.h.b16 %v313
    %v836 = vunpack.c.l.b16 %v314
    %v837 = vunpack.c.h.b16 %v314
    %v838 = vunpack.c.l.b16 %v315
    %v839 = vunpack.c.h.b16 %v315
    %v840 = vunpack.c.l.b16 %v316
    %v841 = vunpack.c.h.b16 %v316
    %v842 = vunpack.c.l.b16 %v317
    %v843 = vunpack.c.h.b16 %v317
    %v844 = vunpack.c.l.b16 %v318
    %v845 = vunpack.c.h.b16 %v318
    %v846 = vunpack.c.l.b16 %v319
    %v847 = vunpack.c.h.b16 %v319
    %v848 = vunpack.c.l.b16 %v320
    %v849 = vunpack.c.h.b16 %v320
    %v850 = vunpack.c.l.b16 %v321
    %v851 = vunpack.c.h.b16 %v321
    %v852 = vunpack.c.l.b16 %v322
    %v853 = vunpack.c.h.b16 %v322
    %v854 = vunpack.c.l.b16 %v323
    %v855 = vunpack.c.h.b16 %v323
    %v856 = vunpack.c.l.b16 %v324
    %v857 = vunpack.c.h.b16 %v324
    %v858 = vunpack.c.l.b16 %v325
    %v859 = vunpack.c.h.b16 %v325
    %v860 = vunpack.c.l.b16 %v326
    %v861 = vunpack.c.h.b16 %v326
    %v862 = vunpack.c.l.b16 %v327
    %v863 = vunpack.c.h.b16 %v327
    %v864 = vunpack.c.l.b16 %v328
    %v865 = vunpack.c.h.b16 %v328
    %v866 = vunpack.c.l.b16 %v329
    %v867 = vunpack.c.h.b16 %v329
    %v868 = vunpack.c.l.b16 %v330
    %v869 = vunpack.c.h.b16 %v330
    %v870 = vunpack.c.l.b16 %v331
    %v871 = vunpack.c.h.b16 %v331
    %v872 = vunpack.c.l.b16 %v332
    %v873 = vunpack.c.h.b16 %v332
    %v874 = vunpack.c.l.b16 %v333
    %v875 = vunpack.c.h.b16 %v333
    %v876 = vunpack.c.l.b16 %v334
    %v877 = vunpack.c.h.b16 %v334
    %v878 = vunpack.c.l.b16 %v335
    %v879 = vunpack.c.h.b16 %v335
    %v880 = vunpack.c.l.b16 %v336
    %v881 = vunpack.c.h.b16 %v336
    %v882 = vunpack.c.l.b16 %v337
    %v883 = vunpack.c.h.b16 %v337
    %v884 = vunpack.c.l.b16 %v338
    %v885 = vunpack.c.h.b16 %v338
    %v886 = vunpack.c.l.b16 %v339
    %v887 = vunpack.c.h.b16 %v339
    %v888 = vunpack.c.l.b16 %v340
    %v889 = vunpack.c.h.b16 %v340
    %v890 = vunpack.c.l.b16 %v341
    %v891 = vunpack.c.h.b16 %v341
    %v892 = vunpack.c.l.b16 %v342
    %v893 = vunpack.c.h.b16 %v342
    %v894 = vunpack.c.l.b16 %v343
    %v895 = vunpack.c.h.b16 %v343
    %v896 = vunpack.c.l.b16 %v344
    %v897 = vunpack.c.h.b16 %v344
    %v898 = vunpack.c.l.b16 %v345
    %v899 = vunpack.c.h.b16 %v345
    %v900 = vunpack.c.l.b16 %v346
    %v901 = vunpack.c.h.b16 %v346
    %v902 = vunpack.c.l.b16 %v347
    %v903 = vunpack.c.h.b16 %v347
    %v904 = vunpack.c.l.b16 %v348
    %v905 = vunpack.c.h.b16 %v348
    %v906 = vunpack.c.l.b16 %v349
    %v907 = vunpack.c.h.b16 %v349
    %v908 = vunpack.c.l.b16 %v350
    %v909 = vunpack.c.h.b16 %v350
    %v910 = vunpack.c.l.b16 %v351
    %v911 = vunpack.c.h.b16 %v351
    %v912 = vunpack.c.l.b16 %v352
    %v913 = vunpack.c.h.b16 %v352
    %v914 = vunpack.c.l.b16 %v353
    %v915 = vunpack.c.h.b16 %v353
    %v916 = vunpack.c.l.b16 %v354
    %v917 = vunpack.c.h.b16 %v354
    %v918 = vunpack.c.l.b16 %v355
    %v919 = vunpack.c.h.b16 %v355
    %v920 = vunpack.c.l.b16 %v356
    %v921 = vunpack.c.h.b16 %v356
    %v922 = vunpack.c.l.b16 %v357
    %v923 = vunpack.c.h.b16 %v357
    %v924 = vunpack.c.l.b16 %v358
    %v925 = vunpack.c.h.b16 %v358
    %v926 = vunpack.c.l.b16 %v359
    %v927 = vunpack.c.h.b16 %v359
    %v928 = vunpack.c.l.b16 %v360
    %v929 = vunpack.c.h.b16 %v360
    %v930 = vunpack.c.l.b16 %v361
    %v931 = vunpack.c.h.b16 %v361
    %v932 = vunpack.c.l.b16 %v362
    %v933 = vunpack.c.h.b16 %v362
    %v934 = vunpack.c.l.b16 %v363
    %v935 = vunpack.c.h.b16 %v363
    %v936 = vunpack.c.l.b16 %v364
    %v937 = vunpack.c.h.b16 %v364
    %v938 = vunpack.c.l.b16 %v365
    %v939 = vunpack.c.h.b16 %v365
    %v940 = vunpack.c.l.b16 %v366
    %v941 = vunpack.c.h.b16 %v366
    %v942 = vunpack.c.l.b16 %v367
    %v943 = vunpack.c.h.b16 %v367
    %v944 = vunpack.c.l.b16 %v368
    %v945 = vunpack.c.h.b16 %v368
    %v946 = vunpack.c.l.b16 %v369
    %v947 = vunpack.c.h.b16 %v369
    %v948 = vunpack.c.l.b16 %v370
    %v949 = vunpack.c.h.b16 %v370
    %v950 = vunpack.c.l.b16 %v371
    %v951 = vunpack.c.h.b16 %v371
    %v952 = vpack.c.b16 %v608, %v600
    %v953 = vpack.c.b16 %v609, %v601
    %v954 = vpack.c.b16 %v610, %v602
    %v955 = vpack.c.b16 %v611, %v603
    %v956 = vpack.c.b16 %v612, %v604
    %v957 = vpack.c.b16 %v613, %v605
    %v958 = vpack.c.b16 %v614, %v606
    %v959 = vpack.c.b16 %v615, %v607
    %v960 = vpack.c.b16 %v624, %v616
    %v961 = vpack.c.b16 %v625, %v617
    %v962 = vpack.c.b16 %v626, %v618
    %v963 = vpack.c.b16 %v627, %v619
    %v964 = vpack.c.b16 %v628, %v620
    %v965 = vpack.c.b16 %v629, %v621
    %v966 = vpack.c.b16 %v630, %v622
    %v967 = vpack.c.b16 %v631, %v623
    %v968 = vpack.c.b16 %v640, %v632
    %v969 = vpack.c.b16 %v641, %v633
    %v970 = vpack.c.b16 %v642, %v634
    %v971 = vpack.c.b16 %v643, %v635
    %v972 = vpack.c.b16 %v644, %v636
    %v973 = vpack.c.b16 %v645, %v637
    %v974 = vpack.c.b16 %v646, %v638
    %v975 = vpack.c.b16 %v647, %v639
    %v976 = vpack.c.b16 %v656, %v648
    %v977 = vpack.c.b16 %v657, %v649
    %v978 = vpack.c.b16 %v658, %v650
    %v979 = vpack.c.b16 %v659, %v651
    %v980 = vpack.c.b16 %v660, %v652
    %v981 = vpack.c.b16 %v661, %v653
    %v982 = vpack.c.b16 %v662, %v654
    %v983 = vpack.c.b16 %v663, %v655
    %v984 = vpack.c.b16 %v672, %v664
    %v985 = vpack.c.b16 %v673, %v665
    %v986 = vpack.c.b16 %v674, %v666
    %v987 = vpack.c.b16 %v675, %v667
    %v988 = vpack.c.b16 %v676, %v668
    %v989 = vpack.c.b16 %v677, %v669
    %v990 = vpack.c.b16 %v678, %v670
    %v991 = vpack.c.b16 %v679, %v671
    %v992 = vpack.c.b16 %v688, %v680
    %v993 = vpack.c.b16 %v689, %v681
    %v994 = vpack.c.b16 %v690, %v682
    %v995 = vpack.c.b16 %v691, %v683
    %v996 = vpack.c.b16 %v692, %v684
    %v997 = vpack.c.b16 %v693, %v685
    %v998 = vpack.c.b16 %v694, %v686
    %v999 = vpack.c.b16 %v695, %v687
    %v1000 = vpack.c.b16 %v704, %v696
    %v1001 = vpack.c.b16 %v705, %v697
    %v1002 = vpack.c.b16 %v706, %v698
    %v1003 = vpack.c.b16 %v707, %v699
    %v1004 = vpack.c.b16 %v708, %v700
    %v1005 = vpack.c.b16 %v709, %v701
    %v1006 = vpack.c.b16 %v710, %v702
    %v1007 = vpack.c.b16 %v711, %v703
    %v1008 = vpack.c.b16 %v720, %v712
    %v1009 = vpack.c.b16 %v721, %v713
    %v1010 = vpack.c.b16 %v722, %v714
    %v1011 = vpack.c.b16 %v723, %v715
    %v1012 = vpack.c.b16 %v724, %v716
    %v1013 = vpack.c.b16 %v725, %v717
    %v1014 = vpack.c.b16 %v726, %v718
    %v1015 = vpack.c.b16 %v727, %v719
    %v1016 = vpack.c.b16 %v736, %v728
    %v1017 = vpack.c.b16 %v737, %v729
    %v1018 = vpack.c.b16 %v738, %v730
    %v1019 = vpack.c.b16 %v739, %v731
    %v1020 = vpack.c.b16 %v740, %v732
    %v1021 = vpack.c.b16 %v741, %v733
    %v1022 = vpack.c.b16 %v742, %v734
    %v1023 = vpack.c.b16 %v743, %v735
    %v1024 = vpack.c.b16 %v752, %v744
    %v1025 = vpack.c.b16 %v753, %v745
    %v1026 = vpack.c.b16 %v754, %v746
    %v1027 = vpack.c.b16 %v755, %v747
    %v1028 = vpack.c.b16 %v756, %v748
    %v1029 = vpack.c.b16 %v757, %v749
    %v1030 = vpack.c.b16 %v758, %v750
    %v1031 = vpack.c.b16 %v759, %v751
    %v1032 = vpack.c.b16 %v768, %v760
    %v1033 = vpack.c.b16 %v769, %v761
    %v1034 = vpack.c.b16 %v770, %v762
    %v1035 = vpack.c.b16 %v771, %v763
    %v1036 = vpack.c.b16 %v772, %v764
    %v1037 = vpack.c.b16 %v773, %v765
    %v1038 = vpack.c.b16 %v774, %v766
    %v1039 = vpack.c.b16 %v775, %v767
    %v1040 = vpack.c.b16 %v784, %v776
    %v1041 = vpack.c.b16 %v785, %v777
    %v1042 = vpack.c.b16 %v786, %v778
    %v1043 = vpack.c.b16 %v787, %v779
    %v1044 = vpack.c.b16 %v788, %v780
    %v1045 = vpack.c.b16 %v789, %v781
    %v1046 = vpack.c.b16 %v790, %v782
    %v1047 = vpack.c.b16 %v791, %v783
    %v1048 = vpack.c.b16 %v800, %v792
    %v1049 = vpack.c.b16 %v801, %v793
    %v1050 = vpack.c.b16 %v802, %v794
    %v1051 = vpack.c.b16 %v803, %v795
    %v1052 = vpack.c.b16 %v804, %v796
    %v1053 = vpack.c.b16 %v805, %v797
    %v1054 = vpack.c.b16 %v806, %v798
    %v1055 = vpack.c.b16 %v807, %v799
    %v1056 = vpack.c.b16 %v816, %v808
    %v1057 = vpack.c.b16 %v817, %v809
    %v1058 = vpack.c.b16 %v818, %v810
    %v1059 = vpack.c.b16 %v819, %v811
    %v1060 = vpack.c.b16 %v820, %v812
    %v1061 = vpack.c.b16 %v821, %v813
    %v1062 = vpack.c.b16 %v822, %v814
    %v1063 = vpack.c.b16 %v823, %v815
    %v1064 = vpack.c.b16 %v832, %v824
    %v1065 = vpack.c.b16 %v833, %v825
    %v1066 = vpack.c.b16 %v834, %v826
    %v1067 = vpack.c.b16 %v835, %v827
    %v1068 = vpack.c.b16 %v836, %v828
    %v1069 = vpack.c.b16 %v837, %v829
    %v1070 = vpack.c.b16 %v838, %v830
    %v1071 = vpack.c.b16 %v839, %v831
    %v1072 = vpack.c.b16 %v848, %v840
    %v1073 = vpack.c.b16 %v849, %v841
    %v1074 = vpack.c.b16 %v850, %v842
    %v1075 = vpack.c.b16 %v851, %v843
    %v1076 = vpack.c.b16 %v852, %v844
    %v1077 = vpack.c.b16 %v853, %v845
    %v1078 = vpack.c.b16 %v854, %v846
    %v1079 = vpack.c.b16 %v855, %v847
    %v1080 = vpack.c.b16 %v864, %v856
    %v1081 = vpack.c.b16 %v865, %v857
    %v1082 = vpack.c.b16 %v866, %v858
    %v1083 = vpack.c.b16 %v867, %v859
    %v1084 = vpack.c.b16 %v868, %v860
    %v1085 = vpack.c.b16 %v869, %v861
    %v1086 = vpack.c.b16 %v870, %v862
    %v1087 = vpack.c.b16 %v871, %v863
    %v1088 = vpack.c.b16 %v880, %v872
    %v1089 = vpack.c.b16 %v881, %v873
    %v1090 = vpack.c.b16 %v882, %v874
    %v1091 = vpack.c.b16 %v883, %v875
    %v1092 = vpack.c.b16 %v884, %v876
    %v1093 = vpack.c.b16 %v885, %v877
    %v1094 = vpack.c.b16 %v886, %v878
    %v1095 = vpack.c.b16 %v887, %v879
    %v1096 = vpack.c.b16 %v896, %v888
    %v1097 = vpack.c.b16 %v897, %v889
    %v1098 = vpack.c.b16 %v898, %v890
    %v1099 = vpack.c.b16 %v899, %v891
    %v1100 = vpack.c.b16 %v900, %v892
    %v1101 = vpack.c.b16 %v901, %v893
    %v1102 = vpack.c.b16 %v902, %v894
    %v1103 = vpack.c.b16 %v903, %v895
    %v1104 = vpack.c.b16 %v912, %v904
    %v1105 = vpack.c.b16 %v913, %v905
    %v1106 = vpack.c.b16 %v914, %v906
    %v1107 = vpack.c.b16 %v915, %v907
    %v1108 = vpack.c.b16 %v916, %v908
    %v1109 = vpack.c.b16 %v917, %v909
    %v1110 = vpack.c.b16 %v918, %v910
    %v1111 = vpack.c.b16 %v919, %v911
    %v1112 = vpack.c.b16 %v928, %v920
    %v1113 = vpack.c.b16 %v929, %v921
    %v1114 = vpack.c.b16 %v930, %v922
    %v1115 = vpack.c.b16 %v931, %v923
    %v1116 = vpack.c.b16 %v932, %v924
    %v1117 = vpack.c.b16 %v933, %v925
    %v1118 = vpack.c.b16 %v934, %v926
    %v1119 = vpack.c.b16 %v935, %v927
    %v1120 = vpack.c.b16 %v944, %v936
    %v1121 = vpack.c.b16 %v945, %v937
    %v1122 = vpack.c.b16 %v946, %v938
    %v1123 = vpack.c.b16 %v947, %v939
    %v1124 = vpack.c.b16 %v948, %v940
    %v1125 = vpack.c.b16 %v949, %v941
    %v1126 = vpack.c.b16 %v950, %v942
    %v1127 = vpack.c.b16 %v951, %v943
    %vm1304 = vcmask 785408
    %v1306 = vsel %vm1304, %v421, 0
    %1308 = vmatprep.subr.bf16.mxu0 %v953
    %1309 = vmatpush1.bf16.msra.mxu0 %v952
    %1310 = vmatprep.subr.bf16.mxu0 %v961
    %1311 = vmatpush1.bf16.msra.mxu0 %v960
    %1312 = vmatprep.subr.bf16.mxu0 %v969
    %1313 = vmatpush1.bf16.msra.mxu0 %v968
    %1314 = vmatprep.subr.bf16.mxu0 %v977
    %1315 = vmatpush1.bf16.msra.mxu0 %v976
    %1316 = vmatprep.subr.bf16.mxu0 %v985
    %1317 = vmatpush1.bf16.msra.mxu0 %v984
    %1318 = vmatprep.subr.bf16.mxu0 %v993
    %1319 = vmatpush1.bf16.msra.mxu0 %v992
    %1320 = vmatprep.subr.bf16.mxu0 %v1001
    %1321 = vmatpush1.bf16.msra.mxu0 %v1000
    %1322 = vmatprep.subr.bf16.mxu0 %v1009
    %1323 = vmatpush1.bf16.msra.mxu0 %v1008
    %1324 = vmatprep.subr.bf16.mxu0 %v1017
    %1325 = vmatpush1.bf16.msra.mxu0 %v1016
    %1326 = vmatprep.subr.bf16.mxu0 %v1025
    %1327 = vmatpush1.bf16.msra.mxu0 %v1024
    %1328 = vmatprep.subr.bf16.mxu0 %v1033
    %1329 = vmatpush1.bf16.msra.mxu0 %v1032
    %1330 = vmatprep.subr.bf16.mxu0 %v1041
    %1331 = vmatpush1.bf16.msra.mxu0 %v1040
    %1332 = vmatprep.subr.bf16.mxu0 %v1049
    %1333 = vmatpush1.bf16.msra.mxu0 %v1048
    %1334 = vmatprep.subr.bf16.mxu0 %v1057
    %1335 = vmatpush1.bf16.msra.mxu0 %v1056
    %1336 = vmatprep.subr.bf16.mxu0 %v1065
    %1337 = vmatpush1.bf16.msra.mxu0 %v1064
    %1338 = vmatprep.subr.bf16.mxu0 %v1073
    %1339 = vmatpush1.bf16.msra.mxu0 %v1072
    %1340 = vmatprep.mubr.bf16.mxu0 %v420
    %1341 = vmatmul.mubr.bf16.gmra.mrb[0].mxu0 %v419
    %v1342 = vpop.f32.mrb[0].mxu0
    %v1343 = vadd.f32 %v377, %v1342
    %v1344 = vpop.f32.mrb[0].mxu0
    %v1345 = vadd.f32 %v381, %v1344
    %v1346 = vpop.f32.mrb[0].mxu0
    %v1347 = vpop.f32.mrb[0].mxu0
    %1348 = vdwg.mxu0
    %1349 = vmatprep.subr.bf16.mxu0 %v1081
    %1350 = vmatpush1.bf16.msra.mxu0 %v1080
    %1351 = vmatprep.subr.bf16.mxu0 %v1089
    %1352 = vmatpush1.bf16.msra.mxu0 %v1088
    %1353 = vmatprep.subr.bf16.mxu0 %v1097
    %1354 = vmatpush1.bf16.msra.mxu0 %v1096
    %1355 = vmatprep.subr.bf16.mxu0 %v1105
    %1356 = vmatpush1.bf16.msra.mxu0 %v1104
    %1357 = vmatprep.subr.bf16.mxu0 %v1113
    %1358 = vmatpush1.bf16.msra.mxu0 %v1112
    %1359 = vmatprep.subr.bf16.mxu0 %v1121
    %1360 = vmatpush1.bf16.msra.mxu0 %v1120
    %1361 = vmatprep.subr.bf16.mxu0 0
    %1362 = vmatpush1.bf16.msra.mxu0 0
    %1363 = vmatprep.subr.bf16.mxu0 0
    %1364 = vmatpush1.bf16.msra.mxu0 0
    %1365 = vmatprep.subr.bf16.mxu0 0
    %1366 = vmatpush1.bf16.msra.mxu0 0
    %1367 = vmatprep.subr.bf16.mxu0 0
    %1368 = vmatpush1.bf16.msra.mxu0 0
    %1369 = vmatprep.subr.bf16.mxu0 0
    %1370 = vmatpush1.bf16.msra.mxu0 0
    %1371 = vmatprep.subr.bf16.mxu0 0
    %1372 = vmatpush1.bf16.msra.mxu0 0
    %1373 = vmatprep.subr.bf16.mxu0 0
    %1374 = vmatpush1.bf16.msra.mxu0 0
    %1375 = vmatprep.subr.bf16.mxu0 0
    %1376 = vmatpush1.bf16.msra.mxu0 0
    %1377 = vmatprep.subr.bf16.mxu0 0
    %1378 = vmatpush1.bf16.msra.mxu0 0
    %1379 = vmatprep.subr.bf16.mxu0 0
    %1380 = vmatpush1.bf16.msra.mxu0 0
    %1381 = vmatprep.mubr.bf16.mxu0 0
    %1382 = vmatmul.mubr.bf16.gmra.mrb[0].mxu0 %v1306
    %v1383 = vpop.f32.mrb[0].mxu0
    %v1384 = vadd.f32 %v1343, %v1383
    %v1385 = vpop.f32.mrb[0].mxu0
    %v1386 = vadd.f32 %v1345, %v1385
    %v1387 = vpop.f32.mrb[0].mxu0
    %v1388 = vpop.f32.mrb[0].mxu0
    %1389 = vdwg.mxu0
    %1390 = vmatprep.subr.bf16.mxu0 %v955
    %1391 = vmatpush1.bf16.msra.mxu0 %v954
    %1392 = vmatprep.subr.bf16.mxu0 %v963
    %1393 = vmatpush1.bf16.msra.mxu0 %v962
    %1394 = vmatprep.subr.bf16.mxu0 %v971
    %1395 = vmatpush1.bf16.msra.mxu0 %v970
    %1396 = vmatprep.subr.bf16.mxu0 %v979
    %1397 = vmatpush1.bf16.msra.mxu0 %v978
    %1398 = vmatprep.subr.bf16.mxu0 %v987
    %1399 = vmatpush1.bf16.msra.mxu0 %v986
    %1400 = vmatprep.subr.bf16.mxu0 %v995
    %1401 = vmatpush1.bf16.msra.mxu0 %v994
    %1402 = vmatprep.subr.bf16.mxu0 %v1003
    %1403 = vmatpush1.bf16.msra.mxu0 %v1002
    %1404 = vmatprep.subr.bf16.mxu0 %v1011
    %1405 = vmatpush1.bf16.msra.mxu0 %v1010
    %1406 = vmatprep.subr.bf16.mxu0 %v1019
    %1407 = vmatpush1.bf16.msra.mxu0 %v1018
    %1408 = vmatprep.subr.bf16.mxu0 %v1027
    %1409 = vmatpush1.bf16.msra.mxu0 %v1026
    %1410 = vmatprep.subr.bf16.mxu0 %v1035
    %1411 = vmatpush1.bf16.msra.mxu0 %v1034
    %1412 = vmatprep.subr.bf16.mxu0 %v1043
    %1413 = vmatpush1.bf16.msra.mxu0 %v1042
    %1414 = vmatprep.subr.bf16.mxu0 %v1051
    %1415 = vmatpush1.bf16.msra.mxu0 %v1050
    %1416 = vmatprep.subr.bf16.mxu0 %v1059
    %1417 = vmatpush1.bf16.msra.mxu0 %v1058
    %1418 = vmatprep.subr.bf16.mxu0 %v1067
    %1419 = vmatpush1.bf16.msra.mxu0 %v1066
    %1420 = vmatprep.subr.bf16.mxu0 %v1075
    %1421 = vmatpush1.bf16.msra.mxu0 %v1074
    %1422 = vmatprep.mubr.bf16.mxu0 %v420
    %1423 = vmatmul.mubr.bf16.gmra.mrb[0].mxu0 %v419
    %v1424 = vpop.f32.mrb[0].mxu0
    %v1425 = vadd.f32 %v385, %v1424
    %v1426 = vpop.f32.mrb[0].mxu0
    %v1427 = vadd.f32 %v389, %v1426
    %v1428 = vpop.f32.mrb[0].mxu0
    %v1429 = vpop.f32.mrb[0].mxu0
    %1430 = vdwg.mxu0
    %1431 = vmatprep.subr.bf16.mxu0 %v1083
    %1432 = vmatpush1.bf16.msra.mxu0 %v1082
    %1433 = vmatprep.subr.bf16.mxu0 %v1091
    %1434 = vmatpush1.bf16.msra.mxu0 %v1090
    %1435 = vmatprep.subr.bf16.mxu0 %v1099
    %1436 = vmatpush1.bf16.msra.mxu0 %v1098
    %1437 = vmatprep.subr.bf16.mxu0 %v1107
    %1438 = vmatpush1.bf16.msra.mxu0 %v1106
    %1439 = vmatprep.subr.bf16.mxu0 %v1115
    %1440 = vmatpush1.bf16.msra.mxu0 %v1114
    %1441 = vmatprep.subr.bf16.mxu0 %v1123
    %1442 = vmatpush1.bf16.msra.mxu0 %v1122
    %1443 = vmatprep.subr.bf16.mxu0 0
    %1444 = vmatpush1.bf16.msra.mxu0 0
    %1445 = vmatprep.subr.bf16.mxu0 0
    %1446 = vmatpush1.bf16.msra.mxu0 0
    %1447 = vmatprep.subr.bf16.mxu0 0
    %1448 = vmatpush1.bf16.msra.mxu0 0
    %1449 = vmatprep.subr.bf16.mxu0 0
    %1450 = vmatpush1.bf16.msra.mxu0 0
    %1451 = vmatprep.subr.bf16.mxu0 0
    %1452 = vmatpush1.bf16.msra.mxu0 0
    %1453 = vmatprep.subr.bf16.mxu0 0
    %1454 = vmatpush1.bf16.msra.mxu0 0
    %1455 = vmatprep.subr.bf16.mxu0 0
    %1456 = vmatpush1.bf16.msra.mxu0 0
    %1457 = vmatprep.subr.bf16.mxu0 0
    %1458 = vmatpush1.bf16.msra.mxu0 0
    %1459 = vmatprep.subr.bf16.mxu0 0
    %1460 = vmatpush1.bf16.msra.mxu0 0
    %1461 = vmatprep.subr.bf16.mxu0 0
    %1462 = vmatpush1.bf16.msra.mxu0 0
    %1463 = vmatprep.mubr.bf16.mxu0 0
    %1464 = vmatmul.mubr.bf16.gmra.mrb[0].mxu0 %v1306
    %v1465 = vpop.f32.mrb[0].mxu0
    %v1466 = vadd.f32 %v1425, %v1465
    %v1467 = vpop.f32.mrb[0].mxu0
    %v1468 = vadd.f32 %v1427, %v1467
    %v1469 = vpop.f32.mrb[0].mxu0
    %v1470 = vpop.f32.mrb[0].mxu0
    %1471 = vdwg.mxu0
    %1472 = vmatprep.subr.bf16.mxu0 %v957
    %1473 = vmatpush1.bf16.msra.mxu0 %v956
    %1474 = vmatprep.subr.bf16.mxu0 %v965
    %1475 = vmatpush1.bf16.msra.mxu0 %v964
    %1476 = vmatprep.subr.bf16.mxu0 %v973
    %1477 = vmatpush1.bf16.msra.mxu0 %v972
    %1478 = vmatprep.subr.bf16.mxu0 %v981
    %1479 = vmatpush1.bf16.msra.mxu0 %v980
    %1480 = vmatprep.subr.bf16.mxu0 %v989
    %1481 = vmatpush1.bf16.msra.mxu0 %v988
    %1482 = vmatprep.subr.bf16.mxu0 %v997
    %1483 = vmatpush1.bf16.msra.mxu0 %v996
    %1484 = vmatprep.subr.bf16.mxu0 %v1005
    %1485 = vmatpush1.bf16.msra.mxu0 %v1004
    %1486 = vmatprep.subr.bf16.mxu0 %v1013
    %1487 = vmatpush1.bf16.msra.mxu0 %v1012
    %1488 = vmatprep.subr.bf16.mxu0 %v1021
    %1489 = vmatpush1.bf16.msra.mxu0 %v1020
    %1490 = vmatprep.subr.bf16.mxu0 %v1029
    %1491 = vmatpush1.bf16.msra.mxu0 %v1028
    %1492 = vmatprep.subr.bf16.mxu0 %v1037
    %1493 = vmatpush1.bf16.msra.mxu0 %v1036
    %1494 = vmatprep.subr.bf16.mxu0 %v1045
    %1495 = vmatpush1.bf16.msra.mxu0 %v1044
    %1496 = vmatprep.subr.bf16.mxu0 %v1053
    %1497 = vmatpush1.bf16.msra.mxu0 %v1052
    %1498 = vmatprep.subr.bf16.mxu0 %v1061
    %1499 = vmatpush1.bf16.msra.mxu0 %v1060
    %1500 = vmatprep.subr.bf16.mxu0 %v1069
    %1501 = vmatpush1.bf16.msra.mxu0 %v1068
    %1502 = vmatprep.subr.bf16.mxu0 %v1077
    %1503 = vmatpush1.bf16.msra.mxu0 %v1076
    %1504 = vmatprep.mubr.bf16.mxu0 %v420
    %1505 = vmatmul.mubr.bf16.gmra.mrb[0].mxu0 %v419
    %v1506 = vpop.f32.mrb[0].mxu0
    %v1507 = vadd.f32 %v393, %v1506
    %v1508 = vpop.f32.mrb[0].mxu0
    %v1509 = vadd.f32 %v397, %v1508
    %v1510 = vpop.f32.mrb[0].mxu0
    %v1511 = vpop.f32.mrb[0].mxu0
    %1512 = vdwg.mxu0
    %1513 = vmatprep.subr.bf16.mxu0 %v1085
    %1514 = vmatpush1.bf16.msra.mxu0 %v1084
    %1515 = vmatprep.subr.bf16.mxu0 %v1093
    %1516 = vmatpush1.bf16.msra.mxu0 %v1092
    %1517 = vmatprep.subr.bf16.mxu0 %v1101
    %1518 = vmatpush1.bf16.msra.mxu0 %v1100
    %1519 = vmatprep.subr.bf16.mxu0 %v1109
    %1520 = vmatpush1.bf16.msra.mxu0 %v1108
    %1521 = vmatprep.subr.bf16.mxu0 %v1117
    %1522 = vmatpush1.bf16.msra.mxu0 %v1116
    %1523 = vmatprep.subr.bf16.mxu0 %v1125
    %1524 = vmatpush1.bf16.msra.mxu0 %v1124
    %1525 = vmatprep.subr.bf16.mxu0 0
    %1526 = vmatpush1.bf16.msra.mxu0 0
    %1527 = vmatprep.subr.bf16.mxu0 0
    %1528 = vmatpush1.bf16.msra.mxu0 0
    %1529 = vmatprep.subr.bf16.mxu0 0
    %1530 = vmatpush1.bf16.msra.mxu0 0
    %1531 = vmatprep.subr.bf16.mxu0 0
    %1532 = vmatpush1.bf16.msra.mxu0 0
    %1533 = vmatprep.subr.bf16.mxu0 0
    %1534 = vmatpush1.bf16.msra.mxu0 0
    %1535 = vmatprep.subr.bf16.mxu0 0
    %1536 = vmatpush1.bf16.msra.mxu0 0
    %1537 = vmatprep.subr.bf16.mxu0 0
    %1538 = vmatpush1.bf16.msra.mxu0 0
    %1539 = vmatprep.subr.bf16.mxu0 0
    %1540 = vmatpush1.bf16.msra.mxu0 0
    %1541 = vmatprep.subr.bf16.mxu0 0
    %1542 = vmatpush1.bf16.msra.mxu0 0
    %1543 = vmatprep.subr.bf16.mxu0 0
    %1544 = vmatpush1.bf16.msra.mxu0 0
    %1545 = vmatprep.mubr.bf16.mxu0 0
    %1546 = vmatmul.mubr.bf16.gmra.mrb[0].mxu0 %v1306
    %v1547 = vpop.f32.mrb[0].mxu0
    %v1548 = vadd.f32 %v1507, %v1547
    %v1549 = vpop.f32.mrb[0].mxu0
    %v1550 = vadd.f32 %v1509, %v1549
    %v1551 = vpop.f32.mrb[0].mxu0
    %v1552 = vpop.f32.mrb[0].mxu0
    %1553 = vdwg.mxu0
    %1554 = vmatprep.subr.bf16.mxu0 %v959
    %1555 = vmatpush1.bf16.msra.mxu0 %v958
    %1556 = vmatprep.subr.bf16.mxu0 %v967
    %1557 = vmatpush1.bf16.msra.mxu0 %v966
    %1558 = vmatprep.subr.bf16.mxu0 %v975
    %1559 = vmatpush1.bf16.msra.mxu0 %v974
    %1560 = vmatprep.subr.bf16.mxu0 %v983
    %1561 = vmatpush1.bf16.msra.mxu0 %v982
    %1562 = vmatprep.subr.bf16.mxu0 %v991
    %1563 = vmatpush1.bf16.msra.mxu0 %v990
    %1564 = vmatprep.subr.bf16.mxu0 %v999
    %1565 = vmatpush1.bf16.msra.mxu0 %v998
    %1566 = vmatprep.subr.bf16.mxu0 %v1007
    %1567 = vmatpush1.bf16.msra.mxu0 %v1006
    %1568 = vmatprep.subr.bf16.mxu0 %v1015
    %1569 = vmatpush1.bf16.msra.mxu0 %v1014
    %1570 = vmatprep.subr.bf16.mxu0 %v1023
    %1571 = vmatpush1.bf16.msra.mxu0 %v1022
    %1572 = vmatprep.subr.bf16.mxu0 %v1031
    %1573 = vmatpush1.bf16.msra.mxu0 %v1030
    %1574 = vmatprep.subr.bf16.mxu0 %v1039
    %1575 = vmatpush1.bf16.msra.mxu0 %v1038
    %1576 = vmatprep.subr.bf16.mxu0 %v1047
    %1577 = vmatpush1.bf16.msra.mxu0 %v1046
    %1578 = vmatprep.subr.bf16.mxu0 %v1055
    %1579 = vmatpush1.bf16.msra.mxu0 %v1054
    %1580 = vmatprep.subr.bf16.mxu0 %v1063
    %1581 = vmatpush1.bf16.msra.mxu0 %v1062
    %1582 = vmatprep.subr.bf16.mxu0 %v1071
    %1583 = vmatpush1.bf16.msra.mxu0 %v1070
    %1584 = vmatprep.subr.bf16.mxu0 %v1079
    %1585 = vmatpush1.bf16.msra.mxu0 %v1078
    %1586 = vmatprep.mubr.bf16.mxu0 %v420
    %1587 = vmatmul.mubr.bf16.gmra.mrb[0].mxu0 %v419
    %v1588 = vpop.f32.mrb[0].mxu0
    %v1589 = vadd.f32 %v401, %v1588
    %v1590 = vpop.f32.mrb[0].mxu0
    %v1591 = vadd.f32 %v405, %v1590
    %v1592 = vpop.f32.mrb[0].mxu0
    %v1593 = vpop.f32.mrb[0].mxu0
    %1594 = vdwg.mxu0
    %1595 = vmatprep.subr.bf16.mxu0 %v1087
    %1596 = vmatpush1.bf16.msra.mxu0 %v1086
    %1597 = vmatprep.subr.bf16.mxu0 %v1095
    %1598 = vmatpush1.bf16.msra.mxu0 %v1094
    %1599 = vmatprep.subr.bf16.mxu0 %v1103
    %1600 = vmatpush1.bf16.msra.mxu0 %v1102
    %1601 = vmatprep.subr.bf16.mxu0 %v1111
    %1602 = vmatpush1.bf16.msra.mxu0 %v1110
    %1603 = vmatprep.subr.bf16.mxu0 %v1119
    %1604 = vmatpush1.bf16.msra.mxu0 %v1118
    %1605 = vmatprep.subr.bf16.mxu0 %v1127
    %1606 = vmatpush1.bf16.msra.mxu0 %v1126
    %1607 = vmatprep.subr.bf16.mxu0 0
    %1608 = vmatpush1.bf16.msra.mxu0 0
    %1609 = vmatprep.subr.bf16.mxu0 0
    %1610 = vmatpush1.bf16.msra.mxu0 0
    %1611 = vmatprep.subr.bf16.mxu0 0
    %1612 = vmatpush1.bf16.msra.mxu0 0
    %1613 = vmatprep.subr.bf16.mxu0 0
    %1614 = vmatpush1.bf16.msra.mxu0 0
    %1615 = vmatprep.subr.bf16.mxu0 0
    %1616 = vmatpush1.bf16.msra.mxu0 0
    %1617 = vmatprep.subr.bf16.mxu0 0
    %1618 = vmatpush1.bf16.msra.mxu0 0
    %1619 = vmatprep.subr.bf16.mxu0 0
    %1620 = vmatpush1.bf16.msra.mxu0 0
    %1621 = vmatprep.subr.bf16.mxu0 0
    %1622 = vmatpush1.bf16.msra.mxu0 0
    %1623 = vmatprep.subr.bf16.mxu0 0
    %1624 = vmatpush1.bf16.msra.mxu0 0
    %1625 = vmatprep.subr.bf16.mxu0 0
    %1626 = vmatpush1.bf16.msra.mxu0 0
    %1627 = vmatprep.mubr.bf16.mxu0 0
    %1628 = vmatmul.mubr.bf16.gmra.mrb[0].mxu0 %v1306
    %v1629 = vpop.f32.mrb[0].mxu0
    %v1630 = vadd.f32 %v1589, %v1629
    %v1631 = vpop.f32.mrb[0].mxu0
    %v1632 = vadd.f32 %v1591, %v1631
    %v1633 = vpop.f32.mrb[0].mxu0
    %v1634 = vpop.f32.mrb[0].mxu0
    %1635 = vdwg.mxu0
    %v1636 = vmax.f32 %v1384, 0.0
    %v1637 = vmax.f32 %v1386, 0.0
    %v1638 = vmax.f32 %v1466, 0.0
    %v1639 = vmax.f32 %v1468, 0.0
    %v1640 = vmax.f32 %v1548, 0.0
    %v1641 = vmax.f32 %v1550, 0.0
    %v1642 = vmax.f32 %v1630, 0.0
    %v1643 = vmax.f32 %v1632, 0.0
    %v1644 = vpack.c.bf16 %v1636, %v1636
    %v1645 = vpack.c.bf16 %v1637, %v1637
    %v1646 = vpack.c.bf16 %v1638, %v1638
    %v1647 = vpack.c.bf16 %v1639, %v1639
    %v1648 = vpack.c.bf16 %v1640, %v1640
    %v1649 = vpack.c.bf16 %v1641, %v1641
    %v1650 = vpack.c.bf16 %v1642, %v1642
    %v1651 = vpack.c.bf16 %v1643, %v1643
    %v1652 = vld [vmem:[#allocation8] sm:$0xff]
    %v1653 = vld [vmem:[#allocation8 + $0x8] sm:$0xff]
    %v1654 = vld [vmem:[#allocation8 + $0x10] sm:$0xff]
    %v1655 = vld [vmem:[#allocation8 + $0x18] sm:$0xff]
    %v1656 = vld [vmem:[#allocation8 + $0x20] sm:$0xff]
    %v1657 = vld [vmem:[#allocation8 + $0x28] sm:$0xff]
    %v1658 = vld [vmem:[#allocation8 + $0x30] sm:$0xff]
    %v1659 = vld [vmem:[#allocation8 + $0x38] sm:$0xff]
    %v1660 = vld [vmem:[#allocation8 + $0x40] sm:$0xff]
    %v1661 = vld [vmem:[#allocation8 + $0x48] sm:$0xff]
    %v1662 = vld [vmem:[#allocation8 + $0x50] sm:$0xff]
    %v1663 = vld [vmem:[#allocation8 + $0x58] sm:$0xff]
    %v1664 = vld [vmem:[#allocation8 + $0x60] sm:$0xff]
    %v1665 = vld [vmem:[#allocation8 + $0x68] sm:$0xff]
    %v1666 = vld [vmem:[#allocation8 + $0x70] sm:$0xff]
    %v1667 = vld [vmem:[#allocation8 + $0x78] sm:$0xff]
    %v1668 = vld [vmem:[#allocation8 + $0x80] sm:$0xff]
    %v1669 = vld [vmem:[#allocation8 + $0x88] sm:$0xff]
    %v1670 = vld [vmem:[#allocation8 + $0x90] sm:$0xff]
    %v1671 = vld [vmem:[#allocation8 + $0x98] sm:$0xff]
    %v1672 = vld [vmem:[#allocation8 + $0xa0] sm:$0xff]
    %v1673 = vld [vmem:[#allocation8 + $0xa8] sm:$0xff]
    %v1674 = vld [vmem:[#allocation8 + $0xb0] sm:$0xff]
    %v1675 = vld [vmem:[#allocation8 + $0xb8] sm:$0xff]
    %v1676 = vld [vmem:[#allocation8 + $0xc0] sm:$0xff]
    %v1677 = vld [vmem:[#allocation8 + $0xc8] sm:$0xff]
    %v1678 = vld [vmem:[#allocation8 + $0xd0] sm:$0xff]
    %v1679 = vld [vmem:[#allocation8 + $0xd8] sm:$0xff]
    %v1680 = vld [vmem:[#allocation8 + $0xe0] sm:$0xff]
    %v1681 = vld [vmem:[#allocation8 + $0xe8] sm:$0xff]
    %v1682 = vld [vmem:[#allocation8 + $0xf0] sm:$0xff]
    %v1683 = vld [vmem:[#allocation8 + $0xf8] sm:$0xff]
    %v1684 = vld [vmem:[#allocation8 + $0x100] sm:$0xff]
    %v1685 = vld [vmem:[#allocation8 + $0x108] sm:$0xff]
    %v1686 = vld [vmem:[#allocation8 + $0x110] sm:$0xff]
    %v1687 = vld [vmem:[#allocation8 + $0x118] sm:$0xff]
    %v1688 = vld [vmem:[#allocation8 + $0x120] sm:$0xff]
    %v1689 = vld [vmem:[#allocation8 + $0x128] sm:$0xff]
    %v1690 = vld [vmem:[#allocation8 + $0x130] sm:$0xff]
    %v1691 = vld [vmem:[#allocation8 + $0x138] sm:$0xff]
    %v1692 = vld [vmem:[#allocation8 + $0x140] sm:$0xff]
    %v1693 = vld [vmem:[#allocation8 + $0x148] sm:$0xff]
    %v1694 = vld [vmem:[#allocation8 + $0x150] sm:$0xff]
    %v1695 = vld [vmem:[#allocation8 + $0x158] sm:$0xff]
    %v1696 = vld [vmem:[#allocation8 + $0x160] sm:$0xff]
    %v1697 = vld [vmem:[#allocation8 + $0x168] sm:$0xff]
    %v1698 = vld [vmem:[#allocation8 + $0x170] sm:$0xff]
    %v1699 = vld [vmem:[#allocation8 + $0x178] sm:$0xff]
    %v1700 = vld [vmem:[#allocation8 + $0x180] sm:$0xff]
    %v1701 = vld [vmem:[#allocation8 + $0x188] sm:$0xff]
    %v1702 = vld [vmem:[#allocation8 + $0x190] sm:$0xff]
    %v1703 = vld [vmem:[#allocation8 + $0x198] sm:$0xff]
    %v1704 = vld [vmem:[#allocation8 + $0x1a0] sm:$0xff]
    %v1705 = vld [vmem:[#allocation8 + $0x1a8] sm:$0xff]
    %v1706 = vld [vmem:[#allocation8 + $0x1b0] sm:$0xff]
    %v1707 = vld [vmem:[#allocation8 + $0x1b8] sm:$0xff]
    %v1708 = vld [vmem:[#allocation8 + $0x1c0] sm:$0xff]
    %v1709 = vld [vmem:[#allocation8 + $0x1c8] sm:$0xff]
    %v1710 = vld [vmem:[#allocation8 + $0x1d0] sm:$0xff]
    %v1711 = vld [vmem:[#allocation8 + $0x1d8] sm:$0xff]
    %v1712 = vld [vmem:[#allocation8 + $0x1e0] sm:$0xff]
    %v1713 = vld [vmem:[#allocation8 + $0x1e8] sm:$0xff]
    %v1714 = vld [vmem:[#allocation8 + $0x1f0] sm:$0xff]
    %v1715 = vld [vmem:[#allocation8 + $0x1f8] sm:$0xff]
    %v1716 = vld [vmem:[#allocation8 + $0x200] sm:$0xff]
    %v1717 = vld [vmem:[#allocation8 + $0x208] sm:$0xff]
    %v1718 = vld [vmem:[#allocation8 + $0x210] sm:$0xff]
    %v1719 = vld [vmem:[#allocation8 + $0x218] sm:$0xff]
    %v1720 = vld [vmem:[#allocation8 + $0x220] sm:$0xff]
    %v1721 = vld [vmem:[#allocation8 + $0x228] sm:$0xff]
    %v1722 = vld [vmem:[#allocation8 + $0x230] sm:$0xff]
    %v1723 = vld [vmem:[#allocation8 + $0x238] sm:$0xff]
    %v1724 = vld [vmem:[#allocation8 + $0x240] sm:$0xff]
    %v1725 = vld [vmem:[#allocation8 + $0x248] sm:$0xff]
    %v1726 = vld [vmem:[#allocation8 + $0x250] sm:$0xff]
    %v1727 = vld [vmem:[#allocation8 + $0x258] sm:$0xff]
    %v1728 = vld [vmem:[#allocation8 + $0x260] sm:$0xff]
    %v1729 = vld [vmem:[#allocation8 + $0x268] sm:$0xff]
    %v1730 = vld [vmem:[#allocation8 + $0x270] sm:$0xff]
    %v1731 = vld [vmem:[#allocation8 + $0x278] sm:$0xff]
    %v1732 = vld [vmem:[#allocation8 + $0x280] sm:$0xff]
    %v1733 = vld [vmem:[#allocation8 + $0x288] sm:$0xff]
    %v1734 = vld [vmem:[#allocation8 + $0x290] sm:$0xff]
    %v1735 = vld [vmem:[#allocation8 + $0x298] sm:$0xff]
    %v1736 = vld [vmem:[#allocation8 + $0x2a0] sm:$0xff]
    %v1737 = vld [vmem:[#allocation8 + $0x2a8] sm:$0xff]
    %v1738 = vld [vmem:[#allocation8 + $0x2b0] sm:$0xff]
    %v1739 = vld [vmem:[#allocation8 + $0x2b8] sm:$0xff]
    %v1740 = vld [vmem:[#allocation8 + $0x2c0] sm:$0xff]
    %v1741 = vld [vmem:[#allocation8 + $0x2c8] sm:$0xff]
    %v1742 = vld [vmem:[#allocation8 + $0x2d0] sm:$0xff]
    %v1743 = vld [vmem:[#allocation8 + $0x2d8] sm:$0xff]
    %v1744 = vld [vmem:[#allocation8 + $0x2e0] sm:$0xff]
    %v1745 = vld [vmem:[#allocation8 + $0x2e8] sm:$0xff]
    %v1746 = vld [vmem:[#allocation8 + $0x2f0] sm:$0xff]
    %v1747 = vld [vmem:[#allocation8 + $0x2f8] sm:$0xff]
    %v1748 = vld [vmem:[#allocation8 + $0x300] sm:$0xff]
    %v1749 = vld [vmem:[#allocation8 + $0x308] sm:$0xff]
    %v1750 = vld [vmem:[#allocation8 + $0x310] sm:$0xff]
    %v1751 = vld [vmem:[#allocation8 + $0x318] sm:$0xff]
    %v1752 = vld [vmem:[#allocation8 + $0x320] sm:$0xff]
    %v1753 = vld [vmem:[#allocation8 + $0x328] sm:$0xff]
    %v1754 = vld [vmem:[#allocation8 + $0x330] sm:$0xff]
    %v1755 = vld [vmem:[#allocation8 + $0x338] sm:$0xff]
    %v1756 = vld [vmem:[#allocation8 + $0x340] sm:$0xff]
    %v1757 = vld [vmem:[#allocation8 + $0x348] sm:$0xff]
    %v1758 = vld [vmem:[#allocation8 + $0x350] sm:$0xff]
    %v1759 = vld [vmem:[#allocation8 + $0x358] sm:$0xff]
    %v1760 = vld [vmem:[#allocation8 + $0x360] sm:$0xff]
    %v1761 = vld [vmem:[#allocation8 + $0x368] sm:$0xff]
    %v1762 = vld [vmem:[#allocation8 + $0x370] sm:$0xff]
    %v1763 = vld [vmem:[#allocation8 + $0x378] sm:$0xff]
    %v1764 = vld [vmem:[#allocation8 + $0x380] sm:$0xff]
    %v1765 = vld [vmem:[#allocation8 + $0x388] sm:$0xff]
    %v1766 = vld [vmem:[#allocation8 + $0x390] sm:$0xff]
    %v1767 = vld [vmem:[#allocation8 + $0x398] sm:$0xff]
    %v1768 = vld [vmem:[#allocation8 + $0x3a0] sm:$0xff]
    %v1769 = vld [vmem:[#allocation8 + $0x3a8] sm:$0xff]
    %v1770 = vld [vmem:[#allocation8 + $0x3b0] sm:$0xff]
    %v1771 = vld [vmem:[#allocation8 + $0x3b8] sm:$0xff]
    %v1772 = vld [vmem:[#allocation8 + $0x3c0] sm:$0xff]
    %v1773 = vld [vmem:[#allocation8 + $0x3c8] sm:$0xff]
    %v1774 = vld [vmem:[#allocation8 + $0x3d0] sm:$0xff]
    %v1775 = vld [vmem:[#allocation8 + $0x3d8] sm:$0xff]
    %v1776 = vld [vmem:[#allocation8 + $0x3e0] sm:$0xff]
    %v1777 = vld [vmem:[#allocation8 + $0x3e8] sm:$0xff]
    %v1778 = vld [vmem:[#allocation8 + $0x3f0] sm:$0xff]
    %v1779 = vld [vmem:[#allocation8 + $0x3f8] sm:$0xff]
    %v1780 = vld [vmem:[#allocation8 + $0x400] sm:$0xff]
    %v1781 = vld [vmem:[#allocation8 + $0x408] sm:$0xff]
    %v1782 = vld [vmem:[#allocation8 + $0x410] sm:$0xff]
    %v1783 = vld [vmem:[#allocation8 + $0x418] sm:$0xff]
    %v1784 = vld [vmem:[#allocation8 + $0x420] sm:$0xff]
    %v1785 = vld [vmem:[#allocation8 + $0x428] sm:$0xff]
    %v1786 = vld [vmem:[#allocation8 + $0x430] sm:$0xff]
    %v1787 = vld [vmem:[#allocation8 + $0x438] sm:$0xff]
    %v1788 = vld [vmem:[#allocation8 + $0x440] sm:$0xff]
    %v1789 = vld [vmem:[#allocation8 + $0x448] sm:$0xff]
    %v1790 = vld [vmem:[#allocation8 + $0x450] sm:$0xff]
    %v1791 = vld [vmem:[#allocation8 + $0x458] sm:$0xff]
    %v1792 = vld [vmem:[#allocation8 + $0x460] sm:$0xff]
    %v1793 = vld [vmem:[#allocation8 + $0x468] sm:$0xff]
    %v1794 = vld [vmem:[#allocation8 + $0x470] sm:$0xff]
    %v1795 = vld [vmem:[#allocation8 + $0x478] sm:$0xff]
    %v1796 = vld [vmem:[#allocation8 + $0x480] sm:$0xff]
    %v1797 = vld [vmem:[#allocation8 + $0x488] sm:$0xff]
    %v1798 = vld [vmem:[#allocation8 + $0x490] sm:$0xff]
    %v1799 = vld [vmem:[#allocation8 + $0x498] sm:$0xff]
    %v1800 = vld [vmem:[#allocation8 + $0x4a0] sm:$0xff]
    %v1801 = vld [vmem:[#allocation8 + $0x4a8] sm:$0xff]
    %v1802 = vld [vmem:[#allocation8 + $0x4b0] sm:$0xff]
    %v1803 = vld [vmem:[#allocation8 + $0x4b8] sm:$0xff]
    %v1804 = vld [vmem:[#allocation8 + $0x4c0] sm:$0xff]
    %v1805 = vld [vmem:[#allocation8 + $0x4c8] sm:$0xff]
    %v1806 = vld [vmem:[#allocation8 + $0x4d0] sm:$0xff]
    %v1807 = vld [vmem:[#allocation8 + $0x4d8] sm:$0xff]
    %v1808 = vld [vmem:[#allocation8 + $0x4e0] sm:$0xff]
    %v1809 = vld [vmem:[#allocation8 + $0x4e8] sm:$0xff]
    %v1810 = vld [vmem:[#allocation8 + $0x4f0] sm:$0xff]
    %v1811 = vld [vmem:[#allocation8 + $0x4f8] sm:$0xff]
    %v1812 = vld [vmem:[#allocation8 + $0x500] sm:$0xff]
    %v1813 = vld [vmem:[#allocation8 + $0x508] sm:$0xff]
    %v1814 = vld [vmem:[#allocation8 + $0x510] sm:$0xff]
    %v1815 = vld [vmem:[#allocation8 + $0x518] sm:$0xff]
    %v1816 = vld [vmem:[#allocation8 + $0x520] sm:$0xff]
    %v1817 = vld [vmem:[#allocation8 + $0x528] sm:$0xff]
    %v1818 = vld [vmem:[#allocation8 + $0x530] sm:$0xff]
    %v1819 = vld [vmem:[#allocation8 + $0x538] sm:$0xff]
    %v1820 = vld [vmem:[#allocation8 + $0x540] sm:$0xff]
    %v1821 = vld [vmem:[#allocation8 + $0x548] sm:$0xff]
    %v1822 = vld [vmem:[#allocation8 + $0x550] sm:$0xff]
    %v1823 = vld [vmem:[#allocation8 + $0x558] sm:$0xff]
    %v1824 = vld [vmem:[#allocation8 + $0x560] sm:$0xff]
    %v1825 = vld [vmem:[#allocation8 + $0x568] sm:$0xff]
    %v1826 = vld [vmem:[#allocation8 + $0x570] sm:$0xff]
    %v1827 = vld [vmem:[#allocation8 + $0x578] sm:$0xff]
    %v1828 = vld [vmem:[#allocation8 + $0x580] sm:$0xff]
    %v1829 = vld [vmem:[#allocation8 + $0x588] sm:$0xff]
    %v1830 = vld [vmem:[#allocation8 + $0x590] sm:$0xff]
    %v1831 = vld [vmem:[#allocation8 + $0x598] sm:$0xff]
    %v1832 = vld [vmem:[#allocation8 + $0x5a0] sm:$0xff]
    %v1833 = vld [vmem:[#allocation8 + $0x5a8] sm:$0xff]
    %v1834 = vld [vmem:[#allocation8 + $0x5b0] sm:$0xff]
    %v1835 = vld [vmem:[#allocation8 + $0x5b8] sm:$0xff]
    %v1836 = vld [vmem:[#allocation8 + $0x5c0] sm:$0xff]
    %v1837 = vld [vmem:[#allocation8 + $0x5c8] sm:$0xff]
    %v1838 = vld [vmem:[#allocation8 + $0x5d0] sm:$0xff]
    %v1839 = vld [vmem:[#allocation8 + $0x5d8] sm:$0xff]
    %v1840 = vld [vmem:[#allocation8 + $0x5e0] sm:$0xff]
    %v1841 = vld [vmem:[#allocation8 + $0x5e8] sm:$0xff]
    %v1842 = vld [vmem:[#allocation8 + $0x5f0] sm:$0xff]
    %v1843 = vld [vmem:[#allocation8 + $0x5f8] sm:$0xff]
    %v1844 = vld [vmem:[#allocation8 + $0x600] sm:$0xff]
    %v1845 = vld [vmem:[#allocation8 + $0x608] sm:$0xff]
    %v1846 = vld [vmem:[#allocation8 + $0x610] sm:$0xff]
    %v1847 = vld [vmem:[#allocation8 + $0x618] sm:$0xff]
    %v1848 = vld [vmem:[#allocation8 + $0x620] sm:$0xff]
    %v1849 = vld [vmem:[#allocation8 + $0x628] sm:$0xff]
    %v1850 = vld [vmem:[#allocation8 + $0x630] sm:$0xff]
    %v1851 = vld [vmem:[#allocation8 + $0x638] sm:$0xff]
    %v1852 = vld [vmem:[#allocation8 + $0x640] sm:$0xff]
    %v1853 = vld [vmem:[#allocation8 + $0x648] sm:$0xff]
    %v1854 = vld [vmem:[#allocation8 + $0x650] sm:$0xff]
    %v1855 = vld [vmem:[#allocation8 + $0x658] sm:$0xff]
    %v1856 = vld [vmem:[#allocation8 + $0x660] sm:$0xff]
    %v1857 = vld [vmem:[#allocation8 + $0x668] sm:$0xff]
    %v1858 = vld [vmem:[#allocation8 + $0x670] sm:$0xff]
    %v1859 = vld [vmem:[#allocation8 + $0x678] sm:$0xff]
    %v1860 = vld [vmem:[#allocation8 + $0x680] sm:$0xff]
    %v1861 = vld [vmem:[#allocation8 + $0x688] sm:$0xff]
    %v1862 = vld [vmem:[#allocation8 + $0x690] sm:$0xff]
    %v1863 = vld [vmem:[#allocation8 + $0x698] sm:$0xff]
    %v1864 = vld [vmem:[#allocation8 + $0x6a0] sm:$0xff]
    %v1865 = vld [vmem:[#allocation8 + $0x6a8] sm:$0xff]
    %v1866 = vld [vmem:[#allocation8 + $0x6b0] sm:$0xff]
    %v1867 = vld [vmem:[#allocation8 + $0x6b8] sm:$0xff]
    %v1868 = vld [vmem:[#allocation8 + $0x6c0] sm:$0xff]
    %v1869 = vld [vmem:[#allocation8 + $0x6c8] sm:$0xff]
    %v1870 = vld [vmem:[#allocation8 + $0x6d0] sm:$0xff]
    %v1871 = vld [vmem:[#allocation8 + $0x6d8] sm:$0xff]
    %v1872 = vld [vmem:[#allocation8 + $0x6e0] sm:$0xff]
    %v1873 = vld [vmem:[#allocation8 + $0x6e8] sm:$0xff]
    %v1874 = vld [vmem:[#allocation8 + $0x6f0] sm:$0xff]
    %v1875 = vld [vmem:[#allocation8 + $0x6f8] sm:$0xff]
    %v1876 = vld [vmem:[#allocation8 + $0x700] sm:$0xff]
    %v1877 = vld [vmem:[#allocation8 + $0x708] sm:$0xff]
    %v1878 = vld [vmem:[#allocation8 + $0x710] sm:$0xff]
    %v1879 = vld [vmem:[#allocation8 + $0x718] sm:$0xff]
    %v1880 = vld [vmem:[#allocation8 + $0x720] sm:$0xff]
    %v1881 = vld [vmem:[#allocation8 + $0x728] sm:$0xff]
    %v1882 = vld [vmem:[#allocation8 + $0x730] sm:$0xff]
    %v1883 = vld [vmem:[#allocation8 + $0x738] sm:$0xff]
    %v1884 = vld [vmem:[#allocation8 + $0x740] sm:$0xff]
    %v1885 = vld [vmem:[#allocation8 + $0x748] sm:$0xff]
    %v1886 = vld [vmem:[#allocation8 + $0x750] sm:$0xff]
    %v1887 = vld [vmem:[#allocation8 + $0x758] sm:$0xff]
    %v1888 = vld [vmem:[#allocation8 + $0x760] sm:$0xff]
    %v1889 = vld [vmem:[#allocation8 + $0x768] sm:$0xff]
    %v1890 = vld [vmem:[#allocation8 + $0x770] sm:$0xff]
    %v1891 = vld [vmem:[#allocation8 + $0x778] sm:$0xff]
    %v1892 = vld [vmem:[#allocation8 + $0x780] sm:$0xff]
    %v1893 = vld [vmem:[#allocation8 + $0x788] sm:$0xff]
    %v1894 = vld [vmem:[#allocation8 + $0x790] sm:$0xff]
    %v1895 = vld [vmem:[#allocation8 + $0x798] sm:$0xff]
    %v1896 = vld [vmem:[#allocation8 + $0x7a0] sm:$0xff]
    %v1897 = vld [vmem:[#allocation8 + $0x7a8] sm:$0xff]
    %v1898 = vld [vmem:[#allocation8 + $0x7b0] sm:$0xff]
    %v1899 = vld [vmem:[#allocation8 + $0x7b8] sm:$0xff]
    %v1900 = vld [vmem:[#allocation8 + $0x7c0] sm:$0xff]
    %v1901 = vld [vmem:[#allocation8 + $0x7c8] sm:$0xff]
    %v1902 = vld [vmem:[#allocation8 + $0x7d0] sm:$0xff]
    %v1903 = vld [vmem:[#allocation8 + $0x7d8] sm:$0xff]
    %v1904 = vld [vmem:[#allocation8 + $0x7e0] sm:$0xff]
    %v1905 = vld [vmem:[#allocation8 + $0x7e8] sm:$0xff]
    %v1906 = vld [vmem:[#allocation8 + $0x7f0] sm:$0xff]
    %v1907 = vld [vmem:[#allocation8 + $0x7f8] sm:$0xff]
    %v1908 = vld [vmem:[#allocation8 + $0x800] sm:$0xff]
    %v1909 = vld [vmem:[#allocation8 + $0x808] sm:$0xff]
    %v1910 = vld [vmem:[#allocation8 + $0x810] sm:$0xff]
    %v1911 = vld [vmem:[#allocation8 + $0x818] sm:$0xff]
    %v1912 = vld [vmem:[#allocation8 + $0x820] sm:$0xff]
    %v1913 = vld [vmem:[#allocation8 + $0x828] sm:$0xff]
    %v1914 = vld [vmem:[#allocation8 + $0x830] sm:$0xff]
    %v1915 = vld [vmem:[#allocation8 + $0x838] sm:$0xff]
    %v1916 = vld [vmem:[#allocation8 + $0x840] sm:$0xff]
    %v1917 = vld [vmem:[#allocation8 + $0x848] sm:$0xff]
    %v1918 = vld [vmem:[#allocation8 + $0x850] sm:$0xff]
    %v1919 = vld [vmem:[#allocation8 + $0x858] sm:$0xff]
    %v1920 = vld [vmem:[#allocation8 + $0x860] sm:$0xff]
    %v1921 = vld [vmem:[#allocation8 + $0x868] sm:$0xff]
    %v1922 = vld [vmem:[#allocation8 + $0x870] sm:$0xff]
    %v1923 = vld [vmem:[#allocation8 + $0x878] sm:$0xff]
    %v1924 = vld [vmem:[#allocation8 + $0x880] sm:$0xff]
    %v1925 = vld [vmem:[#allocation8 + $0x888] sm:$0xff]
    %v1926 = vld [vmem:[#allocation8 + $0x890] sm:$0xff]
    %v1927 = vld [vmem:[#allocation8 + $0x898] sm:$0xff]
    %v1928 = vld [vmem:[#allocation8 + $0x8a0] sm:$0xff]
    %v1929 = vld [vmem:[#allocation8 + $0x8a8] sm:$0xff]
    %v1930 = vld [vmem:[#allocation8 + $0x8b0] sm:$0xff]
    %v1931 = vld [vmem:[#allocation8 + $0x8b8] sm:$0xff]
    %v1932 = vld [vmem:[#allocation8 + $0x8c0] sm:$0xff]
    %v1933 = vld [vmem:[#allocation8 + $0x8c8] sm:$0xff]
    %v1934 = vld [vmem:[#allocation8 + $0x8d0] sm:$0xff]
    %v1935 = vld [vmem:[#allocation8 + $0x8d8] sm:$0xff]
    %v1936 = vld [vmem:[#allocation8 + $0x8e0] sm:$0xff]
    %v1937 = vld [vmem:[#allocation8 + $0x8e8] sm:$0xff]
    %v1938 = vld [vmem:[#allocation8 + $0x8f0] sm:$0xff]
    %v1939 = vld [vmem:[#allocation8 + $0x8f8] sm:$0xff]
    %v1940 = vld [vmem:[#allocation8 + $0x900] sm:$0xff]
    %v1941 = vld [vmem:[#allocation8 + $0x908] sm:$0xff]
    %v1942 = vld [vmem:[#allocation8 + $0x910] sm:$0xff]
    %v1943 = vld [vmem:[#allocation8 + $0x918] sm:$0xff]
    %v1944 = vld [vmem:[#allocation8 + $0x920] sm:$0xff]
    %v1945 = vld [vmem:[#allocation8 + $0x928] sm:$0xff]
    %v1946 = vld [vmem:[#allocation8 + $0x930] sm:$0xff]
    %v1947 = vld [vmem:[#allocation8 + $0x938] sm:$0xff]
    %v1948 = vld [vmem:[#allocation8 + $0x940] sm:$0xff]
    %v1949 = vld [vmem:[#allocation8 + $0x948] sm:$0xff]
    %v1950 = vld [vmem:[#allocation8 + $0x950] sm:$0xff]
    %v1951 = vld [vmem:[#allocation8 + $0x958] sm:$0xff]
    %v1952 = vld [vmem:[#allocation8 + $0x960] sm:$0xff]
    %v1953 = vld [vmem:[#allocation8 + $0x968] sm:$0xff]
    %v1954 = vld [vmem:[#allocation8 + $0x970] sm:$0xff]
    %v1955 = vld [vmem:[#allocation8 + $0x978] sm:$0xff]
    %v1956 = vld [vmem:[#allocation8 + $0x980] sm:$0xff]
    %v1957 = vld [vmem:[#allocation8 + $0x988] sm:$0xff]
    %v1958 = vld [vmem:[#allocation8 + $0x990] sm:$0xff]
    %v1959 = vld [vmem:[#allocation8 + $0x998] sm:$0xff]
    %v1960 = vld [vmem:[#allocation8 + $0x9a0] sm:$0xff]
    %v1961 = vld [vmem:[#allocation8 + $0x9a8] sm:$0xff]
    %v1962 = vld [vmem:[#allocation8 + $0x9b0] sm:$0xff]
    %v1963 = vld [vmem:[#allocation8 + $0x9b8] sm:$0xff]
    %v1964 = vld [vmem:[#allocation8 + $0x9c0] sm:$0xff]
    %v1965 = vld [vmem:[#allocation8 + $0x9c8] sm:$0xff]
    %v1966 = vld [vmem:[#allocation8 + $0x9d0] sm:$0xff]
    %v1967 = vld [vmem:[#allocation8 + $0x9d8] sm:$0xff]
    %v1968 = vld [vmem:[#allocation8 + $0x9e0] sm:$0xff]
    %v1969 = vld [vmem:[#allocation8 + $0x9e8] sm:$0xff]
    %v1970 = vld [vmem:[#allocation8 + $0x9f0] sm:$0xff]
    %v1971 = vld [vmem:[#allocation8 + $0x9f8] sm:$0xff]
    %v1972 = vld [vmem:[#allocation8 + $0xa00] sm:$0xff]
    %v1973 = vld [vmem:[#allocation8 + $0xa08] sm:$0xff]
    %v1974 = vld [vmem:[#allocation8 + $0xa10] sm:$0xff]
    %v1975 = vld [vmem:[#allocation8 + $0xa18] sm:$0xff]
    %v1976 = vld [vmem:[#allocation8 + $0xa20] sm:$0xff]
    %v1977 = vld [vmem:[#allocation8 + $0xa28] sm:$0xff]
    %v1978 = vld [vmem:[#allocation8 + $0xa30] sm:$0xff]
    %v1979 = vld [vmem:[#allocation8 + $0xa38] sm:$0xff]
    %v1980 = vld [vmem:[#allocation8 + $0xa40] sm:$0xff]
    %v1981 = vld [vmem:[#allocation8 + $0xa48] sm:$0xff]
    %v1982 = vld [vmem:[#allocation8 + $0xa50] sm:$0xff]
    %v1983 = vld [vmem:[#allocation8 + $0xa58] sm:$0xff]
    %v1984 = vld [vmem:[#allocation8 + $0xa60] sm:$0xff]
    %v1985 = vld [vmem:[#allocation8 + $0xa68] sm:$0xff]
    %v1986 = vld [vmem:[#allocation8 + $0xa70] sm:$0xff]
    %v1987 = vld [vmem:[#allocation8 + $0xa78] sm:$0xff]
    %v1988 = vld [vmem:[#allocation8 + $0xa80] sm:$0xff]
    %v1989 = vld [vmem:[#allocation8 + $0xa88] sm:$0xff]
    %v1990 = vld [vmem:[#allocation8 + $0xa90] sm:$0xff]
    %v1991 = vld [vmem:[#allocation8 + $0xa98] sm:$0xff]
    %v1992 = vld [vmem:[#allocation8 + $0xaa0] sm:$0xff]
    %v1993 = vld [vmem:[#allocation8 + $0xaa8] sm:$0xff]
    %v1994 = vld [vmem:[#allocation8 + $0xab0] sm:$0xff]
    %v1995 = vld [vmem:[#allocation8 + $0xab8] sm:$0xff]
    %v1996 = vld [vmem:[#allocation8 + $0xac0] sm:$0xff]
    %v1997 = vld [vmem:[#allocation8 + $0xac8] sm:$0xff]
    %v1998 = vld [vmem:[#allocation8 + $0xad0] sm:$0xff]
    %v1999 = vld [vmem:[#allocation8 + $0xad8] sm:$0xff]
    %v2000 = vld [vmem:[#allocation8 + $0xae0] sm:$0xff]
    %v2001 = vld [vmem:[#allocation8 + $0xae8] sm:$0xff]
    %v2002 = vld [vmem:[#allocation8 + $0xaf0] sm:$0xff]
    %v2003 = vld [vmem:[#allocation8 + $0xaf8] sm:$0xff]
    %v2004 = vld [vmem:[#allocation8 + $0xb00] sm:$0xff]
    %v2005 = vld [vmem:[#allocation8 + $0xb08] sm:$0xff]
    %v2006 = vld [vmem:[#allocation8 + $0xb10] sm:$0xff]
    %v2007 = vld [vmem:[#allocation8 + $0xb18] sm:$0xff]
    %v2008 = vld [vmem:[#allocation8 + $0xb20] sm:$0xff]
    %v2009 = vld [vmem:[#allocation8 + $0xb28] sm:$0xff]
    %v2010 = vld [vmem:[#allocation8 + $0xb30] sm:$0xff]
    %v2011 = vld [vmem:[#allocation8 + $0xb38] sm:$0xff]
    %v2012 = vld [vmem:[#allocation8 + $0xb40] sm:$0xff]
    %v2013 = vld [vmem:[#allocation8 + $0xb48] sm:$0xff]
    %v2014 = vld [vmem:[#allocation8 + $0xb50] sm:$0xff]
    %v2015 = vld [vmem:[#allocation8 + $0xb58] sm:$0xff]
    %v2016 = vld [vmem:[#allocation8 + $0xb60] sm:$0xff]
    %v2017 = vld [vmem:[#allocation8 + $0xb68] sm:$0xff]
    %v2018 = vld [vmem:[#allocation8 + $0xb70] sm:$0xff]
    %v2019 = vld [vmem:[#allocation8 + $0xb78] sm:$0xff]
    %v2020 = vld [vmem:[#allocation8 + $0xb80] sm:$0xff]
    %v2021 = vld [vmem:[#allocation8 + $0xb88] sm:$0xff]
    %v2022 = vld [vmem:[#allocation8 + $0xb90] sm:$0xff]
    %v2023 = vld [vmem:[#allocation8 + $0xb98] sm:$0xff]
    %v2024 = vld [vmem:[#allocation8 + $0xba0] sm:$0xff]
    %v2025 = vld [vmem:[#allocation8 + $0xba8] sm:$0xff]
    %v2026 = vld [vmem:[#allocation8 + $0xbb0] sm:$0xff]
    %v2027 = vld [vmem:[#allocation8 + $0xbb8] sm:$0xff]
    %v2028 = vld [vmem:[#allocation8 + $0xbc0] sm:$0xff]
    %v2029 = vld [vmem:[#allocation8 + $0xbc8] sm:$0xff]
    %v2030 = vld [vmem:[#allocation8 + $0xbd0] sm:$0xff]
    %v2031 = vld [vmem:[#allocation8 + $0xbd8] sm:$0xff]
    %v2032 = vld [vmem:[#allocation8 + $0xbe0] sm:$0xff]
    %v2033 = vld [vmem:[#allocation8 + $0xbe8] sm:$0xff]
    %v2034 = vld [vmem:[#allocation8 + $0xbf0] sm:$0xff]
    %v2035 = vld [vmem:[#allocation8 + $0xbf8] sm:$0xff]
    %v2036 = vld [vmem:[#allocation8 + $0xc00] sm:$0xff]
    %v2037 = vld [vmem:[#allocation8 + $0xc08] sm:$0xff]
    %v2038 = vld [vmem:[#allocation8 + $0xc10] sm:$0xff]
    %v2039 = vld [vmem:[#allocation8 + $0xc18] sm:$0xff]
    %v2040 = vld [vmem:[#allocation8 + $0xc20] sm:$0xff]
    %v2041 = vld [vmem:[#allocation8 + $0xc28] sm:$0xff]
    %v2042 = vld [vmem:[#allocation8 + $0xc30] sm:$0xff]
    %v2043 = vld [vmem:[#allocation8 + $0xc38] sm:$0xff]
    %v2044 = vld [vmem:[#allocation8 + $0xc40] sm:$0xff]
    %v2045 = vld [vmem:[#allocation8 + $0xc48] sm:$0xff]
    %v2046 = vld [vmem:[#allocation8 + $0xc50] sm:$0xff]
    %v2047 = vld [vmem:[#allocation8 + $0xc58] sm:$0xff]
    %v2048 = vld [vmem:[#allocation8 + $0xc60] sm:$0xff]
    %v2049 = vld [vmem:[#allocation8 + $0xc68] sm:$0xff]
    %v2050 = vld [vmem:[#allocation8 + $0xc70] sm:$0xff]
    %v2051 = vld [vmem:[#allocation8 + $0xc78] sm:$0xff]
    %v2052 = vld [vmem:[#allocation8 + $0xc80] sm:$0xff]
    %v2053 = vld [vmem:[#allocation8 + $0xc88] sm:$0xff]
    %v2054 = vld [vmem:[#allocation8 + $0xc90] sm:$0xff]
    %v2055 = vld [vmem:[#allocation8 + $0xc98] sm:$0xff]
    %v2056 = vld [vmem:[#allocation8 + $0xca0] sm:$0xff]
    %v2057 = vld [vmem:[#allocation8 + $0xca8] sm:$0xff]
    %v2058 = vld [vmem:[#allocation8 + $0xcb0] sm:$0xff]
    %v2059 = vld [vmem:[#allocation8 + $0xcb8] sm:$0xff]
    %v2060 = vld [vmem:[#allocation8 + $0xcc0] sm:$0xff]
    %v2061 = vld [vmem:[#allocation8 + $0xcc8] sm:$0xff]
    %v2062 = vld [vmem:[#allocation8 + $0xcd0] sm:$0xff]
    %v2063 = vld [vmem:[#allocation8 + $0xcd8] sm:$0xff]
    %v2064 = vld [vmem:[#allocation8 + $0xce0] sm:$0xff]
    %v2065 = vld [vmem:[#allocation8 + $0xce8] sm:$0xff]
    %v2066 = vld [vmem:[#allocation8 + $0xcf0] sm:$0xff]
    %v2067 = vld [vmem:[#allocation8 + $0xcf8] sm:$0xff]
    %v2068 = vld [vmem:[#allocation8 + $0xd00] sm:$0xff]
    %v2069 = vld [vmem:[#allocation8 + $0xd08] sm:$0xff]
    %v2070 = vld [vmem:[#allocation8 + $0xd10] sm:$0xff]
    %v2071 = vld [vmem:[#allocation8 + $0xd18] sm:$0xff]
    %v2072 = vld [vmem:[#allocation8 + $0xd20] sm:$0xff]
    %v2073 = vld [vmem:[#allocation8 + $0xd28] sm:$0xff]
    %v2074 = vld [vmem:[#allocation8 + $0xd30] sm:$0xff]
    %v2075 = vld [vmem:[#allocation8 + $0xd38] sm:$0xff]
    %v2076 = vld [vmem:[#allocation8 + $0xd40] sm:$0xff]
    %v2077 = vld [vmem:[#allocation8 + $0xd48] sm:$0xff]
    %v2078 = vld [vmem:[#allocation8 + $0xd50] sm:$0xff]
    %v2079 = vld [vmem:[#allocation8 + $0xd58] sm:$0xff]
    %v2080 = vld [vmem:[#allocation8 + $0xd60] sm:$0xff]
    %v2081 = vld [vmem:[#allocation8 + $0xd68] sm:$0xff]
    %v2082 = vld [vmem:[#allocation8 + $0xd70] sm:$0xff]
    %v2083 = vld [vmem:[#allocation8 + $0xd78] sm:$0xff]
    %v2084 = vld [vmem:[#allocation8 + $0xd80] sm:$0xff]
    %v2085 = vld [vmem:[#allocation8 + $0xd88] sm:$0xff]
    %v2086 = vld [vmem:[#allocation8 + $0xd90] sm:$0xff]
    %v2087 = vld [vmem:[#allocation8 + $0xd98] sm:$0xff]
    %v2088 = vld [vmem:[#allocation8 + $0xda0] sm:$0xff]
    %v2089 = vld [vmem:[#allocation8 + $0xda8] sm:$0xff]
    %v2090 = vld [vmem:[#allocation8 + $0xdb0] sm:$0xff]
    %v2091 = vld [vmem:[#allocation8 + $0xdb8] sm:$0xff]
    %v2092 = vld [vmem:[#allocation8 + $0xdc0] sm:$0xff]
    %v2093 = vld [vmem:[#allocation8 + $0xdc8] sm:$0xff]
    %v2094 = vld [vmem:[#allocation8 + $0xdd0] sm:$0xff]
    %v2095 = vld [vmem:[#allocation8 + $0xdd8] sm:$0xff]
    %v2096 = vld [vmem:[#allocation8 + $0xde0] sm:$0xff]
    %v2097 = vld [vmem:[#allocation8 + $0xde8] sm:$0xff]
    %v2098 = vld [vmem:[#allocation8 + $0xdf0] sm:$0xff]
    %v2099 = vld [vmem:[#allocation8 + $0xdf8] sm:$0xff]
    %v2100 = vld [vmem:[#allocation8 + $0xe00] sm:$0xff]
    %v2101 = vld [vmem:[#allocation8 + $0xe08] sm:$0xff]
    %v2102 = vld [vmem:[#allocation8 + $0xe10] sm:$0xff]
    %v2103 = vld [vmem:[#allocation8 + $0xe18] sm:$0xff]
    %v2104 = vld [vmem:[#allocation8 + $0xe20] sm:$0xff]
    %v2105 = vld [vmem:[#allocation8 + $0xe28] sm:$0xff]
    %v2106 = vld [vmem:[#allocation8 + $0xe30] sm:$0xff]
    %v2107 = vld [vmem:[#allocation8 + $0xe38] sm:$0xff]
    %v2108 = vld [vmem:[#allocation8 + $0xe40] sm:$0xff]
    %v2109 = vld [vmem:[#allocation8 + $0xe48] sm:$0xff]
    %v2110 = vld [vmem:[#allocation8 + $0xe50] sm:$0xff]
    %v2111 = vld [vmem:[#allocation8 + $0xe58] sm:$0xff]
    %v2112 = vld [vmem:[#allocation8 + $0xe60] sm:$0xff]
    %v2113 = vld [vmem:[#allocation8 + $0xe68] sm:$0xff]
    %v2114 = vld [vmem:[#allocation8 + $0xe70] sm:$0xff]
    %v2115 = vld [vmem:[#allocation8 + $0xe78] sm:$0xff]
    %v2116 = vld [vmem:[#allocation8 + $0xe80] sm:$0xff]
    %v2117 = vld [vmem:[#allocation8 + $0xe88] sm:$0xff]
    %v2118 = vld [vmem:[#allocation8 + $0xe90] sm:$0xff]
    %v2119 = vld [vmem:[#allocation8 + $0xe98] sm:$0xff]
    %v2120 = vld [vmem:[#allocation8 + $0xea0] sm:$0xff]
    %v2121 = vld [vmem:[#allocation8 + $0xea8] sm:$0xff]
    %v2122 = vld [vmem:[#allocation8 + $0xeb0] sm:$0xff]
    %v2123 = vld [vmem:[#allocation8 + $0xeb8] sm:$0xff]
    %v2124 = vld [vmem:[#allocation8 + $0xec0] sm:$0xff]
    %v2125 = vld [vmem:[#allocation8 + $0xec8] sm:$0xff]
    %v2126 = vld [vmem:[#allocation8 + $0xed0] sm:$0xff]
    %v2127 = vld [vmem:[#allocation8 + $0xed8] sm:$0xff]
    %v2128 = vld [vmem:[#allocation8 + $0xee0] sm:$0xff]
    %v2129 = vld [vmem:[#allocation8 + $0xee8] sm:$0xff]
    %v2130 = vld [vmem:[#allocation8 + $0xef0] sm:$0xff]
    %v2131 = vld [vmem:[#allocation8 + $0xef8] sm:$0xff]
    %v2132 = vld [vmem:[#allocation8 + $0xf00] sm:$0xff]
    %v2133 = vld [vmem:[#allocation8 + $0xf08] sm:$0xff]
    %v2134 = vld [vmem:[#allocation8 + $0xf10] sm:$0xff]
    %v2135 = vld [vmem:[#allocation8 + $0xf18] sm:$0xff]
    %v2136 = vld [vmem:[#allocation8 + $0xf20] sm:$0xff]
    %v2137 = vld [vmem:[#allocation8 + $0xf28] sm:$0xff]
    %v2138 = vld [vmem:[#allocation8 + $0xf30] sm:$0xff]
    %v2139 = vld [vmem:[#allocation8 + $0xf38] sm:$0xff]
    %v2140 = vld [vmem:[#allocation8 + $0xf40] sm:$0xff]
    %v2141 = vld [vmem:[#allocation8 + $0xf48] sm:$0xff]
    %v2142 = vld [vmem:[#allocation8 + $0xf50] sm:$0xff]
    %v2143 = vld [vmem:[#allocation8 + $0xf58] sm:$0xff]
    %v2144 = vld [vmem:[#allocation8 + $0xf60] sm:$0xff]
    %v2145 = vld [vmem:[#allocation8 + $0xf68] sm:$0xff]
    %v2146 = vld [vmem:[#allocation8 + $0xf70] sm:$0xff]
    %v2147 = vld [vmem:[#allocation8 + $0xf78] sm:$0xff]
    %v2148 = vld [vmem:[#allocation8 + $0xf80] sm:$0xff]
    %v2149 = vld [vmem:[#allocation8 + $0xf88] sm:$0xff]
    %v2150 = vld [vmem:[#allocation8 + $0xf90] sm:$0xff]
    %v2151 = vld [vmem:[#allocation8 + $0xf98] sm:$0xff]
    %v2152 = vld [vmem:[#allocation8 + $0xfa0] sm:$0xff]
    %v2153 = vld [vmem:[#allocation8 + $0xfa8] sm:$0xff]
    %v2154 = vld [vmem:[#allocation8 + $0xfb0] sm:$0xff]
    %v2155 = vld [vmem:[#allocation8 + $0xfb8] sm:$0xff]
    %v2156 = vld [vmem:[#allocation8 + $0xfc0] sm:$0xff]
    %v2157 = vld [vmem:[#allocation8 + $0xfc8] sm:$0xff]
    %v2158 = vld [vmem:[#allocation8 + $0xfd0] sm:$0xff]
    %v2159 = vld [vmem:[#allocation8 + $0xfd8] sm:$0xff]
    %v2160 = vld [vmem:[#allocation8 + $0xfe0] sm:$0xff]
    %v2161 = vld [vmem:[#allocation8 + $0xfe8] sm:$0xff]
    %v2162 = vld [vmem:[#allocation8 + $0xff0] sm:$0xff]
    %v2163 = vld [vmem:[#allocation8 + $0xff8] sm:$0xff]
    %v2164 = vld [vmem:[#allocation10] sm:$0xff]
    %v2166 = vlaneseq
    %v2167 = vshrl.u32 %v2166, 7
    %v2168 = vsub.s32 0, %v2167
    %v2169 = vrot.slane %v2164, %v2168
    %v2170 = vlaneseq
    %v2171 = vshrl.u32 %v2170, 7
    %v2172 = vsub.s32 1, %v2171
    %v2173 = vrot.slane %v2164, %v2172
    %v2174 = vlaneseq
    %v2175 = vshrl.u32 %v2174, 7
    %v2176 = vsub.s32 2, %v2175
    %v2177 = vrot.slane %v2164, %v2176
    %v2178 = vlaneseq
    %v2179 = vshrl.u32 %v2178, 7
    %v2180 = vsub.s32 3, %v2179
    %v2181 = vrot.slane %v2164, %v2180
    %v2182 = vlaneseq
    %v2183 = vshrl.u32 %v2182, 7
    %v2184 = vsub.s32 4, %v2183
    %v2185 = vrot.slane %v2164, %v2184
    %v2186 = vlaneseq
    %v2187 = vshrl.u32 %v2186, 7
    %v2188 = vsub.s32 5, %v2187
    %v2189 = vrot.slane %v2164, %v2188
    %v2190 = vlaneseq
    %v2191 = vshrl.u32 %v2190, 7
    %v2192 = vsub.s32 6, %v2191
    %v2193 = vrot.slane %v2164, %v2192
    %v2194 = vlaneseq
    %v2195 = vshrl.u32 %v2194, 7
    %v2196 = vsub.s32 7, %v2195
    %v2197 = vrot.slane %v2164, %v2196
    %v2718 = vunpack.c.l.b16 %v1652
    %v2719 = vunpack.c.h.b16 %v1652
    %v2720 = vunpack.c.l.b16 %v1653
    %v2721 = vunpack.c.h.b16 %v1653
    %v2722 = vunpack.c.l.b16 %v1654
    %v2723 = vunpack.c.h.b16 %v1654
    %v2724 = vunpack.c.l.b16 %v1655
    %v2725 = vunpack.c.h.b16 %v1655
    %v2726 = vunpack.c.l.b16 %v1656
    %v2727 = vunpack.c.h.b16 %v1656
    %v2728 = vunpack.c.l.b16 %v1657
    %v2729 = vunpack.c.h.b16 %v1657
    %v2730 = vunpack.c.l.b16 %v1658
    %v2731 = vunpack.c.h.b16 %v1658
    %v2732 = vunpack.c.l.b16 %v1659
    %v2733 = vunpack.c.h.b16 %v1659
    %v2734 = vunpack.c.l.b16 %v1660
    %v2735 = vunpack.c.h.b16 %v1660
    %v2736 = vunpack.c.l.b16 %v1661
    %v2737 = vunpack.c.h.b16 %v1661
    %v2738 = vunpack.c.l.b16 %v1662
    %v2739 = vunpack.c.h.b16 %v1662
    %v2740 = vunpack.c.l.b16 %v1663
    %v2741 = vunpack.c.h.b16 %v1663
    %v2742 = vunpack.c.l.b16 %v1664
    %v2743 = vunpack.c.h.b16 %v1664
    %v2744 = vunpack.c.l.b16 %v1665
    %v2745 = vunpack.c.h.b16 %v1665
    %v2746 = vunpack.c.l.b16 %v1666
    %v2747 = vunpack.c.h.b16 %v1666
    %v2748 = vunpack.c.l.b16 %v1667
    %v2749 = vunpack.c.h.b16 %v1667
    %v2750 = vunpack.c.l.b16 %v1668
    %v2751 = vunpack.c.h.b16 %v1668
    %v2752 = vunpack.c.l.b16 %v1669
    %v2753 = vunpack.c.h.b16 %v1669
    %v2754 = vunpack.c.l.b16 %v1670
    %v2755 = vunpack.c.h.b16 %v1670
    %v2756 = vunpack.c.l.b16 %v1671
    %v2757 = vunpack.c.h.b16 %v1671
    %v2758 = vunpack.c.l.b16 %v1672
    %v2759 = vunpack.c.h.b16 %v1672
    %v2760 = vunpack.c.l.b16 %v1673
    %v2761 = vunpack.c.h.b16 %v1673
    %v2762 = vunpack.c.l.b16 %v1674
    %v2763 = vunpack.c.h.b16 %v1674
    %v2764 = vunpack.c.l.b16 %v1675
    %v2765 = vunpack.c.h.b16 %v1675
    %v2766 = vunpack.c.l.b16 %v1676
    %v2767 = vunpack.c.h.b16 %v1676
    %v2768 = vunpack.c.l.b16 %v1677
    %v2769 = vunpack.c.h.b16 %v1677
    %v2770 = vunpack.c.l.b16 %v1678
    %v2771 = vunpack.c.h.b16 %v1678
    %v2772 = vunpack.c.l.b16 %v1679
    %v2773 = vunpack.c.h.b16 %v1679
    %v2774 = vunpack.c.l.b16 %v1680
    %v2775 = vunpack.c.h.b16 %v1680
    %v2776 = vunpack.c.l.b16 %v1681
    %v2777 = vunpack.c.h.b16 %v1681
    %v2778 = vunpack.c.l.b16 %v1682
    %v2779 = vunpack.c.h.b16 %v1682
    %v2780 = vunpack.c.l.b16 %v1683
    %v2781 = vunpack.c.h.b16 %v1683
    %v2782 = vunpack.c.l.b16 %v1684
    %v2783 = vunpack.c.h.b16 %v1684
    %v2784 = vunpack.c.l.b16 %v1685
    %v2785 = vunpack.c.h.b16 %v1685
    %v2786 = vunpack.c.l.b16 %v1686
    %v2787 = vunpack.c.h.b16 %v1686
    %v2788 = vunpack.c.l.b16 %v1687
    %v2789 = vunpack.c.h.b16 %v1687
    %v2790 = vunpack.c.l.b16 %v1688
    %v2791 = vunpack.c.h.b16 %v1688
    %v2792 = vunpack.c.l.b16 %v1689
    %v2793 = vunpack.c.h.b16 %v1689
    %v2794 = vunpack.c.l.b16 %v1690
    %v2795 = vunpack.c.h.b16 %v1690
    %v2796 = vunpack.c.l.b16 %v1691
    %v2797 = vunpack.c.h.b16 %v1691
    %v2798 = vunpack.c.l.b16 %v1692
    %v2799 = vunpack.c.h.b16 %v1692
    %v2800 = vunpack.c.l.b16 %v1693
    %v2801 = vunpack.c.h.b16 %v1693
    %v2802 = vunpack.c.l.b16 %v1694
    %v2803 = vunpack.c.h.b16 %v1694
    %v2804 = vunpack.c.l.b16 %v1695
    %v2805 = vunpack.c.h.b16 %v1695
    %v2806 = vunpack.c.l.b16 %v1696
    %v2807 = vunpack.c.h.b16 %v1696
    %v2808 = vunpack.c.l.b16 %v1697
    %v2809 = vunpack.c.h.b16 %v1697
    %v2810 = vunpack.c.l.b16 %v1698
    %v2811 = vunpack.c.h.b16 %v1698
    %v2812 = vunpack.c.l.b16 %v1699
    %v2813 = vunpack.c.h.b16 %v1699
    %v2814 = vunpack.c.l.b16 %v1700
    %v2815 = vunpack.c.h.b16 %v1700
    %v2816 = vunpack.c.l.b16 %v1701
    %v2817 = vunpack.c.h.b16 %v1701
    %v2818 = vunpack.c.l.b16 %v1702
    %v2819 = vunpack.c.h.b16 %v1702
    %v2820 = vunpack.c.l.b16 %v1703
    %v2821 = vunpack.c.h.b16 %v1703
    %v2822 = vunpack.c.l.b16 %v1704
    %v2823 = vunpack.c.h.b16 %v1704
    %v2824 = vunpack.c.l.b16 %v1705
    %v2825 = vunpack.c.h.b16 %v1705
    %v2826 = vunpack.c.l.b16 %v1706
    %v2827 = vunpack.c.h.b16 %v1706
    %v2828 = vunpack.c.l.b16 %v1707
    %v2829 = vunpack.c.h.b16 %v1707
    %v2830 = vunpack.c.l.b16 %v1708
    %v2831 = vunpack.c.h.b16 %v1708
    %v2832 = vunpack.c.l.b16 %v1709
    %v2833 = vunpack.c.h.b16 %v1709
    %v2834 = vunpack.c.l.b16 %v1710
    %v2835 = vunpack.c.h.b16 %v1710
    %v2836 = vunpack.c.l.b16 %v1711
    %v2837 = vunpack.c.h.b16 %v1711
    %v2838 = vunpack.c.l.b16 %v1712
    %v2839 = vunpack.c.h.b16 %v1712
    %v2840 = vunpack.c.l.b16 %v1713
    %v2841 = vunpack.c.h.b16 %v1713
    %v2842 = vunpack.c.l.b16 %v1714
    %v2843 = vunpack.c.h.b16 %v1714
    %v2844 = vunpack.c.l.b16 %v1715
    %v2845 = vunpack.c.h.b16 %v1715
    %v2846 = vunpack.c.l.b16 %v1716
    %v2847 = vunpack.c.h.b16 %v1716
    %v2848 = vunpack.c.l.b16 %v1717
    %v2849 = vunpack.c.h.b16 %v1717
    %v2850 = vunpack.c.l.b16 %v1718
    %v2851 = vunpack.c.h.b16 %v1718
    %v2852 = vunpack.c.l.b16 %v1719
    %v2853 = vunpack.c.h.b16 %v1719
    %v2854 = vunpack.c.l.b16 %v1720
    %v2855 = vunpack.c.h.b16 %v1720
    %v2856 = vunpack.c.l.b16 %v1721
    %v2857 = vunpack.c.h.b16 %v1721
    %v2858 = vunpack.c.l.b16 %v1722
    %v2859 = vunpack.c.h.b16 %v1722
    %v2860 = vunpack.c.l.b16 %v1723
    %v2861 = vunpack.c.h.b16 %v1723
    %v2862 = vunpack.c.l.b16 %v1724
    %v2863 = vunpack.c.h.b16 %v1724
    %v2864 = vunpack.c.l.b16 %v1725
    %v2865 = vunpack.c.h.b16 %v1725
    %v2866 = vunpack.c.l.b16 %v1726
    %v2867 = vunpack.c.h.b16 %v1726
    %v2868 = vunpack.c.l.b16 %v1727
    %v2869 = vunpack.c.h.b16 %v1727
    %v2870 = vunpack.c.l.b16 %v1728
    %v2871 = vunpack.c.h.b16 %v1728
    %v2872 = vunpack.c.l.b16 %v1729
    %v2873 = vunpack.c.h.b16 %v1729
    %v2874 = vunpack.c.l.b16 %v1730
    %v2875 = vunpack.c.h.b16 %v1730
    %v2876 = vunpack.c.l.b16 %v1731
    %v2877 = vunpack.c.h.b16 %v1731
    %v2878 = vunpack.c.l.b16 %v1732
    %v2879 = vunpack.c.h.b16 %v1732
    %v2880 = vunpack.c.l.b16 %v1733
    %v2881 = vunpack.c.h.b16 %v1733
    %v2882 = vunpack.c.l.b16 %v1734
    %v2883 = vunpack.c.h.b16 %v1734
    %v2884 = vunpack.c.l.b16 %v1735
    %v2885 = vunpack.c.h.b16 %v1735
    %v2886 = vunpack.c.l.b16 %v1736
    %v2887 = vunpack.c.h.b16 %v1736
    %v2888 = vunpack.c.l.b16 %v1737
    %v2889 = vunpack.c.h.b16 %v1737
    %v2890 = vunpack.c.l.b16 %v1738
    %v2891 = vunpack.c.h.b16 %v1738
    %v2892 = vunpack.c.l.b16 %v1739
    %v2893 = vunpack.c.h.b16 %v1739
    %v2894 = vunpack.c.l.b16 %v1740
    %v2895 = vunpack.c.h.b16 %v1740
    %v2896 = vunpack.c.l.b16 %v1741
    %v2897 = vunpack.c.h.b16 %v1741
    %v2898 = vunpack.c.l.b16 %v1742
    %v2899 = vunpack.c.h.b16 %v1742
    %v2900 = vunpack.c.l.b16 %v1743
    %v2901 = vunpack.c.h.b16 %v1743
    %v2902 = vunpack.c.l.b16 %v1744
    %v2903 = vunpack.c.h.b16 %v1744
    %v2904 = vunpack.c.l.b16 %v1745
    %v2905 = vunpack.c.h.b16 %v1745
    %v2906 = vunpack.c.l.b16 %v1746
    %v2907 = vunpack.c.h.b16 %v1746
    %v2908 = vunpack.c.l.b16 %v1747
    %v2909 = vunpack.c.h.b16 %v1747
    %v2910 = vunpack.c.l.b16 %v1748
    %v2911 = vunpack.c.h.b16 %v1748
    %v2912 = vunpack.c.l.b16 %v1749
    %v2913 = vunpack.c.h.b16 %v1749
    %v2914 = vunpack.c.l.b16 %v1750
    %v2915 = vunpack.c.h.b16 %v1750
    %v2916 = vunpack.c.l.b16 %v1751
    %v2917 = vunpack.c.h.b16 %v1751
    %v2918 = vunpack.c.l.b16 %v1752
    %v2919 = vunpack.c.h.b16 %v1752
    %v2920 = vunpack.c.l.b16 %v1753
    %v2921 = vunpack.c.h.b16 %v1753
    %v2922 = vunpack.c.l.b16 %v1754
    %v2923 = vunpack.c.h.b16 %v1754
    %v2924 = vunpack.c.l.b16 %v1755
    %v2925 = vunpack.c.h.b16 %v1755
    %v2926 = vunpack.c.l.b16 %v1756
    %v2927 = vunpack.c.h.b16 %v1756
    %v2928 = vunpack.c.l.b16 %v1757
    %v2929 = vunpack.c.h.b16 %v1757
    %v2930 = vunpack.c.l.b16 %v1758
    %v2931 = vunpack.c.h.b16 %v1758
    %v2932 = vunpack.c.l.b16 %v1759
    %v2933 = vunpack.c.h.b16 %v1759
    %v2934 = vunpack.c.l.b16 %v1760
    %v2935 = vunpack.c.h.b16 %v1760
    %v2936 = vunpack.c.l.b16 %v1761
    %v2937 = vunpack.c.h.b16 %v1761
    %v2938 = vunpack.c.l.b16 %v1762
    %v2939 = vunpack.c.h.b16 %v1762
    %v2940 = vunpack.c.l.b16 %v1763
    %v2941 = vunpack.c.h.b16 %v1763
    %v2942 = vunpack.c.l.b16 %v1764
    %v2943 = vunpack.c.h.b16 %v1764
    %v2944 = vunpack.c.l.b16 %v1765
    %v2945 = vunpack.c.h.b16 %v1765
    %v2946 = vunpack.c.l.b16 %v1766
    %v2947 = vunpack.c.h.b16 %v1766
    %v2948 = vunpack.c.l.b16 %v1767
    %v2949 = vunpack.c.h.b16 %v1767
    %v2950 = vunpack.c.l.b16 %v1768
    %v2951 = vunpack.c.h.b16 %v1768
    %v2952 = vunpack.c.l.b16 %v1769
    %v2953 = vunpack.c.h.b16 %v1769
    %v2954 = vunpack.c.l.b16 %v1770
    %v2955 = vunpack.c.h.b16 %v1770
    %v2956 = vunpack.c.l.b16 %v1771
    %v2957 = vunpack.c.h.b16 %v1771
    %v2958 = vunpack.c.l.b16 %v1772
    %v2959 = vunpack.c.h.b16 %v1772
    %v2960 = vunpack.c.l.b16 %v1773
    %v2961 = vunpack.c.h.b16 %v1773
    %v2962 = vunpack.c.l.b16 %v1774
    %v2963 = vunpack.c.h.b16 %v1774
    %v2964 = vunpack.c.l.b16 %v1775
    %v2965 = vunpack.c.h.b16 %v1775
    %v2966 = vunpack.c.l.b16 %v1776
    %v2967 = vunpack.c.h.b16 %v1776
    %v2968 = vunpack.c.l.b16 %v1777
    %v2969 = vunpack.c.h.b16 %v1777
    %v2970 = vunpack.c.l.b16 %v1778
    %v2971 = vunpack.c.h.b16 %v1778
    %v2972 = vunpack.c.l.b16 %v1779
    %v2973 = vunpack.c.h.b16 %v1779
    %v2974 = vunpack.c.l.b16 %v1780
    %v2975 = vunpack.c.h.b16 %v1780
    %v2976 = vunpack.c.l.b16 %v1781
    %v2977 = vunpack.c.h.b16 %v1781
    %v2978 = vunpack.c.l.b16 %v1782
    %v2979 = vunpack.c.h.b16 %v1782
    %v2980 = vunpack.c.l.b16 %v1783
    %v2981 = vunpack.c.h.b16 %v1783
    %v2982 = vunpack.c.l.b16 %v1784
    %v2983 = vunpack.c.h.b16 %v1784
    %v2984 = vunpack.c.l.b16 %v1785
    %v2985 = vunpack.c.h.b16 %v1785
    %v2986 = vunpack.c.l.b16 %v1786
    %v2987 = vunpack.c.h.b16 %v1786
    %v2988 = vunpack.c.l.b16 %v1787
    %v2989 = vunpack.c.h.b16 %v1787
    %v2990 = vunpack.c.l.b16 %v1788
    %v2991 = vunpack.c.h.b16 %v1788
    %v2992 = vunpack.c.l.b16 %v1789
    %v2993 = vunpack.c.h.b16 %v1789
    %v2994 = vunpack.c.l.b16 %v1790
    %v2995 = vunpack.c.h.b16 %v1790
    %v2996 = vunpack.c.l.b16 %v1791
    %v2997 = vunpack.c.h.b16 %v1791
    %v2998 = vunpack.c.l.b16 %v1792
    %v2999 = vunpack.c.h.b16 %v1792
    %v3000 = vunpack.c.l.b16 %v1793
    %v3001 = vunpack.c.h.b16 %v1793
    %v3002 = vunpack.c.l.b16 %v1794
    %v3003 = vunpack.c.h.b16 %v1794
    %v3004 = vunpack.c.l.b16 %v1795
    %v3005 = vunpack.c.h.b16 %v1795
    %v3006 = vunpack.c.l.b16 %v1796
    %v3007 = vunpack.c.h.b16 %v1796
    %v3008 = vunpack.c.l.b16 %v1797
    %v3009 = vunpack.c.h.b16 %v1797
    %v3010 = vunpack.c.l.b16 %v1798
    %v3011 = vunpack.c.h.b16 %v1798
    %v3012 = vunpack.c.l.b16 %v1799
    %v3013 = vunpack.c.h.b16 %v1799
    %v3014 = vunpack.c.l.b16 %v1800
    %v3015 = vunpack.c.h.b16 %v1800
    %v3016 = vunpack.c.l.b16 %v1801
    %v3017 = vunpack.c.h.b16 %v1801
    %v3018 = vunpack.c.l.b16 %v1802
    %v3019 = vunpack.c.h.b16 %v1802
    %v3020 = vunpack.c.l.b16 %v1803
    %v3021 = vunpack.c.h.b16 %v1803
    %v3022 = vunpack.c.l.b16 %v1804
    %v3023 = vunpack.c.h.b16 %v1804
    %v3024 = vunpack.c.l.b16 %v1805
    %v3025 = vunpack.c.h.b16 %v1805
    %v3026 = vunpack.c.l.b16 %v1806
    %v3027 = vunpack.c.h.b16 %v1806
    %v3028 = vunpack.c.l.b16 %v1807
    %v3029 = vunpack.c.h.b16 %v1807
    %v3030 = vunpack.c.l.b16 %v1808
    %v3031 = vunpack.c.h.b16 %v1808
    %v3032 = vunpack.c.l.b16 %v1809
    %v3033 = vunpack.c.h.b16 %v1809
    %v3034 = vunpack.c.l.b16 %v1810
    %v3035 = vunpack.c.h.b16 %v1810
    %v3036 = vunpack.c.l.b16 %v1811
    %v3037 = vunpack.c.h.b16 %v1811
    %v3038 = vunpack.c.l.b16 %v1812
    %v3039 = vunpack.c.h.b16 %v1812
    %v3040 = vunpack.c.l.b16 %v1813
    %v3041 = vunpack.c.h.b16 %v1813
    %v3042 = vunpack.c.l.b16 %v1814
    %v3043 = vunpack.c.h.b16 %v1814
    %v3044 = vunpack.c.l.b16 %v1815
    %v3045 = vunpack.c.h.b16 %v1815
    %v3046 = vunpack.c.l.b16 %v1816
    %v3047 = vunpack.c.h.b16 %v1816
    %v3048 = vunpack.c.l.b16 %v1817
    %v3049 = vunpack.c.h.b16 %v1817
    %v3050 = vunpack.c.l.b16 %v1818
    %v3051 = vunpack.c.h.b16 %v1818
    %v3052 = vunpack.c.l.b16 %v1819
    %v3053 = vunpack.c.h.b16 %v1819
    %v3054 = vunpack.c.l.b16 %v1820
    %v3055 = vunpack.c.h.b16 %v1820
    %v3056 = vunpack.c.l.b16 %v1821
    %v3057 = vunpack.c.h.b16 %v1821
    %v3058 = vunpack.c.l.b16 %v1822
    %v3059 = vunpack.c.h.b16 %v1822
    %v3060 = vunpack.c.l.b16 %v1823
    %v3061 = vunpack.c.h.b16 %v1823
    %v3062 = vunpack.c.l.b16 %v1824
    %v3063 = vunpack.c.h.b16 %v1824
    %v3064 = vunpack.c.l.b16 %v1825
    %v3065 = vunpack.c.h.b16 %v1825
    %v3066 = vunpack.c.l.b16 %v1826
    %v3067 = vunpack.c.h.b16 %v1826
    %v3068 = vunpack.c.l.b16 %v1827
    %v3069 = vunpack.c.h.b16 %v1827
    %v3070 = vunpack.c.l.b16 %v1828
    %v3071 = vunpack.c.h.b16 %v1828
    %v3072 = vunpack.c.l.b16 %v1829
    %v3073 = vunpack.c.h.b16 %v1829
    %v3074 = vunpack.c.l.b16 %v1830
    %v3075 = vunpack.c.h.b16 %v1830
    %v3076 = vunpack.c.l.b16 %v1831
    %v3077 = vunpack.c.h.b16 %v1831
    %v3078 = vunpack.c.l.b16 %v1832
    %v3079 = vunpack.c.h.b16 %v1832
    %v3080 = vunpack.c.l.b16 %v1833
    %v3081 = vunpack.c.h.b16 %v1833
    %v3082 = vunpack.c.l.b16 %v1834
    %v3083 = vunpack.c.h.b16 %v1834
    %v3084 = vunpack.c.l.b16 %v1835
    %v3085 = vunpack.c.h.b16 %v1835
    %v3086 = vunpack.c.l.b16 %v1836
    %v3087 = vunpack.c.h.b16 %v1836
    %v3088 = vunpack.c.l.b16 %v1837
    %v3089 = vunpack.c.h.b16 %v1837
    %v3090 = vunpack.c.l.b16 %v1838
    %v3091 = vunpack.c.h.b16 %v1838
    %v3092 = vunpack.c.l.b16 %v1839
    %v3093 = vunpack.c.h.b16 %v1839
    %v3094 = vunpack.c.l.b16 %v1840
    %v3095 = vunpack.c.h.b16 %v1840
    %v3096 = vunpack.c.l.b16 %v1841
    %v3097 = vunpack.c.h.b16 %v1841
    %v3098 = vunpack.c.l.b16 %v1842
    %v3099 = vunpack.c.h.b16 %v1842
    %v3100 = vunpack.c.l.b16 %v1843
    %v3101 = vunpack.c.h.b16 %v1843
    %v3102 = vunpack.c.l.b16 %v1844
    %v3103 = vunpack.c.h.b16 %v1844
    %v3104 = vunpack.c.l.b16 %v1845
    %v3105 = vunpack.c.h.b16 %v1845
    %v3106 = vunpack.c.l.b16 %v1846
    %v3107 = vunpack.c.h.b16 %v1846
    %v3108 = vunpack.c.l.b16 %v1847
    %v3109 = vunpack.c.h.b16 %v1847
    %v3110 = vunpack.c.l.b16 %v1848
    %v3111 = vunpack.c.h.b16 %v1848
    %v3112 = vunpack.c.l.b16 %v1849
    %v3113 = vunpack.c.h.b16 %v1849
    %v3114 = vunpack.c.l.b16 %v1850
    %v3115 = vunpack.c.h.b16 %v1850
    %v3116 = vunpack.c.l.b16 %v1851
    %v3117 = vunpack.c.h.b16 %v1851
    %v3118 = vunpack.c.l.b16 %v1852
    %v3119 = vunpack.c.h.b16 %v1852
    %v3120 = vunpack.c.l.b16 %v1853
    %v3121 = vunpack.c.h.b16 %v1853
    %v3122 = vunpack.c.l.b16 %v1854
    %v3123 = vunpack.c.h.b16 %v1854
    %v3124 = vunpack.c.l.b16 %v1855
    %v3125 = vunpack.c.h.b16 %v1855
    %v3126 = vunpack.c.l.b16 %v1856
    %v3127 = vunpack.c.h.b16 %v1856
    %v3128 = vunpack.c.l.b16 %v1857
    %v3129 = vunpack.c.h.b16 %v1857
    %v3130 = vunpack.c.l.b16 %v1858
    %v3131 = vunpack.c.h.b16 %v1858
    %v3132 = vunpack.c.l.b16 %v1859
    %v3133 = vunpack.c.h.b16 %v1859
    %v3134 = vunpack.c.l.b16 %v1860
    %v3135 = vunpack.c.h.b16 %v1860
    %v3136 = vunpack.c.l.b16 %v1861
    %v3137 = vunpack.c.h.b16 %v1861
    %v3138 = vunpack.c.l.b16 %v1862
    %v3139 = vunpack.c.h.b16 %v1862
    %v3140 = vunpack.c.l.b16 %v1863
    %v3141 = vunpack.c.h.b16 %v1863
    %v3142 = vunpack.c.l.b16 %v1864
    %v3143 = vunpack.c.h.b16 %v1864
    %v3144 = vunpack.c.l.b16 %v1865
    %v3145 = vunpack.c.h.b16 %v1865
    %v3146 = vunpack.c.l.b16 %v1866
    %v3147 = vunpack.c.h.b16 %v1866
    %v3148 = vunpack.c.l.b16 %v1867
    %v3149 = vunpack.c.h.b16 %v1867
    %v3150 = vunpack.c.l.b16 %v1868
    %v3151 = vunpack.c.h.b16 %v1868
    %v3152 = vunpack.c.l.b16 %v1869
    %v3153 = vunpack.c.h.b16 %v1869
    %v3154 = vunpack.c.l.b16 %v1870
    %v3155 = vunpack.c.h.b16 %v1870
    %v3156 = vunpack.c.l.b16 %v1871
    %v3157 = vunpack.c.h.b16 %v1871
    %v3158 = vunpack.c.l.b16 %v1872
    %v3159 = vunpack.c.h.b16 %v1872
    %v3160 = vunpack.c.l.b16 %v1873
    %v3161 = vunpack.c.h.b16 %v1873
    %v3162 = vunpack.c.l.b16 %v1874
    %v3163 = vunpack.c.h.b16 %v1874
    %v3164 = vunpack.c.l.b16 %v1875
    %v3165 = vunpack.c.h.b16 %v1875
    %v3166 = vunpack.c.l.b16 %v1876
    %v3167 = vunpack.c.h.b16 %v1876
    %v3168 = vunpack.c.l.b16 %v1877
    %v3169 = vunpack.c.h.b16 %v1877
    %v3170 = vunpack.c.l.b16 %v1878
    %v3171 = vunpack.c.h.b16 %v1878
    %v3172 = vunpack.c.l.b16 %v1879
    %v3173 = vunpack.c.h.b16 %v1879
    %v3174 = vunpack.c.l.b16 %v1880
    %v3175 = vunpack.c.h.b16 %v1880
    %v3176 = vunpack.c.l.b16 %v1881
    %v3177 = vunpack.c.h.b16 %v1881
    %v3178 = vunpack.c.l.b16 %v1882
    %v3179 = vunpack.c.h.b16 %v1882
    %v3180 = vunpack.c.l.b16 %v1883
    %v3181 = vunpack.c.h.b16 %v1883
    %v3182 = vunpack.c.l.b16 %v1884
    %v3183 = vunpack.c.h.b16 %v1884
    %v3184 = vunpack.c.l.b16 %v1885
    %v3185 = vunpack.c.h.b16 %v1885
    %v3186 = vunpack.c.l.b16 %v1886
    %v3187 = vunpack.c.h.b16 %v1886
    %v3188 = vunpack.c.l.b16 %v1887
    %v3189 = vunpack.c.h.b16 %v1887
    %v3190 = vunpack.c.l.b16 %v1888
    %v3191 = vunpack.c.h.b16 %v1888
    %v3192 = vunpack.c.l.b16 %v1889
    %v3193 = vunpack.c.h.b16 %v1889
    %v3194 = vunpack.c.l.b16 %v1890
    %v3195 = vunpack.c.h.b16 %v1890
    %v3196 = vunpack.c.l.b16 %v1891
    %v3197 = vunpack.c.h.b16 %v1891
    %v3198 = vunpack.c.l.b16 %v1892
    %v3199 = vunpack.c.h.b16 %v1892
    %v3200 = vunpack.c.l.b16 %v1893
    %v3201 = vunpack.c.h.b16 %v1893
    %v3202 = vunpack.c.l.b16 %v1894
    %v3203 = vunpack.c.h.b16 %v1894
    %v3204 = vunpack.c.l.b16 %v1895
    %v3205 = vunpack.c.h.b16 %v1895
    %v3206 = vunpack.c.l.b16 %v1896
    %v3207 = vunpack.c.h.b16 %v1896
    %v3208 = vunpack.c.l.b16 %v1897
    %v3209 = vunpack.c.h.b16 %v1897
    %v3210 = vunpack.c.l.b16 %v1898
    %v3211 = vunpack.c.h.b16 %v1898
    %v3212 = vunpack.c.l.b16 %v1899
    %v3213 = vunpack.c.h.b16 %v1899
    %v3214 = vunpack.c.l.b16 %v1900
    %v3215 = vunpack.c.h.b16 %v1900
    %v3216 = vunpack.c.l.b16 %v1901
    %v3217 = vunpack.c.h.b16 %v1901
    %v3218 = vunpack.c.l.b16 %v1902
    %v3219 = vunpack.c.h.b16 %v1902
    %v3220 = vunpack.c.l.b16 %v1903
    %v3221 = vunpack.c.h.b16 %v1903
    %v3222 = vunpack.c.l.b16 %v1904
    %v3223 = vunpack.c.h.b16 %v1904
    %v3224 = vunpack.c.l.b16 %v1905
    %v3225 = vunpack.c.h.b16 %v1905
    %v3226 = vunpack.c.l.b16 %v1906
    %v3227 = vunpack.c.h.b16 %v1906
    %v3228 = vunpack.c.l.b16 %v1907
    %v3229 = vunpack.c.h.b16 %v1907
    %v3230 = vunpack.c.l.b16 %v1908
    %v3231 = vunpack.c.h.b16 %v1908
    %v3232 = vunpack.c.l.b16 %v1909
    %v3233 = vunpack.c.h.b16 %v1909
    %v3234 = vunpack.c.l.b16 %v1910
    %v3235 = vunpack.c.h.b16 %v1910
    %v3236 = vunpack.c.l.b16 %v1911
    %v3237 = vunpack.c.h.b16 %v1911
    %v3238 = vunpack.c.l.b16 %v1912
    %v3239 = vunpack.c.h.b16 %v1912
    %v3240 = vunpack.c.l.b16 %v1913
    %v3241 = vunpack.c.h.b16 %v1913
    %v3242 = vunpack.c.l.b16 %v1914
    %v3243 = vunpack.c.h.b16 %v1914
    %v3244 = vunpack.c.l.b16 %v1915
    %v3245 = vunpack.c.h.b16 %v1915
    %v3246 = vunpack.c.l.b16 %v1916
    %v3247 = vunpack.c.h.b16 %v1916
    %v3248 = vunpack.c.l.b16 %v1917
    %v3249 = vunpack.c.h.b16 %v1917
    %v3250 = vunpack.c.l.b16 %v1918
    %v3251 = vunpack.c.h.b16 %v1918
    %v3252 = vunpack.c.l.b16 %v1919
    %v3253 = vunpack.c.h.b16 %v1919
    %v3254 = vunpack.c.l.b16 %v1920
    %v3255 = vunpack.c.h.b16 %v1920
    %v3256 = vunpack.c.l.b16 %v1921
    %v3257 = vunpack.c.h.b16 %v1921
    %v3258 = vunpack.c.l.b16 %v1922
    %v3259 = vunpack.c.h.b16 %v1922
    %v3260 = vunpack.c.l.b16 %v1923
    %v3261 = vunpack.c.h.b16 %v1923
    %v3262 = vunpack.c.l.b16 %v1924
    %v3263 = vunpack.c.h.b16 %v1924
    %v3264 = vunpack.c.l.b16 %v1925
    %v3265 = vunpack.c.h.b16 %v1925
    %v3266 = vunpack.c.l.b16 %v1926
    %v3267 = vunpack.c.h.b16 %v1926
    %v3268 = vunpack.c.l.b16 %v1927
    %v3269 = vunpack.c.h.b16 %v1927
    %v3270 = vunpack.c.l.b16 %v1928
    %v3271 = vunpack.c.h.b16 %v1928
    %v3272 = vunpack.c.l.b16 %v1929
    %v3273 = vunpack.c.h.b16 %v1929
    %v3274 = vunpack.c.l.b16 %v1930
    %v3275 = vunpack.c.h.b16 %v1930
    %v3276 = vunpack.c.l.b16 %v1931
    %v3277 = vunpack.c.h.b16 %v1931
    %v3278 = vunpack.c.l.b16 %v1932
    %v3279 = vunpack.c.h.b16 %v1932
    %v3280 = vunpack.c.l.b16 %v1933
    %v3281 = vunpack.c.h.b16 %v1933
    %v3282 = vunpack.c.l.b16 %v1934
    %v3283 = vunpack.c.h.b16 %v1934
    %v3284 = vunpack.c.l.b16 %v1935
    %v3285 = vunpack.c.h.b16 %v1935
    %v3286 = vunpack.c.l.b16 %v1936
    %v3287 = vunpack.c.h.b16 %v1936
    %v3288 = vunpack.c.l.b16 %v1937
    %v3289 = vunpack.c.h.b16 %v1937
    %v3290 = vunpack.c.l.b16 %v1938
    %v3291 = vunpack.c.h.b16 %v1938
    %v3292 = vunpack.c.l.b16 %v1939
    %v3293 = vunpack.c.h.b16 %v1939
    %v3294 = vunpack.c.l.b16 %v1940
    %v3295 = vunpack.c.h.b16 %v1940
    %v3296 = vunpack.c.l.b16 %v1941
    %v3297 = vunpack.c.h.b16 %v1941
    %v3298 = vunpack.c.l.b16 %v1942
    %v3299 = vunpack.c.h.b16 %v1942
    %v3300 = vunpack.c.l.b16 %v1943
    %v3301 = vunpack.c.h.b16 %v1943
    %v3302 = vunpack.c.l.b16 %v1944
    %v3303 = vunpack.c.h.b16 %v1944
    %v3304 = vunpack.c.l.b16 %v1945
    %v3305 = vunpack.c.h.b16 %v1945
    %v3306 = vunpack.c.l.b16 %v1946
    %v3307 = vunpack.c.h.b16 %v1946
    %v3308 = vunpack.c.l.b16 %v1947
    %v3309 = vunpack.c.h.b16 %v1947
    %v3310 = vunpack.c.l.b16 %v1948
    %v3311 = vunpack.c.h.b16 %v1948
    %v3312 = vunpack.c.l.b16 %v1949
    %v3313 = vunpack.c.h.b16 %v1949
    %v3314 = vunpack.c.l.b16 %v1950
    %v3315 = vunpack.c.h.b16 %v1950
    %v3316 = vunpack.c.l.b16 %v1951
    %v3317 = vunpack.c.h.b16 %v1951
    %v3318 = vunpack.c.l.b16 %v1952
    %v3319 = vunpack.c.h.b16 %v1952
    %v3320 = vunpack.c.l.b16 %v1953
    %v3321 = vunpack.c.h.b16 %v1953
    %v3322 = vunpack.c.l.b16 %v1954
    %v3323 = vunpack.c.h.b16 %v1954
    %v3324 = vunpack.c.l.b16 %v1955
    %v3325 = vunpack.c.h.b16 %v1955
    %v3326 = vunpack.c.l.b16 %v1956
    %v3327 = vunpack.c.h.b16 %v1956
    %v3328 = vunpack.c.l.b16 %v1957
    %v3329 = vunpack.c.h.b16 %v1957
    %v3330 = vunpack.c.l.b16 %v1958
    %v3331 = vunpack.c.h.b16 %v1958
    %v3332 = vunpack.c.l.b16 %v1959
    %v3333 = vunpack.c.h.b16 %v1959
    %v3334 = vunpack.c.l.b16 %v1960
    %v3335 = vunpack.c.h.b16 %v1960
    %v3336 = vunpack.c.l.b16 %v1961
    %v3337 = vunpack.c.h.b16 %v1961
    %v3338 = vunpack.c.l.b16 %v1962
    %v3339 = vunpack.c.h.b16 %v1962
    %v3340 = vunpack.c.l.b16 %v1963
    %v3341 = vunpack.c.h.b16 %v1963
    %v3342 = vunpack.c.l.b16 %v1964
    %v3343 = vunpack.c.h.b16 %v1964
    %v3344 = vunpack.c.l.b16 %v1965
    %v3345 = vunpack.c.h.b16 %v1965
    %v3346 = vunpack.c.l.b16 %v1966
    %v3347 = vunpack.c.h.b16 %v1966
    %v3348 = vunpack.c.l.b16 %v1967
    %v3349 = vunpack.c.h.b16 %v1967
    %v3350 = vunpack.c.l.b16 %v1968
    %v3351 = vunpack.c.h.b16 %v1968
    %v3352 = vunpack.c.l.b16 %v1969
    %v3353 = vunpack.c.h.b16 %v1969
    %v3354 = vunpack.c.l.b16 %v1970
    %v3355 = vunpack.c.h.b16 %v1970
    %v3356 = vunpack.c.l.b16 %v1971
    %v3357 = vunpack.c.h.b16 %v1971
    %v3358 = vunpack.c.l.b16 %v1972
    %v3359 = vunpack.c.h.b16 %v1972
    %v3360 = vunpack.c.l.b16 %v1973
    %v3361 = vunpack.c.h.b16 %v1973
    %v3362 = vunpack.c.l.b16 %v1974
    %v3363 = vunpack.c.h.b16 %v1974
    %v3364 = vunpack.c.l.b16 %v1975
    %v3365 = vunpack.c.h.b16 %v1975
    %v3366 = vunpack.c.l.b16 %v1976
    %v3367 = vunpack.c.h.b16 %v1976
    %v3368 = vunpack.c.l.b16 %v1977
    %v3369 = vunpack.c.h.b16 %v1977
    %v3370 = vunpack.c.l.b16 %v1978
    %v3371 = vunpack.c.h.b16 %v1978
    %v3372 = vunpack.c.l.b16 %v1979
    %v3373 = vunpack.c.h.b16 %v1979
    %v3374 = vunpack.c.l.b16 %v1980
    %v3375 = vunpack.c.h.b16 %v1980
    %v3376 = vunpack.c.l.b16 %v1981
    %v3377 = vunpack.c.h.b16 %v1981
    %v3378 = vunpack.c.l.b16 %v1982
    %v3379 = vunpack.c.h.b16 %v1982
    %v3380 = vunpack.c.l.b16 %v1983
    %v3381 = vunpack.c.h.b16 %v1983
    %v3382 = vunpack.c.l.b16 %v1984
    %v3383 = vunpack.c.h.b16 %v1984
    %v3384 = vunpack.c.l.b16 %v1985
    %v3385 = vunpack.c.h.b16 %v1985
    %v3386 = vunpack.c.l.b16 %v1986
    %v3387 = vunpack.c.h.b16 %v1986
    %v3388 = vunpack.c.l.b16 %v1987
    %v3389 = vunpack.c.h.b16 %v1987
    %v3390 = vunpack.c.l.b16 %v1988
    %v3391 = vunpack.c.h.b16 %v1988
    %v3392 = vunpack.c.l.b16 %v1989
    %v3393 = vunpack.c.h.b16 %v1989
    %v3394 = vunpack.c.l.b16 %v1990
    %v3395 = vunpack.c.h.b16 %v1990
    %v3396 = vunpack.c.l.b16 %v1991
    %v3397 = vunpack.c.h.b16 %v1991
    %v3398 = vunpack.c.l.b16 %v1992
    %v3399 = vunpack.c.h.b16 %v1992
    %v3400 = vunpack.c.l.b16 %v1993
    %v3401 = vunpack.c.h.b16 %v1993
    %v3402 = vunpack.c.l.b16 %v1994
    %v3403 = vunpack.c.h.b16 %v1994
    %v3404 = vunpack.c.l.b16 %v1995
    %v3405 = vunpack.c.h.b16 %v1995
    %v3406 = vunpack.c.l.b16 %v1996
    %v3407 = vunpack.c.h.b16 %v1996
    %v3408 = vunpack.c.l.b16 %v1997
    %v3409 = vunpack.c.h.b16 %v1997
    %v3410 = vunpack.c.l.b16 %v1998
    %v3411 = vunpack.c.h.b16 %v1998
    %v3412 = vunpack.c.l.b16 %v1999
    %v3413 = vunpack.c.h.b16 %v1999
    %v3414 = vunpack.c.l.b16 %v2000
    %v3415 = vunpack.c.h.b16 %v2000
    %v3416 = vunpack.c.l.b16 %v2001
    %v3417 = vunpack.c.h.b16 %v2001
    %v3418 = vunpack.c.l.b16 %v2002
    %v3419 = vunpack.c.h.b16 %v2002
    %v3420 = vunpack.c.l.b16 %v2003
    %v3421 = vunpack.c.h.b16 %v2003
    %v3422 = vunpack.c.l.b16 %v2004
    %v3423 = vunpack.c.h.b16 %v2004
    %v3424 = vunpack.c.l.b16 %v2005
    %v3425 = vunpack.c.h.b16 %v2005
    %v3426 = vunpack.c.l.b16 %v2006
    %v3427 = vunpack.c.h.b16 %v2006
    %v3428 = vunpack.c.l.b16 %v2007
    %v3429 = vunpack.c.h.b16 %v2007
    %v3430 = vunpack.c.l.b16 %v2008
    %v3431 = vunpack.c.h.b16 %v2008
    %v3432 = vunpack.c.l.b16 %v2009
    %v3433 = vunpack.c.h.b16 %v2009
    %v3434 = vunpack.c.l.b16 %v2010
    %v3435 = vunpack.c.h.b16 %v2010
    %v3436 = vunpack.c.l.b16 %v2011
    %v3437 = vunpack.c.h.b16 %v2011
    %v3438 = vunpack.c.l.b16 %v2012
    %v3439 = vunpack.c.h.b16 %v2012
    %v3440 = vunpack.c.l.b16 %v2013
    %v3441 = vunpack.c.h.b16 %v2013
    %v3442 = vunpack.c.l.b16 %v2014
    %v3443 = vunpack.c.h.b16 %v2014
    %v3444 = vunpack.c.l.b16 %v2015
    %v3445 = vunpack.c.h.b16 %v2015
    %v3446 = vunpack.c.l.b16 %v2016
    %v3447 = vunpack.c.h.b16 %v2016
    %v3448 = vunpack.c.l.b16 %v2017
    %v3449 = vunpack.c.h.b16 %v2017
    %v3450 = vunpack.c.l.b16 %v2018
    %v3451 = vunpack.c.h.b16 %v2018
    %v3452 = vunpack.c.l.b16 %v2019
    %v3453 = vunpack.c.h.b16 %v2019
    %v3454 = vunpack.c.l.b16 %v2020
    %v3455 = vunpack.c.h.b16 %v2020
    %v3456 = vunpack.c.l.b16 %v2021
    %v3457 = vunpack.c.h.b16 %v2021
    %v3458 = vunpack.c.l.b16 %v2022
    %v3459 = vunpack.c.h.b16 %v2022
    %v3460 = vunpack.c.l.b16 %v2023
    %v3461 = vunpack.c.h.b16 %v2023
    %v3462 = vunpack.c.l.b16 %v2024
    %v3463 = vunpack.c.h.b16 %v2024
    %v3464 = vunpack.c.l.b16 %v2025
    %v3465 = vunpack.c.h.b16 %v2025
    %v3466 = vunpack.c.l.b16 %v2026
    %v3467 = vunpack.c.h.b16 %v2026
    %v3468 = vunpack.c.l.b16 %v2027
    %v3469 = vunpack.c.h.b16 %v2027
    %v3470 = vunpack.c.l.b16 %v2028
    %v3471 = vunpack.c.h.b16 %v2028
    %v3472 = vunpack.c.l.b16 %v2029
    %v3473 = vunpack.c.h.b16 %v2029
    %v3474 = vunpack.c.l.b16 %v2030
    %v3475 = vunpack.c.h.b16 %v2030
    %v3476 = vunpack.c.l.b16 %v2031
    %v3477 = vunpack.c.h.b16 %v2031
    %v3478 = vunpack.c.l.b16 %v2032
    %v3479 = vunpack.c.h.b16 %v2032
    %v3480 = vunpack.c.l.b16 %v2033
    %v3481 = vunpack.c.h.b16 %v2033
    %v3482 = vunpack.c.l.b16 %v2034
    %v3483 = vunpack.c.h.b16 %v2034
    %v3484 = vunpack.c.l.b16 %v2035
    %v3485 = vunpack.c.h.b16 %v2035
    %v3486 = vunpack.c.l.b16 %v2036
    %v3487 = vunpack.c.h.b16 %v2036
    %v3488 = vunpack.c.l.b16 %v2037
    %v3489 = vunpack.c.h.b16 %v2037
    %v3490 = vunpack.c.l.b16 %v2038
    %v3491 = vunpack.c.h.b16 %v2038
    %v3492 = vunpack.c.l.b16 %v2039
    %v3493 = vunpack.c.h.b16 %v2039
    %v3494 = vunpack.c.l.b16 %v2040
    %v3495 = vunpack.c.h.b16 %v2040
    %v3496 = vunpack.c.l.b16 %v2041
    %v3497 = vunpack.c.h.b16 %v2041
    %v3498 = vunpack.c.l.b16 %v2042
    %v3499 = vunpack.c.h.b16 %v2042
    %v3500 = vunpack.c.l.b16 %v2043
    %v3501 = vunpack.c.h.b16 %v2043
    %v3502 = vunpack.c.l.b16 %v2044
    %v3503 = vunpack.c.h.b16 %v2044
    %v3504 = vunpack.c.l.b16 %v2045
    %v3505 = vunpack.c.h.b16 %v2045
    %v3506 = vunpack.c.l.b16 %v2046
    %v3507 = vunpack.c.h.b16 %v2046
    %v3508 = vunpack.c.l.b16 %v2047
    %v3509 = vunpack.c.h.b16 %v2047
    %v3510 = vunpack.c.l.b16 %v2048
    %v3511 = vunpack.c.h.b16 %v2048
    %v3512 = vunpack.c.l.b16 %v2049
    %v3513 = vunpack.c.h.b16 %v2049
    %v3514 = vunpack.c.l.b16 %v2050
    %v3515 = vunpack.c.h.b16 %v2050
    %v3516 = vunpack.c.l.b16 %v2051
    %v3517 = vunpack.c.h.b16 %v2051
    %v3518 = vunpack.c.l.b16 %v2052
    %v3519 = vunpack.c.h.b16 %v2052
    %v3520 = vunpack.c.l.b16 %v2053
    %v3521 = vunpack.c.h.b16 %v2053
    %v3522 = vunpack.c.l.b16 %v2054
    %v3523 = vunpack.c.h.b16 %v2054
    %v3524 = vunpack.c.l.b16 %v2055
    %v3525 = vunpack.c.h.b16 %v2055
    %v3526 = vunpack.c.l.b16 %v2056
    %v3527 = vunpack.c.h.b16 %v2056
    %v3528 = vunpack.c.l.b16 %v2057
    %v3529 = vunpack.c.h.b16 %v2057
    %v3530 = vunpack.c.l.b16 %v2058
    %v3531 = vunpack.c.h.b16 %v2058
    %v3532 = vunpack.c.l.b16 %v2059
    %v3533 = vunpack.c.h.b16 %v2059
    %v3534 = vunpack.c.l.b16 %v2060
    %v3535 = vunpack.c.h.b16 %v2060
    %v3536 = vunpack.c.l.b16 %v2061
    %v3537 = vunpack.c.h.b16 %v2061
    %v3538 = vunpack.c.l.b16 %v2062
    %v3539 = vunpack.c.h.b16 %v2062
    %v3540 = vunpack.c.l.b16 %v2063
    %v3541 = vunpack.c.h.b16 %v2063
    %v3542 = vunpack.c.l.b16 %v2064
    %v3543 = vunpack.c.h.b16 %v2064
    %v3544 = vunpack.c.l.b16 %v2065
    %v3545 = vunpack.c.h.b16 %v2065
    %v3546 = vunpack.c.l.b16 %v2066
    %v3547 = vunpack.c.h.b16 %v2066
    %v3548 = vunpack.c.l.b16 %v2067
    %v3549 = vunpack.c.h.b16 %v2067
    %v3550 = vunpack.c.l.b16 %v2068
    %v3551 = vunpack.c.h.b16 %v2068
    %v3552 = vunpack.c.l.b16 %v2069
    %v3553 = vunpack.c.h.b16 %v2069
    %v3554 = vunpack.c.l.b16 %v2070
    %v3555 = vunpack.c.h.b16 %v2070
    %v3556 = vunpack.c.l.b16 %v2071
    %v3557 = vunpack.c.h.b16 %v2071
    %v3558 = vunpack.c.l.b16 %v2072
    %v3559 = vunpack.c.h.b16 %v2072
    %v3560 = vunpack.c.l.b16 %v2073
    %v3561 = vunpack.c.h.b16 %v2073
    %v3562 = vunpack.c.l.b16 %v2074
    %v3563 = vunpack.c.h.b16 %v2074
    %v3564 = vunpack.c.l.b16 %v2075
    %v3565 = vunpack.c.h.b16 %v2075
    %v3566 = vunpack.c.l.b16 %v2076
    %v3567 = vunpack.c.h.b16 %v2076
    %v3568 = vunpack.c.l.b16 %v2077
    %v3569 = vunpack.c.h.b16 %v2077
    %v3570 = vunpack.c.l.b16 %v2078
    %v3571 = vunpack.c.h.b16 %v2078
    %v3572 = vunpack.c.l.b16 %v2079
    %v3573 = vunpack.c.h.b16 %v2079
    %v3574 = vunpack.c.l.b16 %v2080
    %v3575 = vunpack.c.h.b16 %v2080
    %v3576 = vunpack.c.l.b16 %v2081
    %v3577 = vunpack.c.h.b16 %v2081
    %v3578 = vunpack.c.l.b16 %v2082
    %v3579 = vunpack.c.h.b16 %v2082
    %v3580 = vunpack.c.l.b16 %v2083
    %v3581 = vunpack.c.h.b16 %v2083
    %v3582 = vunpack.c.l.b16 %v2084
    %v3583 = vunpack.c.h.b16 %v2084
    %v3584 = vunpack.c.l.b16 %v2085
    %v3585 = vunpack.c.h.b16 %v2085
    %v3586 = vunpack.c.l.b16 %v2086
    %v3587 = vunpack.c.h.b16 %v2086
    %v3588 = vunpack.c.l.b16 %v2087
    %v3589 = vunpack.c.h.b16 %v2087
    %v3590 = vunpack.c.l.b16 %v2088
    %v3591 = vunpack.c.h.b16 %v2088
    %v3592 = vunpack.c.l.b16 %v2089
    %v3593 = vunpack.c.h.b16 %v2089
    %v3594 = vunpack.c.l.b16 %v2090
    %v3595 = vunpack.c.h.b16 %v2090
    %v3596 = vunpack.c.l.b16 %v2091
    %v3597 = vunpack.c.h.b16 %v2091
    %v3598 = vunpack.c.l.b16 %v2092
    %v3599 = vunpack.c.h.b16 %v2092
    %v3600 = vunpack.c.l.b16 %v2093
    %v3601 = vunpack.c.h.b16 %v2093
    %v3602 = vunpack.c.l.b16 %v2094
    %v3603 = vunpack.c.h.b16 %v2094
    %v3604 = vunpack.c.l.b16 %v2095
    %v3605 = vunpack.c.h.b16 %v2095
    %v3606 = vunpack.c.l.b16 %v2096
    %v3607 = vunpack.c.h.b16 %v2096
    %v3608 = vunpack.c.l.b16 %v2097
    %v3609 = vunpack.c.h.b16 %v2097
    %v3610 = vunpack.c.l.b16 %v2098
    %v3611 = vunpack.c.h.b16 %v2098
    %v3612 = vunpack.c.l.b16 %v2099
    %v3613 = vunpack.c.h.b16 %v2099
    %v3614 = vunpack.c.l.b16 %v2100
    %v3615 = vunpack.c.h.b16 %v2100
    %v3616 = vunpack.c.l.b16 %v2101
    %v3617 = vunpack.c.h.b16 %v2101
    %v3618 = vunpack.c.l.b16 %v2102
    %v3619 = vunpack.c.h.b16 %v2102
    %v3620 = vunpack.c.l.b16 %v2103
    %v3621 = vunpack.c.h.b16 %v2103
    %v3622 = vunpack.c.l.b16 %v2104
    %v3623 = vunpack.c.h.b16 %v2104
    %v3624 = vunpack.c.l.b16 %v2105
    %v3625 = vunpack.c.h.b16 %v2105
    %v3626 = vunpack.c.l.b16 %v2106
    %v3627 = vunpack.c.h.b16 %v2106
    %v3628 = vunpack.c.l.b16 %v2107
    %v3629 = vunpack.c.h.b16 %v2107
    %v3630 = vunpack.c.l.b16 %v2108
    %v3631 = vunpack.c.h.b16 %v2108
    %v3632 = vunpack.c.l.b16 %v2109
    %v3633 = vunpack.c.h.b16 %v2109
    %v3634 = vunpack.c.l.b16 %v2110
    %v3635 = vunpack.c.h.b16 %v2110
    %v3636 = vunpack.c.l.b16 %v2111
    %v3637 = vunpack.c.h.b16 %v2111
    %v3638 = vunpack.c.l.b16 %v2112
    %v3639 = vunpack.c.h.b16 %v2112
    %v3640 = vunpack.c.l.b16 %v2113
    %v3641 = vunpack.c.h.b16 %v2113
    %v3642 = vunpack.c.l.b16 %v2114
    %v3643 = vunpack.c.h.b16 %v2114
    %v3644 = vunpack.c.l.b16 %v2115
    %v3645 = vunpack.c.h.b16 %v2115
    %v3646 = vunpack.c.l.b16 %v2116
    %v3647 = vunpack.c.h.b16 %v2116
    %v3648 = vunpack.c.l.b16 %v2117
    %v3649 = vunpack.c.h.b16 %v2117
    %v3650 = vunpack.c.l.b16 %v2118
    %v3651 = vunpack.c.h.b16 %v2118
    %v3652 = vunpack.c.l.b16 %v2119
    %v3653 = vunpack.c.h.b16 %v2119
    %v3654 = vunpack.c.l.b16 %v2120
    %v3655 = vunpack.c.h.b16 %v2120
    %v3656 = vunpack.c.l.b16 %v2121
    %v3657 = vunpack.c.h.b16 %v2121
    %v3658 = vunpack.c.l.b16 %v2122
    %v3659 = vunpack.c.h.b16 %v2122
    %v3660 = vunpack.c.l.b16 %v2123
    %v3661 = vunpack.c.h.b16 %v2123
    %v3662 = vunpack.c.l.b16 %v2124
    %v3663 = vunpack.c.h.b16 %v2124
    %v3664 = vunpack.c.l.b16 %v2125
    %v3665 = vunpack.c.h.b16 %v2125
    %v3666 = vunpack.c.l.b16 %v2126
    %v3667 = vunpack.c.h.b16 %v2126
    %v3668 = vunpack.c.l.b16 %v2127
    %v3669 = vunpack.c.h.b16 %v2127
    %v3670 = vunpack.c.l.b16 %v2128
    %v3671 = vunpack.c.h.b16 %v2128
    %v3672 = vunpack.c.l.b16 %v2129
    %v3673 = vunpack.c.h.b16 %v2129
    %v3674 = vunpack.c.l.b16 %v2130
    %v3675 = vunpack.c.h.b16 %v2130
    %v3676 = vunpack.c.l.b16 %v2131
    %v3677 = vunpack.c.h.b16 %v2131
    %v3678 = vunpack.c.l.b16 %v2132
    %v3679 = vunpack.c.h.b16 %v2132
    %v3680 = vunpack.c.l.b16 %v2133
    %v3681 = vunpack.c.h.b16 %v2133
    %v3682 = vunpack.c.l.b16 %v2134
    %v3683 = vunpack.c.h.b16 %v2134
    %v3684 = vunpack.c.l.b16 %v2135
    %v3685 = vunpack.c.h.b16 %v2135
    %v3686 = vunpack.c.l.b16 %v2136
    %v3687 = vunpack.c.h.b16 %v2136
    %v3688 = vunpack.c.l.b16 %v2137
    %v3689 = vunpack.c.h.b16 %v2137
    %v3690 = vunpack.c.l.b16 %v2138
    %v3691 = vunpack.c.h.b16 %v2138
    %v3692 = vunpack.c.l.b16 %v2139
    %v3693 = vunpack.c.h.b16 %v2139
    %v3694 = vunpack.c.l.b16 %v2140
    %v3695 = vunpack.c.h.b16 %v2140
    %v3696 = vunpack.c.l.b16 %v2141
    %v3697 = vunpack.c.h.b16 %v2141
    %v3698 = vunpack.c.l.b16 %v2142
    %v3699 = vunpack.c.h.b16 %v2142
    %v3700 = vunpack.c.l.b16 %v2143
    %v3701 = vunpack.c.h.b16 %v2143
    %v3702 = vunpack.c.l.b16 %v2144
    %v3703 = vunpack.c.h.b16 %v2144
    %v3704 = vunpack.c.l.b16 %v2145
    %v3705 = vunpack.c.h.b16 %v2145
    %v3706 = vunpack.c.l.b16 %v2146
    %v3707 = vunpack.c.h.b16 %v2146
    %v3708 = vunpack.c.l.b16 %v2147
    %v3709 = vunpack.c.h.b16 %v2147
    %v3710 = vunpack.c.l.b16 %v2148
    %v3711 = vunpack.c.h.b16 %v2148
    %v3712 = vunpack.c.l.b16 %v2149
    %v3713 = vunpack.c.h.b16 %v2149
    %v3714 = vunpack.c.l.b16 %v2150
    %v3715 = vunpack.c.h.b16 %v2150
    %v3716 = vunpack.c.l.b16 %v2151
    %v3717 = vunpack.c.h.b16 %v2151
    %v3718 = vunpack.c.l.b16 %v2152
    %v3719 = vunpack.c.h.b16 %v2152
    %v3720 = vunpack.c.l.b16 %v2153
    %v3721 = vunpack.c.h.b16 %v2153
    %v3722 = vunpack.c.l.b16 %v2154
    %v3723 = vunpack.c.h.b16 %v2154
    %v3724 = vunpack.c.l.b16 %v2155
    %v3725 = vunpack.c.h.b16 %v2155
    %v3726 = vunpack.c.l.b16 %v2156
    %v3727 = vunpack.c.h.b16 %v2156
    %v3728 = vunpack.c.l.b16 %v2157
    %v3729 = vunpack.c.h.b16 %v2157
    %v3730 = vunpack.c.l.b16 %v2158
    %v3731 = vunpack.c.h.b16 %v2158
    %v3732 = vunpack.c.l.b16 %v2159
    %v3733 = vunpack.c.h.b16 %v2159
    %v3734 = vunpack.c.l.b16 %v2160
    %v3735 = vunpack.c.h.b16 %v2160
    %v3736 = vunpack.c.l.b16 %v2161
    %v3737 = vunpack.c.h.b16 %v2161
    %v3738 = vunpack.c.l.b16 %v2162
    %v3739 = vunpack.c.h.b16 %v2162
    %v3740 = vunpack.c.l.b16 %v2163
    %v3741 = vunpack.c.h.b16 %v2163
    %v3742 = vpack.c.b16 %v2726, %v2718
    %v3743 = vpack.c.b16 %v2727, %v2719
    %v3744 = vpack.c.b16 %v2728, %v2720
    %v3745 = vpack.c.b16 %v2729, %v2721
    %v3746 = vpack.c.b16 %v2730, %v2722
    %v3747 = vpack.c.b16 %v2731, %v2723
    %v3748 = vpack.c.b16 %v2732, %v2724
    %v3749 = vpack.c.b16 %v2733, %v2725
    %v3750 = vpack.c.b16 %v2742, %v2734
    %v3751 = vpack.c.b16 %v2743, %v2735
    %v3752 = vpack.c.b16 %v2744, %v2736
    %v3753 = vpack.c.b16 %v2745, %v2737
    %v3754 = vpack.c.b16 %v2746, %v2738
    %v3755 = vpack.c.b16 %v2747, %v2739
    %v3756 = vpack.c.b16 %v2748, %v2740
    %v3757 = vpack.c.b16 %v2749, %v2741
    %v3758 = vpack.c.b16 %v2758, %v2750
    %v3759 = vpack.c.b16 %v2759, %v2751
    %v3760 = vpack.c.b16 %v2760, %v2752
    %v3761 = vpack.c.b16 %v2761, %v2753
    %v3762 = vpack.c.b16 %v2762, %v2754
    %v3763 = vpack.c.b16 %v2763, %v2755
    %v3764 = vpack.c.b16 %v2764, %v2756
    %v3765 = vpack.c.b16 %v2765, %v2757
    %v3766 = vpack.c.b16 %v2774, %v2766
    %v3767 = vpack.c.b16 %v2775, %v2767
    %v3768 = vpack.c.b16 %v2776, %v2768
    %v3769 = vpack.c.b16 %v2777, %v2769
    %v3770 = vpack.c.b16 %v2778, %v2770
    %v3771 = vpack.c.b16 %v2779, %v2771
    %v3772 = vpack.c.b16 %v2780, %v2772
    %v3773 = vpack.c.b16 %v2781, %v2773
    %v3774 = vpack.c.b16 %v2790, %v2782
    %v3775 = vpack.c.b16 %v2791, %v2783
    %v3776 = vpack.c.b16 %v2792, %v2784
    %v3777 = vpack.c.b16 %v2793, %v2785
    %v3778 = vpack.c.b16 %v2794, %v2786
    %v3779 = vpack.c.b16 %v2795, %v2787
    %v3780 = vpack.c.b16 %v2796, %v2788
    %v3781 = vpack.c.b16 %v2797, %v2789
    %v3782 = vpack.c.b16 %v2806, %v2798
    %v3783 = vpack.c.b16 %v2807, %v2799
    %v3784 = vpack.c.b16 %v2808, %v2800
    %v3785 = vpack.c.b16 %v2809, %v2801
    %v3786 = vpack.c.b16 %v2810, %v2802
    %v3787 = vpack.c.b16 %v2811, %v2803
    %v3788 = vpack.c.b16 %v2812, %v2804
    %v3789 = vpack.c.b16 %v2813, %v2805
    %v3790 = vpack.c.b16 %v2822, %v2814
    %v3791 = vpack.c.b16 %v2823, %v2815
    %v3792 = vpack.c.b16 %v2824, %v2816
    %v3793 = vpack.c.b16 %v2825, %v2817
    %v3794 = vpack.c.b16 %v2826, %v2818
    %v3795 = vpack.c.b16 %v2827, %v2819
    %v3796 = vpack.c.b16 %v2828, %v2820
    %v3797 = vpack.c.b16 %v2829, %v2821
    %v3798 = vpack.c.b16 %v2838, %v2830
    %v3799 = vpack.c.b16 %v2839, %v2831
    %v3800 = vpack.c.b16 %v2840, %v2832
    %v3801 = vpack.c.b16 %v2841, %v2833
    %v3802 = vpack.c.b16 %v2842, %v2834
    %v3803 = vpack.c.b16 %v2843, %v2835
    %v3804 = vpack.c.b16 %v2844, %v2836
    %v3805 = vpack.c.b16 %v2845, %v2837
    %v3806 = vpack.c.b16 %v2854, %v2846
    %v3807 = vpack.c.b16 %v2855, %v2847
    %v3808 = vpack.c.b16 %v2856, %v2848
    %v3809 = vpack.c.b16 %v2857, %v2849
    %v3810 = vpack.c.b16 %v2858, %v2850
    %v3811 = vpack.c.b16 %v2859, %v2851
    %v3812 = vpack.c.b16 %v2860, %v2852
    %v3813 = vpack.c.b16 %v2861, %v2853
    %v3814 = vpack.c.b16 %v2870, %v2862
    %v3815 = vpack.c.b16 %v2871, %v2863
    %v3816 = vpack.c.b16 %v2872, %v2864
    %v3817 = vpack.c.b16 %v2873, %v2865
    %v3818 = vpack.c.b16 %v2874, %v2866
    %v3819 = vpack.c.b16 %v2875, %v2867
    %v3820 = vpack.c.b16 %v2876, %v2868
    %v3821 = vpack.c.b16 %v2877, %v2869
    %v3822 = vpack.c.b16 %v2886, %v2878
    %v3823 = vpack.c.b16 %v2887, %v2879
    %v3824 = vpack.c.b16 %v2888, %v2880
    %v3825 = vpack.c.b16 %v2889, %v2881
    %v3826 = vpack.c.b16 %v2890, %v2882
    %v3827 = vpack.c.b16 %v2891, %v2883
    %v3828 = vpack.c.b16 %v2892, %v2884
    %v3829 = vpack.c.b16 %v2893, %v2885
    %v3830 = vpack.c.b16 %v2902, %v2894
    %v3831 = vpack.c.b16 %v2903, %v2895
    %v3832 = vpack.c.b16 %v2904, %v2896
    %v3833 = vpack.c.b16 %v2905, %v2897
    %v3834 = vpack.c.b16 %v2906, %v2898
    %v3835 = vpack.c.b16 %v2907, %v2899
    %v3836 = vpack.c.b16 %v2908, %v2900
    %v3837 = vpack.c.b16 %v2909, %v2901
    %v3838 = vpack.c.b16 %v2918, %v2910
    %v3839 = vpack.c.b16 %v2919, %v2911
    %v3840 = vpack.c.b16 %v2920, %v2912
    %v3841 = vpack.c.b16 %v2921, %v2913
    %v3842 = vpack.c.b16 %v2922, %v2914
    %v3843 = vpack.c.b16 %v2923, %v2915
    %v3844 = vpack.c.b16 %v2924, %v2916
    %v3845 = vpack.c.b16 %v2925, %v2917
    %v3846 = vpack.c.b16 %v2934, %v2926
    %v3847 = vpack.c.b16 %v2935, %v2927
    %v3848 = vpack.c.b16 %v2936, %v2928
    %v3849 = vpack.c.b16 %v2937, %v2929
    %v3850 = vpack.c.b16 %v2938, %v2930
    %v3851 = vpack.c.b16 %v2939, %v2931
    %v3852 = vpack.c.b16 %v2940, %v2932
    %v3853 = vpack.c.b16 %v2941, %v2933
    %v3854 = vpack.c.b16 %v2950, %v2942
    %v3855 = vpack.c.b16 %v2951, %v2943
    %v3856 = vpack.c.b16 %v2952, %v2944
    %v3857 = vpack.c.b16 %v2953, %v2945
    %v3858 = vpack.c.b16 %v2954, %v2946
    %v3859 = vpack.c.b16 %v2955, %v2947
    %v3860 = vpack.c.b16 %v2956, %v2948
    %v3861 = vpack.c.b16 %v2957, %v2949
    %v3862 = vpack.c.b16 %v2966, %v2958
    %v3863 = vpack.c.b16 %v2967, %v2959
    %v3864 = vpack.c.b16 %v2968, %v2960
    %v3865 = vpack.c.b16 %v2969, %v2961
    %v3866 = vpack.c.b16 %v2970, %v2962
    %v3867 = vpack.c.b16 %v2971, %v2963
    %v3868 = vpack.c.b16 %v2972, %v2964
    %v3869 = vpack.c.b16 %v2973, %v2965
    %v3870 = vpack.c.b16 %v2982, %v2974
    %v3871 = vpack.c.b16 %v2983, %v2975
    %v3872 = vpack.c.b16 %v2984, %v2976
    %v3873 = vpack.c.b16 %v2985, %v2977
    %v3874 = vpack.c.b16 %v2986, %v2978
    %v3875 = vpack.c.b16 %v2987, %v2979
    %v3876 = vpack.c.b16 %v2988, %v2980
    %v3877 = vpack.c.b16 %v2989, %v2981
    %v3878 = vpack.c.b16 %v2998, %v2990
    %v3879 = vpack.c.b16 %v2999, %v2991
    %v3880 = vpack.c.b16 %v3000, %v2992
    %v3881 = vpack.c.b16 %v3001, %v2993
    %v3882 = vpack.c.b16 %v3002, %v2994
    %v3883 = vpack.c.b16 %v3003, %v2995
    %v3884 = vpack.c.b16 %v3004, %v2996
    %v3885 = vpack.c.b16 %v3005, %v2997
    %v3886 = vpack.c.b16 %v3014, %v3006
    %v3887 = vpack.c.b16 %v3015, %v3007
    %v3888 = vpack.c.b16 %v3016, %v3008
    %v3889 = vpack.c.b16 %v3017, %v3009
    %v3890 = vpack.c.b16 %v3018, %v3010
    %v3891 = vpack.c.b16 %v3019, %v3011
    %v3892 = vpack.c.b16 %v3020, %v3012
    %v3893 = vpack.c.b16 %v3021, %v3013
    %v3894 = vpack.c.b16 %v3030, %v3022
    %v3895 = vpack.c.b16 %v3031, %v3023
    %v3896 = vpack.c.b16 %v3032, %v3024
    %v3897 = vpack.c.b16 %v3033, %v3025
    %v3898 = vpack.c.b16 %v3034, %v3026
    %v3899 = vpack.c.b16 %v3035, %v3027
    %v3900 = vpack.c.b16 %v3036, %v3028
    %v3901 = vpack.c.b16 %v3037, %v3029
    %v3902 = vpack.c.b16 %v3046, %v3038
    %v3903 = vpack.c.b16 %v3047, %v3039
    %v3904 = vpack.c.b16 %v3048, %v3040
    %v3905 = vpack.c.b16 %v3049, %v3041
    %v3906 = vpack.c.b16 %v3050, %v3042
    %v3907 = vpack.c.b16 %v3051, %v3043
    %v3908 = vpack.c.b16 %v3052, %v3044
    %v3909 = vpack.c.b16 %v3053, %v3045
    %v3910 = vpack.c.b16 %v3062, %v3054
    %v3911 = vpack.c.b16 %v3063, %v3055
    %v3912 = vpack.c.b16 %v3064, %v3056
    %v3913 = vpack.c.b16 %v3065, %v3057
    %v3914 = vpack.c.b16 %v3066, %v3058
    %v3915 = vpack.c.b16 %v3067, %v3059
    %v3916 = vpack.c.b16 %v3068, %v3060
    %v3917 = vpack.c.b16 %v3069, %v3061
    %v3918 = vpack.c.b16 %v3078, %v3070
    %v3919 = vpack.c.b16 %v3079, %v3071
    %v3920 = vpack.c.b16 %v3080, %v3072
    %v3921 = vpack.c.b16 %v3081, %v3073
    %v3922 = vpack.c.b16 %v3082, %v3074
    %v3923 = vpack.c.b16 %v3083, %v3075
    %v3924 = vpack.c.b16 %v3084, %v3076
    %v3925 = vpack.c.b16 %v3085, %v3077
    %v3926 = vpack.c.b16 %v3094, %v3086
    %v3927 = vpack.c.b16 %v3095, %v3087
    %v3928 = vpack.c.b16 %v3096, %v3088
    %v3929 = vpack.c.b16 %v3097, %v3089
    %v3930 = vpack.c.b16 %v3098, %v3090
    %v3931 = vpack.c.b16 %v3099, %v3091
    %v3932 = vpack.c.b16 %v3100, %v3092
    %v3933 = vpack.c.b16 %v3101, %v3093
    %v3934 = vpack.c.b16 %v3110, %v3102
    %v3935 = vpack.c.b16 %v3111, %v3103
    %v3936 = vpack.c.b16 %v3112, %v3104
    %v3937 = vpack.c.b16 %v3113, %v3105
    %v3938 = vpack.c.b16 %v3114, %v3106
    %v3939 = vpack.c.b16 %v3115, %v3107
    %v3940 = vpack.c.b16 %v3116, %v3108
    %v3941 = vpack.c.b16 %v3117, %v3109
    %v3942 = vpack.c.b16 %v3126, %v3118
    %v3943 = vpack.c.b16 %v3127, %v3119
    %v3944 = vpack.c.b16 %v3128, %v3120
    %v3945 = vpack.c.b16 %v3129, %v3121
    %v3946 = vpack.c.b16 %v3130, %v3122
    %v3947 = vpack.c.b16 %v3131, %v3123
    %v3948 = vpack.c.b16 %v3132, %v3124
    %v3949 = vpack.c.b16 %v3133, %v3125
    %v3950 = vpack.c.b16 %v3142, %v3134
    %v3951 = vpack.c.b16 %v3143, %v3135
    %v3952 = vpack.c.b16 %v3144, %v3136
    %v3953 = vpack.c.b16 %v3145, %v3137
    %v3954 = vpack.c.b16 %v3146, %v3138
    %v3955 = vpack.c.b16 %v3147, %v3139
    %v3956 = vpack.c.b16 %v3148, %v3140
    %v3957 = vpack.c.b16 %v3149, %v3141
    %v3958 = vpack.c.b16 %v3158, %v3150
    %v3959 = vpack.c.b16 %v3159, %v3151
    %v3960 = vpack.c.b16 %v3160, %v3152
    %v3961 = vpack.c.b16 %v3161, %v3153
    %v3962 = vpack.c.b16 %v3162, %v3154
    %v3963 = vpack.c.b16 %v3163, %v3155
    %v3964 = vpack.c.b16 %v3164, %v3156
    %v3965 = vpack.c.b16 %v3165, %v3157
    %v3966 = vpack.c.b16 %v3174, %v3166
    %v3967 = vpack.c.b16 %v3175, %v3167
    %v3968 = vpack.c.b16 %v3176, %v3168
    %v3969 = vpack.c.b16 %v3177, %v3169
    %v3970 = vpack.c.b16 %v3178, %v3170
    %v3971 = vpack.c.b16 %v3179, %v3171
    %v3972 = vpack.c.b16 %v3180, %v3172
    %v3973 = vpack.c.b16 %v3181, %v3173
    %v3974 = vpack.c.b16 %v3190, %v3182
    %v3975 = vpack.c.b16 %v3191, %v3183
    %v3976 = vpack.c.b16 %v3192, %v3184
    %v3977 = vpack.c.b16 %v3193, %v3185
    %v3978 = vpack.c.b16 %v3194, %v3186
    %v3979 = vpack.c.b16 %v3195, %v3187
    %v3980 = vpack.c.b16 %v3196, %v3188
    %v3981 = vpack.c.b16 %v3197, %v3189
    %v3982 = vpack.c.b16 %v3206, %v3198
    %v3983 = vpack.c.b16 %v3207, %v3199
    %v3984 = vpack.c.b16 %v3208, %v3200
    %v3985 = vpack.c.b16 %v3209, %v3201
    %v3986 = vpack.c.b16 %v3210, %v3202
    %v3987 = vpack.c.b16 %v3211, %v3203
    %v3988 = vpack.c.b16 %v3212, %v3204
    %v3989 = vpack.c.b16 %v3213, %v3205
    %v3990 = vpack.c.b16 %v3222, %v3214
    %v3991 = vpack.c.b16 %v3223, %v3215
    %v3992 = vpack.c.b16 %v3224, %v3216
    %v3993 = vpack.c.b16 %v3225, %v3217
    %v3994 = vpack.c.b16 %v3226, %v3218
    %v3995 = vpack.c.b16 %v3227, %v3219
    %v3996 = vpack.c.b16 %v3228, %v3220
    %v3997 = vpack.c.b16 %v3229, %v3221
    %v3998 = vpack.c.b16 %v3238, %v3230
    %v3999 = vpack.c.b16 %v3239, %v3231
    %v4000 = vpack.c.b16 %v3240, %v3232
    %v4001 = vpack.c.b16 %v3241, %v3233
    %v4002 = vpack.c.b16 %v3242, %v3234
    %v4003 = vpack.c.b16 %v3243, %v3235
    %v4004 = vpack.c.b16 %v3244, %v3236
    %v4005 = vpack.c.b16 %v3245, %v3237
    %v4006 = vpack.c.b16 %v3254, %v3246
    %v4007 = vpack.c.b16 %v3255, %v3247
    %v4008 = vpack.c.b16 %v3256, %v3248
    %v4009 = vpack.c.b16 %v3257, %v3249
    %v4010 = vpack.c.b16 %v3258, %v3250
    %v4011 = vpack.c.b16 %v3259, %v3251
    %v4012 = vpack.c.b16 %v3260, %v3252
    %v4013 = vpack.c.b16 %v3261, %v3253
    %v4014 = vpack.c.b16 %v3270, %v3262
    %v4015 = vpack.c.b16 %v3271, %v3263
    %v4016 = vpack.c.b16 %v3272, %v3264
    %v4017 = vpack.c.b16 %v3273, %v3265
    %v4018 = vpack.c.b16 %v3274, %v3266
    %v4019 = vpack.c.b16 %v3275, %v3267
    %v4020 = vpack.c.b16 %v3276, %v3268
    %v4021 = vpack.c.b16 %v3277, %v3269
    %v4022 = vpack.c.b16 %v3286, %v3278
    %v4023 = vpack.c.b16 %v3287, %v3279
    %v4024 = vpack.c.b16 %v3288, %v3280
    %v4025 = vpack.c.b16 %v3289, %v3281
    %v4026 = vpack.c.b16 %v3290, %v3282
    %v4027 = vpack.c.b16 %v3291, %v3283
    %v4028 = vpack.c.b16 %v3292, %v3284
    %v4029 = vpack.c.b16 %v3293, %v3285
    %v4030 = vpack.c.b16 %v3302, %v3294
    %v4031 = vpack.c.b16 %v3303, %v3295
    %v4032 = vpack.c.b16 %v3304, %v3296
    %v4033 = vpack.c.b16 %v3305, %v3297
    %v4034 = vpack.c.b16 %v3306, %v3298
    %v4035 = vpack.c.b16 %v3307, %v3299
    %v4036 = vpack.c.b16 %v3308, %v3300
    %v4037 = vpack.c.b16 %v3309, %v3301
    %v4038 = vpack.c.b16 %v3318, %v3310
    %v4039 = vpack.c.b16 %v3319, %v3311
    %v4040 = vpack.c.b16 %v3320, %v3312
    %v4041 = vpack.c.b16 %v3321, %v3313
    %v4042 = vpack.c.b16 %v3322, %v3314
    %v4043 = vpack.c.b16 %v3323, %v3315
    %v4044 = vpack.c.b16 %v3324, %v3316
    %v4045 = vpack.c.b16 %v3325, %v3317
    %v4046 = vpack.c.b16 %v3334, %v3326
    %v4047 = vpack.c.b16 %v3335, %v3327
    %v4048 = vpack.c.b16 %v3336, %v3328
    %v4049 = vpack.c.b16 %v3337, %v3329
    %v4050 = vpack.c.b16 %v3338, %v3330
    %v4051 = vpack.c.b16 %v3339, %v3331
    %v4052 = vpack.c.b16 %v3340, %v3332
    %v4053 = vpack.c.b16 %v3341, %v3333
    %v4054 = vpack.c.b16 %v3350, %v3342
    %v4055 = vpack.c.b16 %v3351, %v3343
    %v4056 = vpack.c.b16 %v3352, %v3344
    %v4057 = vpack.c.b16 %v3353, %v3345
    %v4058 = vpack.c.b16 %v3354, %v3346
    %v4059 = vpack.c.b16 %v3355, %v3347
    %v4060 = vpack.c.b16 %v3356, %v3348
    %v4061 = vpack.c.b16 %v3357, %v3349
    %v4062 = vpack.c.b16 %v3366, %v3358
    %v4063 = vpack.c.b16 %v3367, %v3359
    %v4064 = vpack.c.b16 %v3368, %v3360
    %v4065 = vpack.c.b16 %v3369, %v3361
    %v4066 = vpack.c.b16 %v3370, %v3362
    %v4067 = vpack.c.b16 %v3371, %v3363
    %v4068 = vpack.c.b16 %v3372, %v3364
    %v4069 = vpack.c.b16 %v3373, %v3365
    %v4070 = vpack.c.b16 %v3382, %v3374
    %v4071 = vpack.c.b16 %v3383, %v3375
    %v4072 = vpack.c.b16 %v3384, %v3376
    %v4073 = vpack.c.b16 %v3385, %v3377
    %v4074 = vpack.c.b16 %v3386, %v3378
    %v4075 = vpack.c.b16 %v3387, %v3379
    %v4076 = vpack.c.b16 %v3388, %v3380
    %v4077 = vpack.c.b16 %v3389, %v3381
    %v4078 = vpack.c.b16 %v3398, %v3390
    %v4079 = vpack.c.b16 %v3399, %v3391
    %v4080 = vpack.c.b16 %v3400, %v3392
    %v4081 = vpack.c.b16 %v3401, %v3393
    %v4082 = vpack.c.b16 %v3402, %v3394
    %v4083 = vpack.c.b16 %v3403, %v3395
    %v4084 = vpack.c.b16 %v3404, %v3396
    %v4085 = vpack.c.b16 %v3405, %v3397
    %v4086 = vpack.c.b16 %v3414, %v3406
    %v4087 = vpack.c.b16 %v3415, %v3407
    %v4088 = vpack.c.b16 %v3416, %v3408
    %v4089 = vpack.c.b16 %v3417, %v3409
    %v4090 = vpack.c.b16 %v3418, %v3410
    %v4091 = vpack.c.b16 %v3419, %v3411
    %v4092 = vpack.c.b16 %v3420, %v3412
    %v4093 = vpack.c.b16 %v3421, %v3413
    %v4094 = vpack.c.b16 %v3430, %v3422
    %v4095 = vpack.c.b16 %v3431, %v3423
    %v4096 = vpack.c.b16 %v3432, %v3424
    %v4097 = vpack.c.b16 %v3433, %v3425
    %v4098 = vpack.c.b16 %v3434, %v3426
    %v4099 = vpack.c.b16 %v3435, %v3427
    %v4100 = vpack.c.b16 %v3436, %v3428
    %v4101 = vpack.c.b16 %v3437, %v3429
    %v4102 = vpack.c.b16 %v3446, %v3438
    %v4103 = vpack.c.b16 %v3447, %v3439
    %v4104 = vpack.c.b16 %v3448, %v3440
    %v4105 = vpack.c.b16 %v3449, %v3441
    %v4106 = vpack.c.b16 %v3450, %v3442
    %v4107 = vpack.c.b16 %v3451, %v3443
    %v4108 = vpack.c.b16 %v3452, %v3444
    %v4109 = vpack.c.b16 %v3453, %v3445
    %v4110 = vpack.c.b16 %v3462, %v3454
    %v4111 = vpack.c.b16 %v3463, %v3455
    %v4112 = vpack.c.b16 %v3464, %v3456
    %v4113 = vpack.c.b16 %v3465, %v3457
    %v4114 = vpack.c.b16 %v3466, %v3458
    %v4115 = vpack.c.b16 %v3467, %v3459
    %v4116 = vpack.c.b16 %v3468, %v3460
    %v4117 = vpack.c.b16 %v3469, %v3461
    %v4118 = vpack.c.b16 %v3478, %v3470
    %v4119 = vpack.c.b16 %v3479, %v3471
    %v4120 = vpack.c.b16 %v3480, %v3472
    %v4121 = vpack.c.b16 %v3481, %v3473
    %v4122 = vpack.c.b16 %v3482, %v3474
    %v4123 = vpack.c.b16 %v3483, %v3475
    %v4124 = vpack.c.b16 %v3484, %v3476
    %v4125 = vpack.c.b16 %v3485, %v3477
    %v4126 = vpack.c.b16 %v3494, %v3486
    %v4127 = vpack.c.b16 %v3495, %v3487
    %v4128 = vpack.c.b16 %v3496, %v3488
    %v4129 = vpack.c.b16 %v3497, %v3489
    %v4130 = vpack.c.b16 %v3498, %v3490
    %v4131 = vpack.c.b16 %v3499, %v3491
    %v4132 = vpack.c.b16 %v3500, %v3492
    %v4133 = vpack.c.b16 %v3501, %v3493
    %v4134 = vpack.c.b16 %v3510, %v3502
    %v4135 = vpack.c.b16 %v3511, %v3503
    %v4136 = vpack.c.b16 %v3512, %v3504
    %v4137 = vpack.c.b16 %v3513, %v3505
    %v4138 = vpack.c.b16 %v3514, %v3506
    %v4139 = vpack.c.b16 %v3515, %v3507
    %v4140 = vpack.c.b16 %v3516, %v3508
    %v4141 = vpack.c.b16 %v3517, %v3509
    %v4142 = vpack.c.b16 %v3526, %v3518
    %v4143 = vpack.c.b16 %v3527, %v3519
    %v4144 = vpack.c.b16 %v3528, %v3520
    %v4145 = vpack.c.b16 %v3529, %v3521
    %v4146 = vpack.c.b16 %v3530, %v3522
    %v4147 = vpack.c.b16 %v3531, %v3523
    %v4148 = vpack.c.b16 %v3532, %v3524
    %v4149 = vpack.c.b16 %v3533, %v3525
    %v4150 = vpack.c.b16 %v3542, %v3534
    %v4151 = vpack.c.b16 %v3543, %v3535
    %v4152 = vpack.c.b16 %v3544, %v3536
    %v4153 = vpack.c.b16 %v3545, %v3537
    %v4154 = vpack.c.b16 %v3546, %v3538
    %v4155 = vpack.c.b16 %v3547, %v3539
    %v4156 = vpack.c.b16 %v3548, %v3540
    %v4157 = vpack.c.b16 %v3549, %v3541
    %v4158 = vpack.c.b16 %v3558, %v3550
    %v4159 = vpack.c.b16 %v3559, %v3551
    %v4160 = vpack.c.b16 %v3560, %v3552
    %v4161 = vpack.c.b16 %v3561, %v3553
    %v4162 = vpack.c.b16 %v3562, %v3554
    %v4163 = vpack.c.b16 %v3563, %v3555
    %v4164 = vpack.c.b16 %v3564, %v3556
    %v4165 = vpack.c.b16 %v3565, %v3557
    %v4166 = vpack.c.b16 %v3574, %v3566
    %v4167 = vpack.c.b16 %v3575, %v3567
    %v4168 = vpack.c.b16 %v3576, %v3568
    %v4169 = vpack.c.b16 %v3577, %v3569
    %v4170 = vpack.c.b16 %v3578, %v3570
    %v4171 = vpack.c.b16 %v3579, %v3571
    %v4172 = vpack.c.b16 %v3580, %v3572
    %v4173 = vpack.c.b16 %v3581, %v3573
    %v4174 = vpack.c.b16 %v3590, %v3582
    %v4175 = vpack.c.b16 %v3591, %v3583
    %v4176 = vpack.c.b16 %v3592, %v3584
    %v4177 = vpack.c.b16 %v3593, %v3585
    %v4178 = vpack.c.b16 %v3594, %v3586
    %v4179 = vpack.c.b16 %v3595, %v3587
    %v4180 = vpack.c.b16 %v3596, %v3588
    %v4181 = vpack.c.b16 %v3597, %v3589
    %v4182 = vpack.c.b16 %v3606, %v3598
    %v4183 = vpack.c.b16 %v3607, %v3599
    %v4184 = vpack.c.b16 %v3608, %v3600
    %v4185 = vpack.c.b16 %v3609, %v3601
    %v4186 = vpack.c.b16 %v3610, %v3602
    %v4187 = vpack.c.b16 %v3611, %v3603
    %v4188 = vpack.c.b16 %v3612, %v3604
    %v4189 = vpack.c.b16 %v3613, %v3605
    %v4190 = vpack.c.b16 %v3622, %v3614
    %v4191 = vpack.c.b16 %v3623, %v3615
    %v4192 = vpack.c.b16 %v3624, %v3616
    %v4193 = vpack.c.b16 %v3625, %v3617
    %v4194 = vpack.c.b16 %v3626, %v3618
    %v4195 = vpack.c.b16 %v3627, %v3619
    %v4196 = vpack.c.b16 %v3628, %v3620
    %v4197 = vpack.c.b16 %v3629, %v3621
    %v4198 = vpack.c.b16 %v3638, %v3630
    %v4199 = vpack.c.b16 %v3639, %v3631
    %v4200 = vpack.c.b16 %v3640, %v3632
    %v4201 = vpack.c.b16 %v3641, %v3633
    %v4202 = vpack.c.b16 %v3642, %v3634
    %v4203 = vpack.c.b16 %v3643, %v3635
    %v4204 = vpack.c.b16 %v3644, %v3636
    %v4205 = vpack.c.b16 %v3645, %v3637
    %v4206 = vpack.c.b16 %v3654, %v3646
    %v4207 = vpack.c.b16 %v3655, %v3647
    %v4208 = vpack.c.b16 %v3656, %v3648
    %v4209 = vpack.c.b16 %v3657, %v3649
    %v4210 = vpack.c.b16 %v3658, %v3650
    %v4211 = vpack.c.b16 %v3659, %v3651
    %v4212 = vpack.c.b16 %v3660, %v3652
    %v4213 = vpack.c.b16 %v3661, %v3653
    %v4214 = vpack.c.b16 %v3670, %v3662
    %v4215 = vpack.c.b16 %v3671, %v3663
    %v4216 = vpack.c.b16 %v3672, %v3664
    %v4217 = vpack.c.b16 %v3673, %v3665
    %v4218 = vpack.c.b16 %v3674, %v3666
    %v4219 = vpack.c.b16 %v3675, %v3667
    %v4220 = vpack.c.b16 %v3676, %v3668
    %v4221 = vpack.c.b16 %v3677, %v3669
    %v4222 = vpack.c.b16 %v3686, %v3678
    %v4223 = vpack.c.b16 %v3687, %v3679
    %v4224 = vpack.c.b16 %v3688, %v3680
    %v4225 = vpack.c.b16 %v3689, %v3681
    %v4226 = vpack.c.b16 %v3690, %v3682
    %v4227 = vpack.c.b16 %v3691, %v3683
    %v4228 = vpack.c.b16 %v3692, %v3684
    %v4229 = vpack.c.b16 %v3693, %v3685
    %v4230 = vpack.c.b16 %v3702, %v3694
    %v4231 = vpack.c.b16 %v3703, %v3695
    %v4232 = vpack.c.b16 %v3704, %v3696
    %v4233 = vpack.c.b16 %v3705, %v3697
    %v4234 = vpack.c.b16 %v3706, %v3698
    %v4235 = vpack.c.b16 %v3707, %v3699
    %v4236 = vpack.c.b16 %v3708, %v3700
    %v4237 = vpack.c.b16 %v3709, %v3701
    %v4238 = vpack.c.b16 %v3718, %v3710
    %v4239 = vpack.c.b16 %v3719, %v3711
    %v4240 = vpack.c.b16 %v3720, %v3712
    %v4241 = vpack.c.b16 %v3721, %v3713
    %v4242 = vpack.c.b16 %v3722, %v3714
    %v4243 = vpack.c.b16 %v3723, %v3715
    %v4244 = vpack.c.b16 %v3724, %v3716
    %v4245 = vpack.c.b16 %v3725, %v3717
    %v4246 = vpack.c.b16 %v3734, %v3726
    %v4247 = vpack.c.b16 %v3735, %v3727
    %v4248 = vpack.c.b16 %v3736, %v3728
    %v4249 = vpack.c.b16 %v3737, %v3729
    %v4250 = vpack.c.b16 %v3738, %v3730
    %v4251 = vpack.c.b16 %v3739, %v3731
    %v4252 = vpack.c.b16 %v3740, %v3732
    %v4253 = vpack.c.b16 %v3741, %v3733
    %4766 = vmatprep.subr.bf16.mxu0 %v3743
    %4767 = vmatpush1.bf16.msra.mxu0 %v3742
    %4768 = vmatprep.subr.bf16.mxu0 %v3751
    %4769 = vmatpush1.bf16.msra.mxu0 %v3750
    %4770 = vmatprep.subr.bf16.mxu0 %v3759
    %4771 = vmatpush1.bf16.msra.mxu0 %v3758
    %4772 = vmatprep.subr.bf16.mxu0 %v3767
    %4773 = vmatpush1.bf16.msra.mxu0 %v3766
    %4774 = vmatprep.subr.bf16.mxu0 %v3775
    %4775 = vmatpush1.bf16.msra.mxu0 %v3774
    %4776 = vmatprep.subr.bf16.mxu0 %v3783
    %4777 = vmatpush1.bf16.msra.mxu0 %v3782
    %4778 = vmatprep.subr.bf16.mxu0 %v3791
    %4779 = vmatpush1.bf16.msra.mxu0 %v3790
    %4780 = vmatprep.subr.bf16.mxu0 %v3799
    %4781 = vmatpush1.bf16.msra.mxu0 %v3798
    %4782 = vmatprep.subr.bf16.mxu0 %v3807
    %4783 = vmatpush1.bf16.msra.mxu0 %v3806
    %4784 = vmatprep.subr.bf16.mxu0 %v3815
    %4785 = vmatpush1.bf16.msra.mxu0 %v3814
    %4786 = vmatprep.subr.bf16.mxu0 %v3823
    %4787 = vmatpush1.bf16.msra.mxu0 %v3822
    %4788 = vmatprep.subr.bf16.mxu0 %v3831
    %4789 = vmatpush1.bf16.msra.mxu0 %v3830
    %4790 = vmatprep.subr.bf16.mxu0 %v3839
    %4791 = vmatpush1.bf16.msra.mxu0 %v3838
    %4792 = vmatprep.subr.bf16.mxu0 %v3847
    %4793 = vmatpush1.bf16.msra.mxu0 %v3846
    %4794 = vmatprep.subr.bf16.mxu0 %v3855
    %4795 = vmatpush1.bf16.msra.mxu0 %v3854
    %4796 = vmatprep.subr.bf16.mxu0 %v3863
    %4797 = vmatpush1.bf16.msra.mxu0 %v3862
    %4798 = vmatprep.mubr.bf16.mxu0 %v1645
    %4799 = vmatmul.mubr.bf16.gmra.mrb[0].mxu0 %v1644
    %v4800 = vpop.f32.mrb[0].mxu0
    %v4801 = vadd.f32 %v2169, %v4800
    %v4802 = vpop.f32.mrb[0].mxu0
    %v4803 = vadd.f32 %v2173, %v4802
    %v4804 = vpop.f32.mrb[0].mxu0
    %v4805 = vpop.f32.mrb[0].mxu0
    %4806 = vdwg.mxu0
    %4807 = vmatprep.subr.bf16.mxu0 %v3871
    %4808 = vmatpush1.bf16.msra.mxu0 %v3870
    %4809 = vmatprep.subr.bf16.mxu0 %v3879
    %4810 = vmatpush1.bf16.msra.mxu0 %v3878
    %4811 = vmatprep.subr.bf16.mxu0 %v3887
    %4812 = vmatpush1.bf16.msra.mxu0 %v3886
    %4813 = vmatprep.subr.bf16.mxu0 %v3895
    %4814 = vmatpush1.bf16.msra.mxu0 %v3894
    %4815 = vmatprep.subr.bf16.mxu0 %v3903
    %4816 = vmatpush1.bf16.msra.mxu0 %v3902
    %4817 = vmatprep.subr.bf16.mxu0 %v3911
    %4818 = vmatpush1.bf16.msra.mxu0 %v3910
    %4819 = vmatprep.subr.bf16.mxu0 %v3919
    %4820 = vmatpush1.bf16.msra.mxu0 %v3918
    %4821 = vmatprep.subr.bf16.mxu0 %v3927
    %4822 = vmatpush1.bf16.msra.mxu0 %v3926
    %4823 = vmatprep.subr.bf16.mxu0 %v3935
    %4824 = vmatpush1.bf16.msra.mxu0 %v3934
    %4825 = vmatprep.subr.bf16.mxu0 %v3943
    %4826 = vmatpush1.bf16.msra.mxu0 %v3942
    %4827 = vmatprep.subr.bf16.mxu0 %v3951
    %4828 = vmatpush1.bf16.msra.mxu0 %v3950
    %4829 = vmatprep.subr.bf16.mxu0 %v3959
    %4830 = vmatpush1.bf16.msra.mxu0 %v3958
    %4831 = vmatprep.subr.bf16.mxu0 %v3967
    %4832 = vmatpush1.bf16.msra.mxu0 %v3966
    %4833 = vmatprep.subr.bf16.mxu0 %v3975
    %4834 = vmatpush1.bf16.msra.mxu0 %v3974
    %4835 = vmatprep.subr.bf16.mxu0 %v3983
    %4836 = vmatpush1.bf16.msra.mxu0 %v3982
    %4837 = vmatprep.subr.bf16.mxu0 %v3991
    %4838 = vmatpush1.bf16.msra.mxu0 %v3990
    %4839 = vmatprep.mubr.bf16.mxu0 %v1647
    %4840 = vmatmul.mubr.bf16.gmra.mrb[0].mxu0 %v1646
    %v4841 = vpop.f32.mrb[0].mxu0
    %v4842 = vadd.f32 %v4801, %v4841
    %v4843 = vpop.f32.mrb[0].mxu0
    %v4844 = vadd.f32 %v4803, %v4843
    %v4845 = vpop.f32.mrb[0].mxu0
    %v4846 = vpop.f32.mrb[0].mxu0
    %4847 = vdwg.mxu0
    %4848 = vmatprep.subr.bf16.mxu0 %v3999
    %4849 = vmatpush1.bf16.msra.mxu0 %v3998
    %4850 = vmatprep.subr.bf16.mxu0 %v4007
    %4851 = vmatpush1.bf16.msra.mxu0 %v4006
    %4852 = vmatprep.subr.bf16.mxu0 %v4015
    %4853 = vmatpush1.bf16.msra.mxu0 %v4014
    %4854 = vmatprep.subr.bf16.mxu0 %v4023
    %4855 = vmatpush1.bf16.msra.mxu0 %v4022
    %4856 = vmatprep.subr.bf16.mxu0 %v4031
    %4857 = vmatpush1.bf16.msra.mxu0 %v4030
    %4858 = vmatprep.subr.bf16.mxu0 %v4039
    %4859 = vmatpush1.bf16.msra.mxu0 %v4038
    %4860 = vmatprep.subr.bf16.mxu0 %v4047
    %4861 = vmatpush1.bf16.msra.mxu0 %v4046
    %4862 = vmatprep.subr.bf16.mxu0 %v4055
    %4863 = vmatpush1.bf16.msra.mxu0 %v4054
    %4864 = vmatprep.subr.bf16.mxu0 %v4063
    %4865 = vmatpush1.bf16.msra.mxu0 %v4062
    %4866 = vmatprep.subr.bf16.mxu0 %v4071
    %4867 = vmatpush1.bf16.msra.mxu0 %v4070
    %4868 = vmatprep.subr.bf16.mxu0 %v4079
    %4869 = vmatpush1.bf16.msra.mxu0 %v4078
    %4870 = vmatprep.subr.bf16.mxu0 %v4087
    %4871 = vmatpush1.bf16.msra.mxu0 %v4086
    %4872 = vmatprep.subr.bf16.mxu0 %v4095
    %4873 = vmatpush1.bf16.msra.mxu0 %v4094
    %4874 = vmatprep.subr.bf16.mxu0 %v4103
    %4875 = vmatpush1.bf16.msra.mxu0 %v4102
    %4876 = vmatprep.subr.bf16.mxu0 %v4111
    %4877 = vmatpush1.bf16.msra.mxu0 %v4110
    %4878 = vmatprep.subr.bf16.mxu0 %v4119
    %4879 = vmatpush1.bf16.msra.mxu0 %v4118
    %4880 = vmatprep.mubr.bf16.mxu0 %v1649
    %4881 = vmatmul.mubr.bf16.gmra.mrb[0].mxu0 %v1648
    %v4882 = vpop.f32.mrb[0].mxu0
    %v4883 = vadd.f32 %v4842, %v4882
    %v4884 = vpop.f32.mrb[0].mxu0
    %v4885 = vadd.f32 %v4844, %v4884
    %v4886 = vpop.f32.mrb[0].mxu0
    %v4887 = vpop.f32.mrb[0].mxu0
    %4888 = vdwg.mxu0
    %4889 = vmatprep.subr.bf16.mxu0 %v4127
    %4890 = vmatpush1.bf16.msra.mxu0 %v4126
    %4891 = vmatprep.subr.bf16.mxu0 %v4135
    %4892 = vmatpush1.bf16.msra.mxu0 %v4134
    %4893 = vmatprep.subr.bf16.mxu0 %v4143
    %4894 = vmatpush1.bf16.msra.mxu0 %v4142
    %4895 = vmatprep.subr.bf16.mxu0 %v4151
    %4896 = vmatpush1.bf16.msra.mxu0 %v4150
    %4897 = vmatprep.subr.bf16.mxu0 %v4159
    %4898 = vmatpush1.bf16.msra.mxu0 %v4158
    %4899 = vmatprep.subr.bf16.mxu0 %v4167
    %4900 = vmatpush1.bf16.msra.mxu0 %v4166
    %4901 = vmatprep.subr.bf16.mxu0 %v4175
    %4902 = vmatpush1.bf16.msra.mxu0 %v4174
    %4903 = vmatprep.subr.bf16.mxu0 %v4183
    %4904 = vmatpush1.bf16.msra.mxu0 %v4182
    %4905 = vmatprep.subr.bf16.mxu0 %v4191
    %4906 = vmatpush1.bf16.msra.mxu0 %v4190
    %4907 = vmatprep.subr.bf16.mxu0 %v4199
    %4908 = vmatpush1.bf16.msra.mxu0 %v4198
    %4909 = vmatprep.subr.bf16.mxu0 %v4207
    %4910 = vmatpush1.bf16.msra.mxu0 %v4206
    %4911 = vmatprep.subr.bf16.mxu0 %v4215
    %4912 = vmatpush1.bf16.msra.mxu0 %v4214
    %4913 = vmatprep.subr.bf16.mxu0 %v4223
    %4914 = vmatpush1.bf16.msra.mxu0 %v4222
    %4915 = vmatprep.subr.bf16.mxu0 %v4231
    %4916 = vmatpush1.bf16.msra.mxu0 %v4230
    %4917 = vmatprep.subr.bf16.mxu0 %v4239
    %4918 = vmatpush1.bf16.msra.mxu0 %v4238
    %4919 = vmatprep.subr.bf16.mxu0 %v4247
    %4920 = vmatpush1.bf16.msra.mxu0 %v4246
    %4921 = vmatprep.mubr.bf16.mxu0 %v1651
    %4922 = vmatmul.mubr.bf16.gmra.mrb[0].mxu0 %v1650
    %v4923 = vpop.f32.mrb[0].mxu0
    %v4924 = vadd.f32 %v4883, %v4923
    %v4925 = vpop.f32.mrb[0].mxu0
    %v4926 = vadd.f32 %v4885, %v4925
    %v4927 = vpop.f32.mrb[0].mxu0
    %v4928 = vpop.f32.mrb[0].mxu0
    %4929 = vdwg.mxu0
    %4930 = vmatprep.subr.bf16.mxu0 %v3745
    %4931 = vmatpush1.bf16.msra.mxu0 %v3744
    %4932 = vmatprep.subr.bf16.mxu0 %v3753
    %4933 = vmatpush1.bf16.msra.mxu0 %v3752
    %4934 = vmatprep.subr.bf16.mxu0 %v3761
    %4935 = vmatpush1.bf16.msra.mxu0 %v3760
    %4936 = vmatprep.subr.bf16.mxu0 %v3769
    %4937 = vmatpush1.bf16.msra.mxu0 %v3768
    %4938 = vmatprep.subr.bf16.mxu0 %v3777
    %4939 = vmatpush1.bf16.msra.mxu0 %v3776
    %4940 = vmatprep.subr.bf16.mxu0 %v3785
    %4941 = vmatpush1.bf16.msra.mxu0 %v3784
    %4942 = vmatprep.subr.bf16.mxu0 %v3793
    %4943 = vmatpush1.bf16.msra.mxu0 %v3792
    %4944 = vmatprep.subr.bf16.mxu0 %v3801
    %4945 = vmatpush1.bf16.msra.mxu0 %v3800
    %4946 = vmatprep.subr.bf16.mxu0 %v3809
    %4947 = vmatpush1.bf16.msra.mxu0 %v3808
    %4948 = vmatprep.subr.bf16.mxu0 %v3817
    %4949 = vmatpush1.bf16.msra.mxu0 %v3816
    %4950 = vmatprep.subr.bf16.mxu0 %v3825
    %4951 = vmatpush1.bf16.msra.mxu0 %v3824
    %4952 = vmatprep.subr.bf16.mxu0 %v3833
    %4953 = vmatpush1.bf16.msra.mxu0 %v3832
    %4954 = vmatprep.subr.bf16.mxu0 %v3841
    %4955 = vmatpush1.bf16.msra.mxu0 %v3840
    %4956 = vmatprep.subr.bf16.mxu0 %v3849
    %4957 = vmatpush1.bf16.msra.mxu0 %v3848
    %4958 = vmatprep.subr.bf16.mxu0 %v3857
    %4959 = vmatpush1.bf16.msra.mxu0 %v3856
    %4960 = vmatprep.subr.bf16.mxu0 %v3865
    %4961 = vmatpush1.bf16.msra.mxu0 %v3864
    %4962 = vmatprep.mubr.bf16.mxu0 %v1645
    %4963 = vmatmul.mubr.bf16.gmra.mrb[0].mxu0 %v1644
    %v4964 = vpop.f32.mrb[0].mxu0
    %v4965 = vadd.f32 %v2177, %v4964
    %v4966 = vpop.f32.mrb[0].mxu0
    %v4967 = vadd.f32 %v2181, %v4966
    %v4968 = vpop.f32.mrb[0].mxu0
    %v4969 = vpop.f32.mrb[0].mxu0
    %4970 = vdwg.mxu0
    %4971 = vmatprep.subr.bf16.mxu0 %v3873
    %4972 = vmatpush1.bf16.msra.mxu0 %v3872
    %4973 = vmatprep.subr.bf16.mxu0 %v3881
    %4974 = vmatpush1.bf16.msra.mxu0 %v3880
    %4975 = vmatprep.subr.bf16.mxu0 %v3889
    %4976 = vmatpush1.bf16.msra.mxu0 %v3888
    %4977 = vmatprep.subr.bf16.mxu0 %v3897
    %4978 = vmatpush1.bf16.msra.mxu0 %v3896
    %4979 = vmatprep.subr.bf16.mxu0 %v3905
    %4980 = vmatpush1.bf16.msra.mxu0 %v3904
    %4981 = vmatprep.subr.bf16.mxu0 %v3913
    %4982 = vmatpush1.bf16.msra.mxu0 %v3912
    %4983 = vmatprep.subr.bf16.mxu0 %v3921
    %4984 = vmatpush1.bf16.msra.mxu0 %v3920
    %4985 = vmatprep.subr.bf16.mxu0 %v3929
    %4986 = vmatpush1.bf16.msra.mxu0 %v3928
    %4987 = vmatprep.subr.bf16.mxu0 %v3937
    %4988 = vmatpush1.bf16.msra.mxu0 %v3936
    %4989 = vmatprep.subr.bf16.mxu0 %v3945
    %4990 = vmatpush1.bf16.msra.mxu0 %v3944
    %4991 = vmatprep.subr.bf16.mxu0 %v3953
    %4992 = vmatpush1.bf16.msra.mxu0 %v3952
    %4993 = vmatprep.subr.bf16.mxu0 %v3961
    %4994 = vmatpush1.bf16.msra.mxu0 %v3960
    %4995 = vmatprep.subr.bf16.mxu0 %v3969
    %4996 = vmatpush1.bf16.msra.mxu0 %v3968
    %4997 = vmatprep.subr.bf16.mxu0 %v3977
    %4998 = vmatpush1.bf16.msra.mxu0 %v3976
    %4999 = vmatprep.subr.bf16.mxu0 %v3985
    %5000 = vmatpush1.bf16.msra.mxu0 %v3984
    %5001 = vmatprep.subr.bf16.mxu0 %v3993
    %5002 = vmatpush1.bf16.msra.mxu0 %v3992
    %5003 = vmatprep.mubr.bf16.mxu0 %v1647
    %5004 = vmatmul.mubr.bf16.gmra.mrb[0].mxu0 %v1646
    %v5005 = vpop.f32.mrb[0].mxu0
    %v5006 = vadd.f32 %v4965, %v5005
    %v5007 = vpop.f32.mrb[0].mxu0
    %v5008 = vadd.f32 %v4967, %v5007
    %v5009 = vpop.f32.mrb[0].mxu0
    %v5010 = vpop.f32.mrb[0].mxu0
    %5011 = vdwg.mxu0
    %5012 = vmatprep.subr.bf16.mxu0 %v4001
    %5013 = vmatpush1.bf16.msra.mxu0 %v4000
    %5014 = vmatprep.subr.bf16.mxu0 %v4009
    %5015 = vmatpush1.bf16.msra.mxu0 %v4008
    %5016 = vmatprep.subr.bf16.mxu0 %v4017
    %5017 = vmatpush1.bf16.msra.mxu0 %v4016
    %5018 = vmatprep.subr.bf16.mxu0 %v4025
    %5019 = vmatpush1.bf16.msra.mxu0 %v4024
    %5020 = vmatprep.subr.bf16.mxu0 %v4033
    %5021 = vmatpush1.bf16.msra.mxu0 %v4032
    %5022 = vmatprep.subr.bf16.mxu0 %v4041
    %5023 = vmatpush1.bf16.msra.mxu0 %v4040
    %5024 = vmatprep.subr.bf16.mxu0 %v4049
    %5025 = vmatpush1.bf16.msra.mxu0 %v4048
    %5026 = vmatprep.subr.bf16.mxu0 %v4057
    %5027 = vmatpush1.bf16.msra.mxu0 %v4056
    %5028 = vmatprep.subr.bf16.mxu0 %v4065
    %5029 = vmatpush1.bf16.msra.mxu0 %v4064
    %5030 = vmatprep.subr.bf16.mxu0 %v4073
    %5031 = vmatpush1.bf16.msra.mxu0 %v4072
    %5032 = vmatprep.subr.bf16.mxu0 %v4081
    %5033 = vmatpush1.bf16.msra.mxu0 %v4080
    %5034 = vmatprep.subr.bf16.mxu0 %v4089
    %5035 = vmatpush1.bf16.msra.mxu0 %v4088
    %5036 = vmatprep.subr.bf16.mxu0 %v4097
    %5037 = vmatpush1.bf16.msra.mxu0 %v4096
    %5038 = vmatprep.subr.bf16.mxu0 %v4105
    %5039 = vmatpush1.bf16.msra.mxu0 %v4104
    %5040 = vmatprep.subr.bf16.mxu0 %v4113
    %5041 = vmatpush1.bf16.msra.mxu0 %v4112
    %5042 = vmatprep.subr.bf16.mxu0 %v4121
    %5043 = vmatpush1.bf16.msra.mxu0 %v4120
    %5044 = vmatprep.mubr.bf16.mxu0 %v1649
    %5045 = vmatmul.mubr.bf16.gmra.mrb[0].mxu0 %v1648
    %v5046 = vpop.f32.mrb[0].mxu0
    %v5047 = vadd.f32 %v5006, %v5046
    %v5048 = vpop.f32.mrb[0].mxu0
    %v5049 = vadd.f32 %v5008, %v5048
    %v5050 = vpop.f32.mrb[0].mxu0
    %v5051 = vpop.f32.mrb[0].mxu0
    %5052 = vdwg.mxu0
    %5053 = vmatprep.subr.bf16.mxu0 %v4129
    %5054 = vmatpush1.bf16.msra.mxu0 %v4128
    %5055 = vmatprep.subr.bf16.mxu0 %v4137
    %5056 = vmatpush1.bf16.msra.mxu0 %v4136
    %5057 = vmatprep.subr.bf16.mxu0 %v4145
    %5058 = vmatpush1.bf16.msra.mxu0 %v4144
    %5059 = vmatprep.subr.bf16.mxu0 %v4153
    %5060 = vmatpush1.bf16.msra.mxu0 %v4152
    %5061 = vmatprep.subr.bf16.mxu0 %v4161
    %5062 = vmatpush1.bf16.msra.mxu0 %v4160
    %5063 = vmatprep.subr.bf16.mxu0 %v4169
    %5064 = vmatpush1.bf16.msra.mxu0 %v4168
    %5065 = vmatprep.subr.bf16.mxu0 %v4177
    %5066 = vmatpush1.bf16.msra.mxu0 %v4176
    %5067 = vmatprep.subr.bf16.mxu0 %v4185
    %5068 = vmatpush1.bf16.msra.mxu0 %v4184
    %5069 = vmatprep.subr.bf16.mxu0 %v4193
    %5070 = vmatpush1.bf16.msra.mxu0 %v4192
    %5071 = vmatprep.subr.bf16.mxu0 %v4201
    %5072 = vmatpush1.bf16.msra.mxu0 %v4200
    %5073 = vmatprep.subr.bf16.mxu0 %v4209
    %5074 = vmatpush1.bf16.msra.mxu0 %v4208
    %5075 = vmatprep.subr.bf16.mxu0 %v4217
    %5076 = vmatpush1.bf16.msra.mxu0 %v4216
    %5077 = vmatprep.subr.bf16.mxu0 %v4225
    %5078 = vmatpush1.bf16.msra.mxu0 %v4224
    %5079 = vmatprep.subr.bf16.mxu0 %v4233
    %5080 = vmatpush1.bf16.msra.mxu0 %v4232
    %5081 = vmatprep.subr.bf16.mxu0 %v4241
    %5082 = vmatpush1.bf16.msra.mxu0 %v4240
    %5083 = vmatprep.subr.bf16.mxu0 %v4249
    %5084 = vmatpush1.bf16.msra.mxu0 %v4248
    %5085 = vmatprep.mubr.bf16.mxu0 %v1651
    %5086 = vmatmul.mubr.bf16.gmra.mrb[0].mxu0 %v1650
    %v5087 = vpop.f32.mrb[0].mxu0
    %v5088 = vadd.f32 %v5047, %v5087
    %v5089 = vpop.f32.mrb[0].mxu0
    %v5090 = vadd.f32 %v5049, %v5089
    %v5091 = vpop.f32.mrb[0].mxu0
    %v5092 = vpop.f32.mrb[0].mxu0
    %5093 = vdwg.mxu0
    %5094 = vmatprep.subr.bf16.mxu0 %v3747
    %5095 = vmatpush1.bf16.msra.mxu0 %v3746
    %5096 = vmatprep.subr.bf16.mxu0 %v3755
    %5097 = vmatpush1.bf16.msra.mxu0 %v3754
    %5098 = vmatprep.subr.bf16.mxu0 %v3763
    %5099 = vmatpush1.bf16.msra.mxu0 %v3762
    %5100 = vmatprep.subr.bf16.mxu0 %v3771
    %5101 = vmatpush1.bf16.msra.mxu0 %v3770
    %5102 = vmatprep.subr.bf16.mxu0 %v3779
    %5103 = vmatpush1.bf16.msra.mxu0 %v3778
    %5104 = vmatprep.subr.bf16.mxu0 %v3787
    %5105 = vmatpush1.bf16.msra.mxu0 %v3786
    %5106 = vmatprep.subr.bf16.mxu0 %v3795
    %5107 = vmatpush1.bf16.msra.mxu0 %v3794
    %5108 = vmatprep.subr.bf16.mxu0 %v3803
    %5109 = vmatpush1.bf16.msra.mxu0 %v3802
    %5110 = vmatprep.subr.bf16.mxu0 %v3811
    %5111 = vmatpush1.bf16.msra.mxu0 %v3810
    %5112 = vmatprep.subr.bf16.mxu0 %v3819
    %5113 = vmatpush1.bf16.msra.mxu0 %v3818
    %5114 = vmatprep.subr.bf16.mxu0 %v3827
    %5115 = vmatpush1.bf16.msra.mxu0 %v3826
    %5116 = vmatprep.subr.bf16.mxu0 %v3835
    %5117 = vmatpush1.bf16.msra.mxu0 %v3834
    %5118 = vmatprep.subr.bf16.mxu0 %v3843
    %5119 = vmatpush1.bf16.msra.mxu0 %v3842
    %5120 = vmatprep.subr.bf16.mxu0 %v3851
    %5121 = vmatpush1.bf16.msra.mxu0 %v3850
    %5122 = vmatprep.subr.bf16.mxu0 %v3859
    %5123 = vmatpush1.bf16.msra.mxu0 %v3858
    %5124 = vmatprep.subr.bf16.mxu0 %v3867
    %5125 = vmatpush1.bf16.msra.mxu0 %v3866
    %5126 = vmatprep.mubr.bf16.mxu0 %v1645
    %5127 = vmatmul.mubr.bf16.gmra.mrb[0].mxu0 %v1644
    %v5128 = vpop.f32.mrb[0].mxu0
    %v5129 = vadd.f32 %v2185, %v5128
    %v5130 = vpop.f32.mrb[0].mxu0
    %v5131 = vadd.f32 %v2189, %v5130
    %v5132 = vpop.f32.mrb[0].mxu0
    %v5133 = vpop.f32.mrb[0].mxu0
    %5134 = vdwg.mxu0
    %5135 = vmatprep.subr.bf16.mxu0 %v3875
    %5136 = vmatpush1.bf16.msra.mxu0 %v3874
    %5137 = vmatprep.subr.bf16.mxu0 %v3883
    %5138 = vmatpush1.bf16.msra.mxu0 %v3882
    %5139 = vmatprep.subr.bf16.mxu0 %v3891
    %5140 = vmatpush1.bf16.msra.mxu0 %v3890
    %5141 = vmatprep.subr.bf16.mxu0 %v3899
    %5142 = vmatpush1.bf16.msra.mxu0 %v3898
    %5143 = vmatprep.subr.bf16.mxu0 %v3907
    %5144 = vmatpush1.bf16.msra.mxu0 %v3906
    %5145 = vmatprep.subr.bf16.mxu0 %v3915
    %5146 = vmatpush1.bf16.msra.mxu0 %v3914
    %5147 = vmatprep.subr.bf16.mxu0 %v3923
    %5148 = vmatpush1.bf16.msra.mxu0 %v3922
    %5149 = vmatprep.subr.bf16.mxu0 %v3931
    %5150 = vmatpush1.bf16.msra.mxu0 %v3930
    %5151 = vmatprep.subr.bf16.mxu0 %v3939
    %5152 = vmatpush1.bf16.msra.mxu0 %v3938
    %5153 = vmatprep.subr.bf16.mxu0 %v3947
    %5154 = vmatpush1.bf16.msra.mxu0 %v3946
    %5155 = vmatprep.subr.bf16.mxu0 %v3955
    %5156 = vmatpush1.bf16.msra.mxu0 %v3954
    %5157 = vmatprep.subr.bf16.mxu0 %v3963
    %5158 = vmatpush1.bf16.msra.mxu0 %v3962
    %5159 = vmatprep.subr.bf16.mxu0 %v3971
    %5160 = vmatpush1.bf16.msra.mxu0 %v3970
    %5161 = vmatprep.subr.bf16.mxu0 %v3979
    %5162 = vmatpush1.bf16.msra.mxu0 %v3978
    %5163 = vmatprep.subr.bf16.mxu0 %v3987
    %5164 = vmatpush1.bf16.msra.mxu0 %v3986
    %5165 = vmatprep.subr.bf16.mxu0 %v3995
    %5166 = vmatpush1.bf16.msra.mxu0 %v3994
    %5167 = vmatprep.mubr.bf16.mxu0 %v1647
    %5168 = vmatmul.mubr.bf16.gmra.mrb[0].mxu0 %v1646
    %v5169 = vpop.f32.mrb[0].mxu0
    %v5170 = vadd.f32 %v5129, %v5169
    %v5171 = vpop.f32.mrb[0].mxu0
    %v5172 = vadd.f32 %v5131, %v5171
    %v5173 = vpop.f32.mrb[0].mxu0
    %v5174 = vpop.f32.mrb[0].mxu0
    %5175 = vdwg.mxu0
    %5176 = vmatprep.subr.bf16.mxu0 %v4003
    %5177 = vmatpush1.bf16.msra.mxu0 %v4002
    %5178 = vmatprep.subr.bf16.mxu0 %v4011
    %5179 = vmatpush1.bf16.msra.mxu0 %v4010
    %5180 = vmatprep.subr.bf16.mxu0 %v4019
    %5181 = vmatpush1.bf16.msra.mxu0 %v4018
    %5182 = vmatprep.subr.bf16.mxu0 %v4027
    %5183 = vmatpush1.bf16.msra.mxu0 %v4026
    %5184 = vmatprep.subr.bf16.mxu0 %v4035
    %5185 = vmatpush1.bf16.msra.mxu0 %v4034
    %5186 = vmatprep.subr.bf16.mxu0 %v4043
    %5187 = vmatpush1.bf16.msra.mxu0 %v4042
    %5188 = vmatprep.subr.bf16.mxu0 %v4051
    %5189 = vmatpush1.bf16.msra.mxu0 %v4050
    %5190 = vmatprep.subr.bf16.mxu0 %v4059
    %5191 = vmatpush1.bf16.msra.mxu0 %v4058
    %5192 = vmatprep.subr.bf16.mxu0 %v4067
    %5193 = vmatpush1.bf16.msra.mxu0 %v4066
    %5194 = vmatprep.subr.bf16.mxu0 %v4075
    %5195 = vmatpush1.bf16.msra.mxu0 %v4074
    %5196 = vmatprep.subr.bf16.mxu0 %v4083
    %5197 = vmatpush1.bf16.msra.mxu0 %v4082
    %5198 = vmatprep.subr.bf16.mxu0 %v4091
    %5199 = vmatpush1.bf16.msra.mxu0 %v4090
    %5200 = vmatprep.subr.bf16.mxu0 %v4099
    %5201 = vmatpush1.bf16.msra.mxu0 %v4098
    %5202 = vmatprep.subr.bf16.mxu0 %v4107
    %5203 = vmatpush1.bf16.msra.mxu0 %v4106
    %5204 = vmatprep.subr.bf16.mxu0 %v4115
    %5205 = vmatpush1.bf16.msra.mxu0 %v4114
    %5206 = vmatprep.subr.bf16.mxu0 %v4123
    %5207 = vmatpush1.bf16.msra.mxu0 %v4122
    %5208 = vmatprep.mubr.bf16.mxu0 %v1649
    %5209 = vmatmul.mubr.bf16.gmra.mrb[0].mxu0 %v1648
    %v5210 = vpop.f32.mrb[0].mxu0
    %v5211 = vadd.f32 %v5170, %v5210
    %v5212 = vpop.f32.mrb[0].mxu0
    %v5213 = vadd.f32 %v5172, %v5212
    %v5214 = vpop.f32.mrb[0].mxu0
    %v5215 = vpop.f32.mrb[0].mxu0
    %5216 = vdwg.mxu0
    %5217 = vmatprep.subr.bf16.mxu0 %v4131
    %5218 = vmatpush1.bf16.msra.mxu0 %v4130
    %5219 = vmatprep.subr.bf16.mxu0 %v4139
    %5220 = vmatpush1.bf16.msra.mxu0 %v4138
    %5221 = vmatprep.subr.bf16.mxu0 %v4147
    %5222 = vmatpush1.bf16.msra.mxu0 %v4146
    %5223 = vmatprep.subr.bf16.mxu0 %v4155
    %5224 = vmatpush1.bf16.msra.mxu0 %v4154
    %5225 = vmatprep.subr.bf16.mxu0 %v4163
    %5226 = vmatpush1.bf16.msra.mxu0 %v4162
    %5227 = vmatprep.subr.bf16.mxu0 %v4171
    %5228 = vmatpush1.bf16.msra.mxu0 %v4170
    %5229 = vmatprep.subr.bf16.mxu0 %v4179
    %5230 = vmatpush1.bf16.msra.mxu0 %v4178
    %5231 = vmatprep.subr.bf16.mxu0 %v4187
    %5232 = vmatpush1.bf16.msra.mxu0 %v4186
    %5233 = vmatprep.subr.bf16.mxu0 %v4195
    %5234 = vmatpush1.bf16.msra.mxu0 %v4194
    %5235 = vmatprep.subr.bf16.mxu0 %v4203
    %5236 = vmatpush1.bf16.msra.mxu0 %v4202
    %5237 = vmatprep.subr.bf16.mxu0 %v4211
    %5238 = vmatpush1.bf16.msra.mxu0 %v4210
    %5239 = vmatprep.subr.bf16.mxu0 %v4219
    %5240 = vmatpush1.bf16.msra.mxu0 %v4218
    %5241 = vmatprep.subr.bf16.mxu0 %v4227
    %5242 = vmatpush1.bf16.msra.mxu0 %v4226
    %5243 = vmatprep.subr.bf16.mxu0 %v4235
    %5244 = vmatpush1.bf16.msra.mxu0 %v4234
    %5245 = vmatprep.subr.bf16.mxu0 %v4243
    %5246 = vmatpush1.bf16.msra.mxu0 %v4242
    %5247 = vmatprep.subr.bf16.mxu0 %v4251
    %5248 = vmatpush1.bf16.msra.mxu0 %v4250
    %5249 = vmatprep.mubr.bf16.mxu0 %v1651
    %5250 = vmatmul.mubr.bf16.gmra.mrb[0].mxu0 %v1650
    %v5251 = vpop.f32.mrb[0].mxu0
    %v5252 = vadd.f32 %v5211, %v5251
    %v5253 = vpop.f32.mrb[0].mxu0
    %v5254 = vadd.f32 %v5213, %v5253
    %v5255 = vpop.f32.mrb[0].mxu0
    %v5256 = vpop.f32.mrb[0].mxu0
    %5257 = vdwg.mxu0
    %5258 = vmatprep.subr.bf16.mxu0 %v3749
    %5259 = vmatpush1.bf16.msra.mxu0 %v3748
    %5260 = vmatprep.subr.bf16.mxu0 %v3757
    %5261 = vmatpush1.bf16.msra.mxu0 %v3756
    %5262 = vmatprep.subr.bf16.mxu0 %v3765
    %5263 = vmatpush1.bf16.msra.mxu0 %v3764
    %5264 = vmatprep.subr.bf16.mxu0 %v3773
    %5265 = vmatpush1.bf16.msra.mxu0 %v3772
    %5266 = vmatprep.subr.bf16.mxu0 %v3781
    %5267 = vmatpush1.bf16.msra.mxu0 %v3780
    %5268 = vmatprep.subr.bf16.mxu0 %v3789
    %5269 = vmatpush1.bf16.msra.mxu0 %v3788
    %5270 = vmatprep.subr.bf16.mxu0 %v3797
    %5271 = vmatpush1.bf16.msra.mxu0 %v3796
    %5272 = vmatprep.subr.bf16.mxu0 %v3805
    %5273 = vmatpush1.bf16.msra.mxu0 %v3804
    %5274 = vmatprep.subr.bf16.mxu0 %v3813
    %5275 = vmatpush1.bf16.msra.mxu0 %v3812
    %5276 = vmatprep.subr.bf16.mxu0 %v3821
    %5277 = vmatpush1.bf16.msra.mxu0 %v3820
    %5278 = vmatprep.subr.bf16.mxu0 %v3829
    %5279 = vmatpush1.bf16.msra.mxu0 %v3828
    %5280 = vmatprep.subr.bf16.mxu0 %v3837
    %5281 = vmatpush1.bf16.msra.mxu0 %v3836
    %5282 = vmatprep.subr.bf16.mxu0 %v3845
    %5283 = vmatpush1.bf16.msra.mxu0 %v3844
    %5284 = vmatprep.subr.bf16.mxu0 %v3853
    %5285 = vmatpush1.bf16.msra.mxu0 %v3852
    %5286 = vmatprep.subr.bf16.mxu0 %v3861
    %5287 = vmatpush1.bf16.msra.mxu0 %v3860
    %5288 = vmatprep.subr.bf16.mxu0 %v3869
    %5289 = vmatpush1.bf16.msra.mxu0 %v3868
    %5290 = vmatprep.mubr.bf16.mxu0 %v1645
    %5291 = vmatmul.mubr.bf16.gmra.mrb[0].mxu0 %v1644
    %v5292 = vpop.f32.mrb[0].mxu0
    %v5293 = vadd.f32 %v2193, %v5292
    %v5294 = vpop.f32.mrb[0].mxu0
    %v5295 = vadd.f32 %v2197, %v5294
    %v5296 = vpop.f32.mrb[0].mxu0
    %v5297 = vpop.f32.mrb[0].mxu0
    %5298 = vdwg.mxu0
    %5299 = vmatprep.subr.bf16.mxu0 %v3877
    %5300 = vmatpush1.bf16.msra.mxu0 %v3876
    %5301 = vmatprep.subr.bf16.mxu0 %v3885
    %5302 = vmatpush1.bf16.msra.mxu0 %v3884
    %5303 = vmatprep.subr.bf16.mxu0 %v3893
    %5304 = vmatpush1.bf16.msra.mxu0 %v3892
    %5305 = vmatprep.subr.bf16.mxu0 %v3901
    %5306 = vmatpush1.bf16.msra.mxu0 %v3900
    %5307 = vmatprep.subr.bf16.mxu0 %v3909
    %5308 = vmatpush1.bf16.msra.mxu0 %v3908
    %5309 = vmatprep.subr.bf16.mxu0 %v3917
    %5310 = vmatpush1.bf16.msra.mxu0 %v3916
    %5311 = vmatprep.subr.bf16.mxu0 %v3925
    %5312 = vmatpush1.bf16.msra.mxu0 %v3924
    %5313 = vmatprep.subr.bf16.mxu0 %v3933
    %5314 = vmatpush1.bf16.msra.mxu0 %v3932
    %5315 = vmatprep.subr.bf16.mxu0 %v3941
    %5316 = vmatpush1.bf16.msra.mxu0 %v3940
    %5317 = vmatprep.subr.bf16.mxu0 %v3949
    %5318 = vmatpush1.bf16.msra.mxu0 %v3948
    %5319 = vmatprep.subr.bf16.mxu0 %v3957
    %5320 = vmatpush1.bf16.msra.mxu0 %v3956
    %5321 = vmatprep.subr.bf16.mxu0 %v3965
    %5322 = vmatpush1.bf16.msra.mxu0 %v3964
    %5323 = vmatprep.subr.bf16.mxu0 %v3973
    %5324 = vmatpush1.bf16.msra.mxu0 %v3972
    %5325 = vmatprep.subr.bf16.mxu0 %v3981
    %5326 = vmatpush1.bf16.msra.mxu0 %v3980
    %5327 = vmatprep.subr.bf16.mxu0 %v3989
    %5328 = vmatpush1.bf16.msra.mxu0 %v3988
    %5329 = vmatprep.subr.bf16.mxu0 %v3997
    %5330 = vmatpush1.bf16.msra.mxu0 %v3996
    %5331 = vmatprep.mubr.bf16.mxu0 %v1647
    %5332 = vmatmul.mubr.bf16.gmra.mrb[0].mxu0 %v1646
    %v5333 = vpop.f32.mrb[0].mxu0
    %v5334 = vadd.f32 %v5293, %v5333
    %v5335 = vpop.f32.mrb[0].mxu0
    %v5336 = vadd.f32 %v5295, %v5335
    %v5337 = vpop.f32.mrb[0].mxu0
    %v5338 = vpop.f32.mrb[0].mxu0
    %5339 = vdwg.mxu0
    %5340 = vmatprep.subr.bf16.mxu0 %v4005
    %5341 = vmatpush1.bf16.msra.mxu0 %v4004
    %5342 = vmatprep.subr.bf16.mxu0 %v4013
    %5343 = vmatpush1.bf16.msra.mxu0 %v4012
    %5344 = vmatprep.subr.bf16.mxu0 %v4021
    %5345 = vmatpush1.bf16.msra.mxu0 %v4020
    %5346 = vmatprep.subr.bf16.mxu0 %v4029
    %5347 = vmatpush1.bf16.msra.mxu0 %v4028
    %5348 = vmatprep.subr.bf16.mxu0 %v4037
    %5349 = vmatpush1.bf16.msra.mxu0 %v4036
    %5350 = vmatprep.subr.bf16.mxu0 %v4045
    %5351 = vmatpush1.bf16.msra.mxu0 %v4044
    %5352 = vmatprep.subr.bf16.mxu0 %v4053
    %5353 = vmatpush1.bf16.msra.mxu0 %v4052
    %5354 = vmatprep.subr.bf16.mxu0 %v4061
    %5355 = vmatpush1.bf16.msra.mxu0 %v4060
    %5356 = vmatprep.subr.bf16.mxu0 %v4069
    %5357 = vmatpush1.bf16.msra.mxu0 %v4068
    %5358 = vmatprep.subr.bf16.mxu0 %v4077
    %5359 = vmatpush1.bf16.msra.mxu0 %v4076
    %5360 = vmatprep.subr.bf16.mxu0 %v4085
    %5361 = vmatpush1.bf16.msra.mxu0 %v4084
    %5362 = vmatprep.subr.bf16.mxu0 %v4093
    %5363 = vmatpush1.bf16.msra.mxu0 %v4092
    %5364 = vmatprep.subr.bf16.mxu0 %v4101
    %5365 = vmatpush1.bf16.msra.mxu0 %v4100
    %5366 = vmatprep.subr.bf16.mxu0 %v4109
    %5367 = vmatpush1.bf16.msra.mxu0 %v4108
    %5368 = vmatprep.subr.bf16.mxu0 %v4117
    %5369 = vmatpush1.bf16.msra.mxu0 %v4116
    %5370 = vmatprep.subr.bf16.mxu0 %v4125
    %5371 = vmatpush1.bf16.msra.mxu0 %v4124
    %5372 = vmatprep.mubr.bf16.mxu0 %v1649
    %5373 = vmatmul.mubr.bf16.gmra.mrb[0].mxu0 %v1648
    %v5374 = vpop.f32.mrb[0].mxu0
    %v5375 = vadd.f32 %v5334, %v5374
    %v5376 = vpop.f32.mrb[0].mxu0
    %v5377 = vadd.f32 %v5336, %v5376
    %v5378 = vpop.f32.mrb[0].mxu0
    %v5379 = vpop.f32.mrb[0].mxu0
    %5380 = vdwg.mxu0
    %5381 = vmatprep.subr.bf16.mxu0 %v4133
    %5382 = vmatpush1.bf16.msra.mxu0 %v4132
    %5383 = vmatprep.subr.bf16.mxu0 %v4141
    %5384 = vmatpush1.bf16.msra.mxu0 %v4140
    %5385 = vmatprep.subr.bf16.mxu0 %v4149
    %5386 = vmatpush1.bf16.msra.mxu0 %v4148
    %5387 = vmatprep.subr.bf16.mxu0 %v4157
    %5388 = vmatpush1.bf16.msra.mxu0 %v4156
    %5389 = vmatprep.subr.bf16.mxu0 %v4165
    %5390 = vmatpush1.bf16.msra.mxu0 %v4164
    %5391 = vmatprep.subr.bf16.mxu0 %v4173
    %5392 = vmatpush1.bf16.msra.mxu0 %v4172
    %5393 = vmatprep.subr.bf16.mxu0 %v4181
    %5394 = vmatpush1.bf16.msra.mxu0 %v4180
    %5395 = vmatprep.subr.bf16.mxu0 %v4189
    %5396 = vmatpush1.bf16.msra.mxu0 %v4188
    %5397 = vmatprep.subr.bf16.mxu0 %v4197
    %5398 = vmatpush1.bf16.msra.mxu0 %v4196
    %5399 = vmatprep.subr.bf16.mxu0 %v4205
    %5400 = vmatpush1.bf16.msra.mxu0 %v4204
    %5401 = vmatprep.subr.bf16.mxu0 %v4213
    %5402 = vmatpush1.bf16.msra.mxu0 %v4212
    %5403 = vmatprep.subr.bf16.mxu0 %v4221
    %5404 = vmatpush1.bf16.msra.mxu0 %v4220
    %5405 = vmatprep.subr.bf16.mxu0 %v4229
    %5406 = vmatpush1.bf16.msra.mxu0 %v4228
    %5407 = vmatprep.subr.bf16.mxu0 %v4237
    %5408 = vmatpush1.bf16.msra.mxu0 %v4236
    %5409 = vmatprep.subr.bf16.mxu0 %v4245
    %5410 = vmatpush1.bf16.msra.mxu0 %v4244
    %5411 = vmatprep.subr.bf16.mxu0 %v4253
    %5412 = vmatpush1.bf16.msra.mxu0 %v4252
    %5413 = vmatprep.mubr.bf16.mxu0 %v1651
    %5414 = vmatmul.mubr.bf16.gmra.mrb[0].mxu0 %v1650
    %v5415 = vpop.f32.mrb[0].mxu0
    %v5416 = vadd.f32 %v5375, %v5415
    %v5417 = vpop.f32.mrb[0].mxu0
    %v5418 = vadd.f32 %v5377, %v5417
    %v5419 = vpop.f32.mrb[0].mxu0
    %v5420 = vpop.f32.mrb[0].mxu0
    %5421 = vdwg.mxu0
    %v5422 = vmax.f32 %v4924, 0.0
    %v5423 = vmax.f32 %v4926, 0.0
    %v5424 = vmax.f32 %v5088, 0.0
    %v5425 = vmax.f32 %v5090, 0.0
    %v5426 = vmax.f32 %v5252, 0.0
    %v5427 = vmax.f32 %v5254, 0.0
    %v5428 = vmax.f32 %v5416, 0.0
    %v5429 = vmax.f32 %v5418, 0.0
    %v5430 = vpack.c.bf16 %v5422, %v5422
    %v5431 = vpack.c.bf16 %v5423, %v5423
    %v5432 = vpack.c.bf16 %v5424, %v5424
    %v5433 = vpack.c.bf16 %v5425, %v5425
    %v5434 = vpack.c.bf16 %v5426, %v5426
    %v5435 = vpack.c.bf16 %v5427, %v5427
    %v5436 = vpack.c.bf16 %v5428, %v5428
    %v5437 = vpack.c.bf16 %v5429, %v5429
    %v5438 = vld [vmem:[#allocation11] sm:$0xf]
    %v5439 = vld [vmem:[#allocation11 + $0x4] sm:$0xf]
    %v5440 = vld [vmem:[#allocation11 + $0x8] sm:$0xf]
    %v5441 = vld [vmem:[#allocation11 + $0xc] sm:$0xf]
    %v5442 = vld [vmem:[#allocation11 + $0x10] sm:$0xf]
    %v5443 = vld [vmem:[#allocation11 + $0x14] sm:$0xf]
    %v5444 = vld [vmem:[#allocation11 + $0x18] sm:$0xf]
    %v5445 = vld [vmem:[#allocation11 + $0x1c] sm:$0xf]
    %v5446 = vld [vmem:[#allocation11 + $0x20] sm:$0xf]
    %v5447 = vld [vmem:[#allocation11 + $0x24] sm:$0xf]
    %v5448 = vld [vmem:[#allocation11 + $0x28] sm:$0xf]
    %v5449 = vld [vmem:[#allocation11 + $0x2c] sm:$0xf]
    %v5450 = vld [vmem:[#allocation11 + $0x30] sm:$0xf]
    %v5451 = vld [vmem:[#allocation11 + $0x34] sm:$0xf]
    %v5452 = vld [vmem:[#allocation11 + $0x38] sm:$0xf]
    %v5453 = vld [vmem:[#allocation11 + $0x3c] sm:$0xf]
    %v5454 = vld [vmem:[#allocation11 + $0x40] sm:$0xf]
    %v5455 = vld [vmem:[#allocation11 + $0x44] sm:$0xf]
    %v5456 = vld [vmem:[#allocation11 + $0x48] sm:$0xf]
    %v5457 = vld [vmem:[#allocation11 + $0x4c] sm:$0xf]
    %v5458 = vld [vmem:[#allocation11 + $0x50] sm:$0xf]
    %v5459 = vld [vmem:[#allocation11 + $0x54] sm:$0xf]
    %v5460 = vld [vmem:[#allocation11 + $0x58] sm:$0xf]
    %v5461 = vld [vmem:[#allocation11 + $0x5c] sm:$0xf]
    %v5462 = vld [vmem:[#allocation11 + $0x60] sm:$0xf]
    %v5463 = vld [vmem:[#allocation11 + $0x64] sm:$0xf]
    %v5464 = vld [vmem:[#allocation11 + $0x68] sm:$0xf]
    %v5465 = vld [vmem:[#allocation11 + $0x6c] sm:$0xf]
    %v5466 = vld [vmem:[#allocation11 + $0x70] sm:$0xf]
    %v5467 = vld [vmem:[#allocation11 + $0x74] sm:$0xf]
    %v5468 = vld [vmem:[#allocation11 + $0x78] sm:$0xf]
    %v5469 = vld [vmem:[#allocation11 + $0x7c] sm:$0xf]
    %v5470 = vld [vmem:[#allocation11 + $0x80] sm:$0xf]
    %v5471 = vld [vmem:[#allocation11 + $0x84] sm:$0xf]
    %v5472 = vld [vmem:[#allocation11 + $0x88] sm:$0xf]
    %v5473 = vld [vmem:[#allocation11 + $0x8c] sm:$0xf]
    %v5474 = vld [vmem:[#allocation11 + $0x90] sm:$0xf]
    %v5475 = vld [vmem:[#allocation11 + $0x94] sm:$0xf]
    %v5476 = vld [vmem:[#allocation11 + $0x98] sm:$0xf]
    %v5477 = vld [vmem:[#allocation11 + $0x9c] sm:$0xf]
    %v5478 = vld [vmem:[#allocation11 + $0xa0] sm:$0xf]
    %v5479 = vld [vmem:[#allocation11 + $0xa4] sm:$0xf]
    %v5480 = vld [vmem:[#allocation11 + $0xa8] sm:$0xf]
    %v5481 = vld [vmem:[#allocation11 + $0xac] sm:$0xf]
    %v5482 = vld [vmem:[#allocation11 + $0xb0] sm:$0xf]
    %v5483 = vld [vmem:[#allocation11 + $0xb4] sm:$0xf]
    %v5484 = vld [vmem:[#allocation11 + $0xb8] sm:$0xf]
    %v5485 = vld [vmem:[#allocation11 + $0xbc] sm:$0xf]
    %v5486 = vld [vmem:[#allocation11 + $0xc0] sm:$0xf]
    %v5487 = vld [vmem:[#allocation11 + $0xc4] sm:$0xf]
    %v5488 = vld [vmem:[#allocation11 + $0xc8] sm:$0xf]
    %v5489 = vld [vmem:[#allocation11 + $0xcc] sm:$0xf]
    %v5490 = vld [vmem:[#allocation11 + $0xd0] sm:$0xf]
    %v5491 = vld [vmem:[#allocation11 + $0xd4] sm:$0xf]
    %v5492 = vld [vmem:[#allocation11 + $0xd8] sm:$0xf]
    %v5493 = vld [vmem:[#allocation11 + $0xdc] sm:$0xf]
    %v5494 = vld [vmem:[#allocation11 + $0xe0] sm:$0xf]
    %v5495 = vld [vmem:[#allocation11 + $0xe4] sm:$0xf]
    %v5496 = vld [vmem:[#allocation11 + $0xe8] sm:$0xf]
    %v5497 = vld [vmem:[#allocation11 + $0xec] sm:$0xf]
    %v5498 = vld [vmem:[#allocation11 + $0xf0] sm:$0xf]
    %v5499 = vld [vmem:[#allocation11 + $0xf4] sm:$0xf]
    %v5500 = vld [vmem:[#allocation11 + $0xf8] sm:$0xf]
    %v5501 = vld [vmem:[#allocation11 + $0xfc] sm:$0xf]
    %v5502 = vld [vmem:[#allocation11 + $0x100] sm:$0xf]
    %v5503 = vld [vmem:[#allocation11 + $0x104] sm:$0xf]
    %v5504 = vld [vmem:[#allocation11 + $0x108] sm:$0xf]
    %v5505 = vld [vmem:[#allocation11 + $0x10c] sm:$0xf]
    %v5506 = vld [vmem:[#allocation11 + $0x110] sm:$0xf]
    %v5507 = vld [vmem:[#allocation11 + $0x114] sm:$0xf]
    %v5508 = vld [vmem:[#allocation11 + $0x118] sm:$0xf]
    %v5509 = vld [vmem:[#allocation11 + $0x11c] sm:$0xf]
    %v5510 = vld [vmem:[#allocation11 + $0x120] sm:$0xf]
    %v5511 = vld [vmem:[#allocation11 + $0x124] sm:$0xf]
    %v5512 = vld [vmem:[#allocation11 + $0x128] sm:$0xf]
    %v5513 = vld [vmem:[#allocation11 + $0x12c] sm:$0xf]
    %v5514 = vld [vmem:[#allocation11 + $0x130] sm:$0xf]
    %v5515 = vld [vmem:[#allocation11 + $0x134] sm:$0xf]
    %v5516 = vld [vmem:[#allocation11 + $0x138] sm:$0xf]
    %v5517 = vld [vmem:[#allocation11 + $0x13c] sm:$0xf]
    %v5518 = vld [vmem:[#allocation11 + $0x140] sm:$0xf]
    %v5519 = vld [vmem:[#allocation11 + $0x144] sm:$0xf]
    %v5520 = vld [vmem:[#allocation11 + $0x148] sm:$0xf]
    %v5521 = vld [vmem:[#allocation11 + $0x14c] sm:$0xf]
    %v5522 = vld [vmem:[#allocation11 + $0x150] sm:$0xf]
    %v5523 = vld [vmem:[#allocation11 + $0x154] sm:$0xf]
    %v5524 = vld [vmem:[#allocation11 + $0x158] sm:$0xf]
    %v5525 = vld [vmem:[#allocation11 + $0x15c] sm:$0xf]
    %v5526 = vld [vmem:[#allocation11 + $0x160] sm:$0xf]
    %v5527 = vld [vmem:[#allocation11 + $0x164] sm:$0xf]
    %v5528 = vld [vmem:[#allocation11 + $0x168] sm:$0xf]
    %v5529 = vld [vmem:[#allocation11 + $0x16c] sm:$0xf]
    %v5530 = vld [vmem:[#allocation11 + $0x170] sm:$0xf]
    %v5531 = vld [vmem:[#allocation11 + $0x174] sm:$0xf]
    %v5532 = vld [vmem:[#allocation11 + $0x178] sm:$0xf]
    %v5533 = vld [vmem:[#allocation11 + $0x17c] sm:$0xf]
    %v5534 = vld [vmem:[#allocation11 + $0x180] sm:$0xf]
    %v5535 = vld [vmem:[#allocation11 + $0x184] sm:$0xf]
    %v5536 = vld [vmem:[#allocation11 + $0x188] sm:$0xf]
    %v5537 = vld [vmem:[#allocation11 + $0x18c] sm:$0xf]
    %v5538 = vld [vmem:[#allocation11 + $0x190] sm:$0xf]
    %v5539 = vld [vmem:[#allocation11 + $0x194] sm:$0xf]
    %v5540 = vld [vmem:[#allocation11 + $0x198] sm:$0xf]
    %v5541 = vld [vmem:[#allocation11 + $0x19c] sm:$0xf]
    %v5542 = vld [vmem:[#allocation11 + $0x1a0] sm:$0xf]
    %v5543 = vld [vmem:[#allocation11 + $0x1a4] sm:$0xf]
    %v5544 = vld [vmem:[#allocation11 + $0x1a8] sm:$0xf]
    %v5545 = vld [vmem:[#allocation11 + $0x1ac] sm:$0xf]
    %v5546 = vld [vmem:[#allocation11 + $0x1b0] sm:$0xf]
    %v5547 = vld [vmem:[#allocation11 + $0x1b4] sm:$0xf]
    %v5548 = vld [vmem:[#allocation11 + $0x1b8] sm:$0xf]
    %v5549 = vld [vmem:[#allocation11 + $0x1bc] sm:$0xf]
    %v5550 = vld [vmem:[#allocation11 + $0x1c0] sm:$0xf]
    %v5551 = vld [vmem:[#allocation11 + $0x1c4] sm:$0xf]
    %v5552 = vld [vmem:[#allocation11 + $0x1c8] sm:$0xf]
    %v5553 = vld [vmem:[#allocation11 + $0x1cc] sm:$0xf]
    %v5554 = vld [vmem:[#allocation11 + $0x1d0] sm:$0xf]
    %v5555 = vld [vmem:[#allocation11 + $0x1d4] sm:$0xf]
    %v5556 = vld [vmem:[#allocation11 + $0x1d8] sm:$0xf]
    %v5557 = vld [vmem:[#allocation11 + $0x1dc] sm:$0xf]
    %v5558 = vld [vmem:[#allocation11 + $0x1e0] sm:$0xf]
    %v5559 = vld [vmem:[#allocation11 + $0x1e4] sm:$0xf]
    %v5560 = vld [vmem:[#allocation11 + $0x1e8] sm:$0xf]
    %v5561 = vld [vmem:[#allocation11 + $0x1ec] sm:$0xf]
    %v5562 = vld [vmem:[#allocation11 + $0x1f0] sm:$0xf]
    %v5563 = vld [vmem:[#allocation11 + $0x1f4] sm:$0xf]
    %v5564 = vld [vmem:[#allocation11 + $0x1f8] sm:$0xf]
    %v5565 = vld [vmem:[#allocation11 + $0x1fc] sm:$0xf]
    %v5566 = vld [vmem:[#allocation13] sm:$0x1]
    %v5568 = vlaneseq
    %v5569 = vshrl.u32 %v5568, 7
    %v5570 = vsub.s32 0, %v5569
    %v5571 = vrot.slane %v5566, %v5570
    %v5701 = vunpack.c.l.b16 %v5438
    %v5702 = vunpack.c.l.b16 %v5439
    %v5703 = vunpack.c.l.b16 %v5440
    %v5704 = vunpack.c.l.b16 %v5441
    %v5705 = vunpack.c.l.b16 %v5442
    %v5706 = vunpack.c.l.b16 %v5443
    %v5707 = vunpack.c.l.b16 %v5444
    %v5708 = vunpack.c.l.b16 %v5445
    %v5709 = vunpack.c.l.b16 %v5446
    %v5710 = vunpack.c.l.b16 %v5447
    %v5711 = vunpack.c.l.b16 %v5448
    %v5712 = vunpack.c.l.b16 %v5449
    %v5713 = vunpack.c.l.b16 %v5450
    %v5714 = vunpack.c.l.b16 %v5451
    %v5715 = vunpack.c.l.b16 %v5452
    %v5716 = vunpack.c.l.b16 %v5453
    %v5717 = vunpack.c.l.b16 %v5454
    %v5718 = vunpack.c.l.b16 %v5455
    %v5719 = vunpack.c.l.b16 %v5456
    %v5720 = vunpack.c.l.b16 %v5457
    %v5721 = vunpack.c.l.b16 %v5458
    %v5722 = vunpack.c.l.b16 %v5459
    %v5723 = vunpack.c.l.b16 %v5460
    %v5724 = vunpack.c.l.b16 %v5461
    %v5725 = vunpack.c.l.b16 %v5462
    %v5726 = vunpack.c.l.b16 %v5463
    %v5727 = vunpack.c.l.b16 %v5464
    %v5728 = vunpack.c.l.b16 %v5465
    %v5729 = vunpack.c.l.b16 %v5466
    %v5730 = vunpack.c.l.b16 %v5467
    %v5731 = vunpack.c.l.b16 %v5468
    %v5732 = vunpack.c.l.b16 %v5469
    %v5733 = vunpack.c.l.b16 %v5470
    %v5734 = vunpack.c.l.b16 %v5471
    %v5735 = vunpack.c.l.b16 %v5472
    %v5736 = vunpack.c.l.b16 %v5473
    %v5737 = vunpack.c.l.b16 %v5474
    %v5738 = vunpack.c.l.b16 %v5475
    %v5739 = vunpack.c.l.b16 %v5476
    %v5740 = vunpack.c.l.b16 %v5477
    %v5741 = vunpack.c.l.b16 %v5478
    %v5742 = vunpack.c.l.b16 %v5479
    %v5743 = vunpack.c.l.b16 %v5480
    %v5744 = vunpack.c.l.b16 %v5481
    %v5745 = vunpack.c.l.b16 %v5482
    %v5746 = vunpack.c.l.b16 %v5483
    %v5747 = vunpack.c.l.b16 %v5484
    %v5748 = vunpack.c.l.b16 %v5485
    %v5749 = vunpack.c.l.b16 %v5486
    %v5750 = vunpack.c.l.b16 %v5487
    %v5751 = vunpack.c.l.b16 %v5488
    %v5752 = vunpack.c.l.b16 %v5489
    %v5753 = vunpack.c.l.b16 %v5490
    %v5754 = vunpack.c.l.b16 %v5491
    %v5755 = vunpack.c.l.b16 %v5492
    %v5756 = vunpack.c.l.b16 %v5493
    %v5757 = vunpack.c.l.b16 %v5494
    %v5758 = vunpack.c.l.b16 %v5495
    %v5759 = vunpack.c.l.b16 %v5496
    %v5760 = vunpack.c.l.b16 %v5497
    %v5761 = vunpack.c.l.b16 %v5498
    %v5762 = vunpack.c.l.b16 %v5499
    %v5763 = vunpack.c.l.b16 %v5500
    %v5764 = vunpack.c.l.b16 %v5501
    %v5765 = vunpack.c.l.b16 %v5502
    %v5766 = vunpack.c.l.b16 %v5503
    %v5767 = vunpack.c.l.b16 %v5504
    %v5768 = vunpack.c.l.b16 %v5505
    %v5769 = vunpack.c.l.b16 %v5506
    %v5770 = vunpack.c.l.b16 %v5507
    %v5771 = vunpack.c.l.b16 %v5508
    %v5772 = vunpack.c.l.b16 %v5509
    %v5773 = vunpack.c.l.b16 %v5510
    %v5774 = vunpack.c.l.b16 %v5511
    %v5775 = vunpack.c.l.b16 %v5512
    %v5776 = vunpack.c.l.b16 %v5513
    %v5777 = vunpack.c.l.b16 %v5514
    %v5778 = vunpack.c.l.b16 %v5515
    %v5779 = vunpack.c.l.b16 %v5516
    %v5780 = vunpack.c.l.b16 %v5517
    %v5781 = vunpack.c.l.b16 %v5518
    %v5782 = vunpack.c.l.b16 %v5519
    %v5783 = vunpack.c.l.b16 %v5520
    %v5784 = vunpack.c.l.b16 %v5521
    %v5785 = vunpack.c.l.b16 %v5522
    %v5786 = vunpack.c.l.b16 %v5523
    %v5787 = vunpack.c.l.b16 %v5524
    %v5788 = vunpack.c.l.b16 %v5525
    %v5789 = vunpack.c.l.b16 %v5526
    %v5790 = vunpack.c.l.b16 %v5527
    %v5791 = vunpack.c.l.b16 %v5528
    %v5792 = vunpack.c.l.b16 %v5529
    %v5793 = vunpack.c.l.b16 %v5530
    %v5794 = vunpack.c.l.b16 %v5531
    %v5795 = vunpack.c.l.b16 %v5532
    %v5796 = vunpack.c.l.b16 %v5533
    %v5797 = vunpack.c.l.b16 %v5534
    %v5798 = vunpack.c.l.b16 %v5535
    %v5799 = vunpack.c.l.b16 %v5536
    %v5800 = vunpack.c.l.b16 %v5537
    %v5801 = vunpack.c.l.b16 %v5538
    %v5802 = vunpack.c.l.b16 %v5539
    %v5803 = vunpack.c.l.b16 %v5540
    %v5804 = vunpack.c.l.b16 %v5541
    %v5805 = vunpack.c.l.b16 %v5542
    %v5806 = vunpack.c.l.b16 %v5543
    %v5807 = vunpack.c.l.b16 %v5544
    %v5808 = vunpack.c.l.b16 %v5545
    %v5809 = vunpack.c.l.b16 %v5546
    %v5810 = vunpack.c.l.b16 %v5547
    %v5811 = vunpack.c.l.b16 %v5548
    %v5812 = vunpack.c.l.b16 %v5549
    %v5813 = vunpack.c.l.b16 %v5550
    %v5814 = vunpack.c.l.b16 %v5551
    %v5815 = vunpack.c.l.b16 %v5552
    %v5816 = vunpack.c.l.b16 %v5553
    %v5817 = vunpack.c.l.b16 %v5554
    %v5818 = vunpack.c.l.b16 %v5555
    %v5819 = vunpack.c.l.b16 %v5556
    %v5820 = vunpack.c.l.b16 %v5557
    %v5821 = vunpack.c.l.b16 %v5558
    %v5822 = vunpack.c.l.b16 %v5559
    %v5823 = vunpack.c.l.b16 %v5560
    %v5824 = vunpack.c.l.b16 %v5561
    %v5825 = vunpack.c.l.b16 %v5562
    %v5826 = vunpack.c.l.b16 %v5563
    %v5827 = vunpack.c.l.b16 %v5564
    %v5828 = vunpack.c.l.b16 %v5565
    %v5829 = vpack.c.b16 %v5702, %v5701
    %v5830 = vpack.c.b16 %v5704, %v5703
    %v5831 = vpack.c.b16 %v5706, %v5705
    %v5832 = vpack.c.b16 %v5708, %v5707
    %v5833 = vpack.c.b16 %v5710, %v5709
    %v5834 = vpack.c.b16 %v5712, %v5711
    %v5835 = vpack.c.b16 %v5714, %v5713
    %v5836 = vpack.c.b16 %v5716, %v5715
    %v5837 = vpack.c.b16 %v5718, %v5717
    %v5838 = vpack.c.b16 %v5720, %v5719
    %v5839 = vpack.c.b16 %v5722, %v5721
    %v5840 = vpack.c.b16 %v5724, %v5723
    %v5841 = vpack.c.b16 %v5726, %v5725
    %v5842 = vpack.c.b16 %v5728, %v5727
    %v5843 = vpack.c.b16 %v5730, %v5729
    %v5844 = vpack.c.b16 %v5732, %v5731
    %v5845 = vpack.c.b16 %v5734, %v5733
    %v5846 = vpack.c.b16 %v5736, %v5735
    %v5847 = vpack.c.b16 %v5738, %v5737
    %v5848 = vpack.c.b16 %v5740, %v5739
    %v5849 = vpack.c.b16 %v5742, %v5741
    %v5850 = vpack.c.b16 %v5744, %v5743
    %v5851 = vpack.c.b16 %v5746, %v5745
    %v5852 = vpack.c.b16 %v5748, %v5747
    %v5853 = vpack.c.b16 %v5750, %v5749
    %v5854 = vpack.c.b16 %v5752, %v5751
    %v5855 = vpack.c.b16 %v5754, %v5753
    %v5856 = vpack.c.b16 %v5756, %v5755
    %v5857 = vpack.c.b16 %v5758, %v5757
    %v5858 = vpack.c.b16 %v5760, %v5759
    %v5859 = vpack.c.b16 %v5762, %v5761
    %v5860 = vpack.c.b16 %v5764, %v5763
    %v5861 = vpack.c.b16 %v5766, %v5765
    %v5862 = vpack.c.b16 %v5768, %v5767
    %v5863 = vpack.c.b16 %v5770, %v5769
    %v5864 = vpack.c.b16 %v5772, %v5771
    %v5865 = vpack.c.b16 %v5774, %v5773
    %v5866 = vpack.c.b16 %v5776, %v5775
    %v5867 = vpack.c.b16 %v5778, %v5777
    %v5868 = vpack.c.b16 %v5780, %v5779
    %v5869 = vpack.c.b16 %v5782, %v5781
    %v5870 = vpack.c.b16 %v5784, %v5783
    %v5871 = vpack.c.b16 %v5786, %v5785
    %v5872 = vpack.c.b16 %v5788, %v5787
    %v5873 = vpack.c.b16 %v5790, %v5789
    %v5874 = vpack.c.b16 %v5792, %v5791
    %v5875 = vpack.c.b16 %v5794, %v5793
    %v5876 = vpack.c.b16 %v5796, %v5795
    %v5877 = vpack.c.b16 %v5798, %v5797
    %v5878 = vpack.c.b16 %v5800, %v5799
    %v5879 = vpack.c.b16 %v5802, %v5801
    %v5880 = vpack.c.b16 %v5804, %v5803
    %v5881 = vpack.c.b16 %v5806, %v5805
    %v5882 = vpack.c.b16 %v5808, %v5807
    %v5883 = vpack.c.b16 %v5810, %v5809
    %v5884 = vpack.c.b16 %v5812, %v5811
    %v5885 = vpack.c.b16 %v5814, %v5813
    %v5886 = vpack.c.b16 %v5816, %v5815
    %v5887 = vpack.c.b16 %v5818, %v5817
    %v5888 = vpack.c.b16 %v5820, %v5819
    %v5889 = vpack.c.b16 %v5822, %v5821
    %v5890 = vpack.c.b16 %v5824, %v5823
    %v5891 = vpack.c.b16 %v5826, %v5825
    %v5892 = vpack.c.b16 %v5828, %v5827
    %5957 = vmatprep.subr.bf16.mxu0 0
    %5958 = vmatpush1.bf16.msra.mxu0 %v5829
    %5959 = vmatprep.subr.bf16.mxu0 0
    %5960 = vmatpush1.bf16.msra.mxu0 %v5830
    %5961 = vmatprep.subr.bf16.mxu0 0
    %5962 = vmatpush1.bf16.msra.mxu0 %v5831
    %5963 = vmatprep.subr.bf16.mxu0 0
    %5964 = vmatpush1.bf16.msra.mxu0 %v5832
    %5965 = vmatprep.subr.bf16.mxu0 0
    %5966 = vmatpush1.bf16.msra.mxu0 %v5833
    %5967 = vmatprep.subr.bf16.mxu0 0
    %5968 = vmatpush1.bf16.msra.mxu0 %v5834
    %5969 = vmatprep.subr.bf16.mxu0 0
    %5970 = vmatpush1.bf16.msra.mxu0 %v5835
    %5971 = vmatprep.subr.bf16.mxu0 0
    %5972 = vmatpush1.bf16.msra.mxu0 %v5836
    %5973 = vmatprep.subr.bf16.mxu0 0
    %5974 = vmatpush1.bf16.msra.mxu0 %v5837
    %5975 = vmatprep.subr.bf16.mxu0 0
    %5976 = vmatpush1.bf16.msra.mxu0 %v5838
    %5977 = vmatprep.subr.bf16.mxu0 0
    %5978 = vmatpush1.bf16.msra.mxu0 %v5839
    %5979 = vmatprep.subr.bf16.mxu0 0
    %5980 = vmatpush1.bf16.msra.mxu0 %v5840
    %5981 = vmatprep.subr.bf16.mxu0 0
    %5982 = vmatpush1.bf16.msra.mxu0 %v5841
    %5983 = vmatprep.subr.bf16.mxu0 0
    %5984 = vmatpush1.bf16.msra.mxu0 %v5842
    %5985 = vmatprep.subr.bf16.mxu0 0
    %5986 = vmatpush1.bf16.msra.mxu0 %v5843
    %5987 = vmatprep.subr.bf16.mxu0 0
    %5988 = vmatpush1.bf16.msra.mxu0 %v5844
    %5989 = vmatprep.mubr.bf16.mxu0 %v5431
    %5990 = vmatmul.mubr.bf16.gmra.mrb[0].mxu0 %v5430
    %v5991 = vpop.f32.mrb[0].mxu0
    %v5992 = vadd.f32 %v5571, %v5991
    %v5993 = vpop.f32.mrb[0].mxu0
    %v5994 = vpop.f32.mrb[0].mxu0
    %v5995 = vpop.f32.mrb[0].mxu0
    %5996 = vdwg.mxu0
    %5997 = vmatprep.subr.bf16.mxu0 0
    %5998 = vmatpush1.bf16.msra.mxu0 %v5845
    %5999 = vmatprep.subr.bf16.mxu0 0
    %6000 = vmatpush1.bf16.msra.mxu0 %v5846
    %6001 = vmatprep.subr.bf16.mxu0 0
    %6002 = vmatpush1.bf16.msra.mxu0 %v5847
    %6003 = vmatprep.subr.bf16.mxu0 0
    %6004 = vmatpush1.bf16.msra.mxu0 %v5848
    %6005 = vmatprep.subr.bf16.mxu0 0
    %6006 = vmatpush1.bf16.msra.mxu0 %v5849
    %6007 = vmatprep.subr.bf16.mxu0 0
    %6008 = vmatpush1.bf16.msra.mxu0 %v5850
    %6009 = vmatprep.subr.bf16.mxu0 0
    %6010 = vmatpush1.bf16.msra.mxu0 %v5851
    %6011 = vmatprep.subr.bf16.mxu0 0
    %6012 = vmatpush1.bf16.msra.mxu0 %v5852
    %6013 = vmatprep.subr.bf16.mxu0 0
    %6014 = vmatpush1.bf16.msra.mxu0 %v5853
    %6015 = vmatprep.subr.bf16.mxu0 0
    %6016 = vmatpush1.bf16.msra.mxu0 %v5854
    %6017 = vmatprep.subr.bf16.mxu0 0
    %6018 = vmatpush1.bf16.msra.mxu0 %v5855
    %6019 = vmatprep.subr.bf16.mxu0 0
    %6020 = vmatpush1.bf16.msra.mxu0 %v5856
    %6021 = vmatprep.subr.bf16.mxu0 0
    %6022 = vmatpush1.bf16.msra.mxu0 %v5857
    %6023 = vmatprep.subr.bf16.mxu0 0
    %6024 = vmatpush1.bf16.msra.mxu0 %v5858
    %6025 = vmatprep.subr.bf16.mxu0 0
    %6026 = vmatpush1.bf16.msra.mxu0 %v5859
    %6027 = vmatprep.subr.bf16.mxu0 0
    %6028 = vmatpush1.bf16.msra.mxu0 %v5860
    %6029 = vmatprep.mubr.bf16.mxu0 %v5433
    %6030 = vmatmul.mubr.bf16.gmra.mrb[0].mxu0 %v5432
    %v6031 = vpop.f32.mrb[0].mxu0
    %v6032 = vadd.f32 %v5992, %v6031
    %v6033 = vpop.f32.mrb[0].mxu0
    %v6034 = vpop.f32.mrb[0].mxu0
    %v6035 = vpop.f32.mrb[0].mxu0
    %6036 = vdwg.mxu0
    %6037 = vmatprep.subr.bf16.mxu0 0
    %6038 = vmatpush1.bf16.msra.mxu0 %v5861
    %6039 = vmatprep.subr.bf16.mxu0 0
    %6040 = vmatpush1.bf16.msra.mxu0 %v5862
    %6041 = vmatprep.subr.bf16.mxu0 0
    %6042 = vmatpush1.bf16.msra.mxu0 %v5863
    %6043 = vmatprep.subr.bf16.mxu0 0
    %6044 = vmatpush1.bf16.msra.mxu0 %v5864
    %6045 = vmatprep.subr.bf16.mxu0 0
    %6046 = vmatpush1.bf16.msra.mxu0 %v5865
    %6047 = vmatprep.subr.bf16.mxu0 0
    %6048 = vmatpush1.bf16.msra.mxu0 %v5866
    %6049 = vmatprep.subr.bf16.mxu0 0
    %6050 = vmatpush1.bf16.msra.mxu0 %v5867
    %6051 = vmatprep.subr.bf16.mxu0 0
    %6052 = vmatpush1.bf16.msra.mxu0 %v5868
    %6053 = vmatprep.subr.bf16.mxu0 0
    %6054 = vmatpush1.bf16.msra.mxu0 %v5869
    %6055 = vmatprep.subr.bf16.mxu0 0
    %6056 = vmatpush1.bf16.msra.mxu0 %v5870
    %6057 = vmatprep.subr.bf16.mxu0 0
    %6058 = vmatpush1.bf16.msra.mxu0 %v5871
    %6059 = vmatprep.subr.bf16.mxu0 0
    %6060 = vmatpush1.bf16.msra.mxu0 %v5872
    %6061 = vmatprep.subr.bf16.mxu0 0
    %6062 = vmatpush1.bf16.msra.mxu0 %v5873
    %6063 = vmatprep.subr.bf16.mxu0 0
    %6064 = vmatpush1.bf16.msra.mxu0 %v5874
    %6065 = vmatprep.subr.bf16.mxu0 0
    %6066 = vmatpush1.bf16.msra.mxu0 %v5875
    %6067 = vmatprep.subr.bf16.mxu0 0
    %6068 = vmatpush1.bf16.msra.mxu0 %v5876
    %6069 = vmatprep.mubr.bf16.mxu0 %v5435
    %6070 = vmatmul.mubr.bf16.gmra.mrb[0].mxu0 %v5434
    %v6071 = vpop.f32.mrb[0].mxu0
    %v6072 = vadd.f32 %v6032, %v6071
    %v6073 = vpop.f32.mrb[0].mxu0
    %v6074 = vpop.f32.mrb[0].mxu0
    %v6075 = vpop.f32.mrb[0].mxu0
    %6076 = vdwg.mxu0
    %6077 = vmatprep.subr.bf16.mxu0 0
    %6078 = vmatpush1.bf16.msra.mxu0 %v5877
    %6079 = vmatprep.subr.bf16.mxu0 0
    %6080 = vmatpush1.bf16.msra.mxu0 %v5878
    %6081 = vmatprep.subr.bf16.mxu0 0
    %6082 = vmatpush1.bf16.msra.mxu0 %v5879
    %6083 = vmatprep.subr.bf16.mxu0 0
    %6084 = vmatpush1.bf16.msra.mxu0 %v5880
    %6085 = vmatprep.subr.bf16.mxu0 0
    %6086 = vmatpush1.bf16.msra.mxu0 %v5881
    %6087 = vmatprep.subr.bf16.mxu0 0
    %6088 = vmatpush1.bf16.msra.mxu0 %v5882
    %6089 = vmatprep.subr.bf16.mxu0 0
    %6090 = vmatpush1.bf16.msra.mxu0 %v5883
    %6091 = vmatprep.subr.bf16.mxu0 0
    %6092 = vmatpush1.bf16.msra.mxu0 %v5884
    %6093 = vmatprep.subr.bf16.mxu0 0
    %6094 = vmatpush1.bf16.msra.mxu0 %v5885
    %6095 = vmatprep.subr.bf16.mxu0 0
    %6096 = vmatpush1.bf16.msra.mxu0 %v5886
    %6097 = vmatprep.subr.bf16.mxu0 0
    %6098 = vmatpush1.bf16.msra.mxu0 %v5887
    %6099 = vmatprep.subr.bf16.mxu0 0
    %6100 = vmatpush1.bf16.msra.mxu0 %v5888
    %6101 = vmatprep.subr.bf16.mxu0 0
    %6102 = vmatpush1.bf16.msra.mxu0 %v5889
    %6103 = vmatprep.subr.bf16.mxu0 0
    %6104 = vmatpush1.bf16.msra.mxu0 %v5890
    %6105 = vmatprep.subr.bf16.mxu0 0
    %6106 = vmatpush1.bf16.msra.mxu0 %v5891
    %6107 = vmatprep.subr.bf16.mxu0 0
    %6108 = vmatpush1.bf16.msra.mxu0 %v5892
    %6109 = vmatprep.mubr.bf16.mxu0 %v5437
    %6110 = vmatmul.mubr.bf16.gmra.mrb[0].mxu0 %v5436
    %v6111 = vpop.f32.mrb[0].mxu0
    %v6112 = vadd.f32 %v6072, %v6111
    %v6113 = vpop.f32.mrb[0].mxu0
    %v6114 = vpop.f32.mrb[0].mxu0
    %v6115 = vpop.f32.mrb[0].mxu0
    %6116 = vdwg.mxu0
    %v6117 = vmax.f32 %v6112, 0.0
    %v6118 = vpack.c.bf16 %v6117, %v6117
    %v6119 = vld [vmem:[#allocation14] sm:$0xf]
    %v6120 = vld [vmem:[#allocation14 + $0x4] sm:$0xf]
    %v6121 = vld [vmem:[#allocation14 + $0x8] sm:$0xf]
    %v6122 = vld [vmem:[#allocation14 + $0xc] sm:$0xf]
    %v6123 = vld [vmem:[#allocation14 + $0x10] sm:$0xf]
    %v6124 = vld [vmem:[#allocation14 + $0x14] sm:$0xf]
    %v6125 = vld [vmem:[#allocation14 + $0x18] sm:$0xf]
    %v6126 = vld [vmem:[#allocation14 + $0x1c] sm:$0xf]
    %v6127 = vld [vmem:[#allocation14 + $0x20] sm:$0xf]
    %v6128 = vld [vmem:[#allocation14 + $0x24] sm:$0xf]
    %v6129 = vld [vmem:[#allocation14 + $0x28] sm:$0xf]
    %v6130 = vld [vmem:[#allocation14 + $0x2c] sm:$0xf]
    %v6131 = vld [vmem:[#allocation14 + $0x30] sm:$0xf]
    %v6132 = vld [vmem:[#allocation14 + $0x34] sm:$0xf]
    %v6133 = vld [vmem:[#allocation14 + $0x38] sm:$0xf]
    %v6134 = vld [vmem:[#allocation14 + $0x3c] sm:$0xf]
    %v6135 = vld [vmem:[#allocation16] sm:$0xf]
    %v6136 = vld [vmem:[#allocation16 + $0x4] sm:$0xf]
    %v6137 = vld [vmem:[#allocation16 + $0x8] sm:$0xf]
    %v6138 = vld [vmem:[#allocation16 + $0xc] sm:$0xf]
    %v6139 = vld [vmem:[#allocation16 + $0x10] sm:$0xf]
    %v6140 = vld [vmem:[#allocation16 + $0x14] sm:$0xf]
    %v6141 = vld [vmem:[#allocation16 + $0x18] sm:$0xf]
    %v6142 = vld [vmem:[#allocation16 + $0x1c] sm:$0xf]
    %v6143 = vld [vmem:[#allocation16 + $0x20] sm:$0xf]
    %v6144 = vld [vmem:[#allocation16 + $0x24] sm:$0xf]
    %v6145 = vld [vmem:[#allocation16 + $0x28] sm:$0xf]
    %v6146 = vld [vmem:[#allocation16 + $0x2c] sm:$0xf]
    %v6147 = vld [vmem:[#allocation16 + $0x30] sm:$0xf]
    %v6148 = vld [vmem:[#allocation16 + $0x34] sm:$0xf]
    %v6149 = vld [vmem:[#allocation16 + $0x38] sm:$0xf]
    %v6150 = vld [vmem:[#allocation16 + $0x3c] sm:$0xf]
    %v6151 = vld [vmem:[#allocation16 + $0x40] sm:$0xf]
    %v6152 = vld [vmem:[#allocation16 + $0x44] sm:$0xf]
    %v6153 = vld [vmem:[#allocation16 + $0x48] sm:$0xf]
    %v6154 = vld [vmem:[#allocation16 + $0x4c] sm:$0xf]
    %v6155 = vld [vmem:[#allocation16 + $0x50] sm:$0xf]
    %v6156 = vld [vmem:[#allocation16 + $0x54] sm:$0xf]
    %v6157 = vld [vmem:[#allocation16 + $0x58] sm:$0xf]
    %v6158 = vld [vmem:[#allocation16 + $0x5c] sm:$0xf]
    %v6159 = vld [vmem:[#allocation16 + $0x60] sm:$0xf]
    %v6160 = vld [vmem:[#allocation16 + $0x64] sm:$0xf]
    %v6161 = vld [vmem:[#allocation16 + $0x68] sm:$0xf]
    %v6162 = vld [vmem:[#allocation16 + $0x6c] sm:$0xf]
    %v6163 = vld [vmem:[#allocation16 + $0x70] sm:$0xf]
    %v6164 = vld [vmem:[#allocation16 + $0x74] sm:$0xf]
    %v6165 = vld [vmem:[#allocation16 + $0x78] sm:$0xf]
    %v6166 = vld [vmem:[#allocation16 + $0x7c] sm:$0xf]
    %v6167 = vld [vmem:[#allocation16 + $0x80] sm:$0xf]
    %v6168 = vld [vmem:[#allocation16 + $0x84] sm:$0xf]
    %v6169 = vld [vmem:[#allocation16 + $0x88] sm:$0xf]
    %v6170 = vld [vmem:[#allocation16 + $0x8c] sm:$0xf]
    %v6171 = vld [vmem:[#allocation16 + $0x90] sm:$0xf]
    %v6172 = vld [vmem:[#allocation16 + $0x94] sm:$0xf]
    %v6173 = vld [vmem:[#allocation16 + $0x98] sm:$0xf]
    %v6174 = vld [vmem:[#allocation16 + $0x9c] sm:$0xf]
    %v6175 = vld [vmem:[#allocation16 + $0xa0] sm:$0xf]
    %v6176 = vld [vmem:[#allocation16 + $0xa4] sm:$0xf]
    %v6177 = vld [vmem:[#allocation16 + $0xa8] sm:$0xf]
    %v6178 = vld [vmem:[#allocation16 + $0xac] sm:$0xf]
    %v6223 = vunpack.c.l.b16 %v6135
    %v6224 = vunpack.c.l.b16 %v6136
    %v6225 = vunpack.c.l.b16 %v6137
    %v6226 = vunpack.c.l.b16 %v6138
    %v6227 = vunpack.c.l.b16 %v6139
    %v6228 = vunpack.c.l.b16 %v6140
    %v6229 = vunpack.c.l.b16 %v6141
    %v6230 = vunpack.c.l.b16 %v6142
    %v6231 = vunpack.c.l.b16 %v6143
    %v6232 = vunpack.c.l.b16 %v6144
    %v6233 = vunpack.c.l.b16 %v6145
    %v6234 = vunpack.c.l.b16 %v6146
    %v6235 = vunpack.c.l.b16 %v6147
    %v6236 = vunpack.c.l.b16 %v6148
    %v6237 = vunpack.c.l.b16 %v6149
    %v6238 = vunpack.c.l.b16 %v6150
    %v6239 = vunpack.c.l.b16 %v6151
    %v6240 = vunpack.c.l.b16 %v6152
    %v6241 = vunpack.c.l.b16 %v6153
    %v6242 = vunpack.c.l.b16 %v6154
    %v6243 = vunpack.c.l.b16 %v6155
    %v6244 = vunpack.c.l.b16 %v6156
    %v6245 = vunpack.c.l.b16 %v6157
    %v6246 = vunpack.c.l.b16 %v6158
    %v6247 = vunpack.c.l.b16 %v6159
    %v6248 = vunpack.c.l.b16 %v6160
    %v6249 = vunpack.c.l.b16 %v6161
    %v6250 = vunpack.c.l.b16 %v6162
    %v6251 = vunpack.c.l.b16 %v6163
    %v6252 = vunpack.c.l.b16 %v6164
    %v6253 = vunpack.c.l.b16 %v6165
    %v6254 = vunpack.c.l.b16 %v6166
    %v6255 = vunpack.c.l.b16 %v6167
    %v6256 = vunpack.c.l.b16 %v6168
    %v6257 = vunpack.c.l.b16 %v6169
    %v6258 = vunpack.c.l.b16 %v6170
    %v6259 = vunpack.c.l.b16 %v6171
    %v6260 = vunpack.c.l.b16 %v6172
    %v6261 = vunpack.c.l.b16 %v6173
    %v6262 = vunpack.c.l.b16 %v6174
    %v6263 = vunpack.c.l.b16 %v6175
    %v6264 = vunpack.c.l.b16 %v6176
    %v6265 = vunpack.c.l.b16 %v6177
    %v6266 = vunpack.c.l.b16 %v6178
    %v6267 = vpack.c.b16 %v6224, %v6223
    %v6268 = vpack.c.b16 %v6226, %v6225
    %v6269 = vpack.c.b16 %v6228, %v6227
    %v6270 = vpack.c.b16 %v6230, %v6229
    %v6271 = vpack.c.b16 %v6232, %v6231
    %v6272 = vpack.c.b16 %v6234, %v6233
    %v6273 = vpack.c.b16 %v6236, %v6235
    %v6274 = vpack.c.b16 %v6238, %v6237
    %v6275 = vpack.c.b16 %v6240, %v6239
    %v6276 = vpack.c.b16 %v6242, %v6241
    %v6277 = vpack.c.b16 %v6244, %v6243
    %v6278 = vpack.c.b16 %v6246, %v6245
    %v6279 = vpack.c.b16 %v6248, %v6247
    %v6280 = vpack.c.b16 %v6250, %v6249
    %v6281 = vpack.c.b16 %v6252, %v6251
    %v6282 = vpack.c.b16 %v6254, %v6253
    %v6283 = vpack.c.b16 %v6256, %v6255
    %v6284 = vpack.c.b16 %v6258, %v6257
    %v6285 = vpack.c.b16 %v6260, %v6259
    %v6286 = vpack.c.b16 %v6262, %v6261
    %v6287 = vpack.c.b16 %v6264, %v6263
    %v6288 = vpack.c.b16 %v6266, %v6265
    %6311 = vmatprep.subr.bf16.mxu0 0
    %6312 = vmatpush1.bf16.msra.mxu0 %v6267
    %6313 = vmatprep.subr.bf16.mxu0 0
    %6314 = vmatpush1.bf16.msra.mxu0 %v6268
    %6315 = vmatprep.subr.bf16.mxu0 0
    %6316 = vmatpush1.bf16.msra.mxu0 %v6269
    %6317 = vmatprep.subr.bf16.mxu0 0
    %6318 = vmatpush1.bf16.msra.mxu0 %v6270
    %6319 = vmatprep.subr.bf16.mxu0 0
    %6320 = vmatpush1.bf16.msra.mxu0 %v6271
    %6321 = vmatprep.subr.bf16.mxu0 0
    %6322 = vmatpush1.bf16.msra.mxu0 %v6272
    %6323 = vmatprep.subr.bf16.mxu0 0
    %6324 = vmatpush1.bf16.msra.mxu0 %v6273
    %6325 = vmatprep.subr.bf16.mxu0 0
    %6326 = vmatpush1.bf16.msra.mxu0 %v6274
    %6327 = vmatprep.subr.bf16.mxu0 0
    %6328 = vmatpush1.bf16.msra.mxu0 %v6275
    %6329 = vmatprep.subr.bf16.mxu0 0
    %6330 = vmatpush1.bf16.msra.mxu0 %v6276
    %6331 = vmatprep.subr.bf16.mxu0 0
    %6332 = vmatpush1.bf16.msra.mxu0 %v6277
    %6333 = vmatprep.subr.bf16.mxu0 0
    %6334 = vmatpush1.bf16.msra.mxu0 %v6278
    %6335 = vmatprep.subr.bf16.mxu0 0
    %6336 = vmatpush1.bf16.msra.mxu0 %v6279
    %6337 = vmatprep.subr.bf16.mxu0 0
    %6338 = vmatpush1.bf16.msra.mxu0 %v6280
    %6339 = vmatprep.subr.bf16.mxu0 0
    %6340 = vmatpush1.bf16.msra.mxu0 %v6281
    %6341 = vmatprep.subr.bf16.mxu0 0
    %6342 = vmatpush1.bf16.msra.mxu0 %v6282
    %6343 = vmatprep.mubr.bf16.mxu0 %v420
    %6344 = vmatmul.mubr.bf16.gmra.mrb[0].mxu0 %v419
    %v6345 = vpop.f32.mrb[0].mxu0
    %v6346 = vadd.f32 0.0, %v6345
    %v6347 = vpop.f32.mrb[0].mxu0
    %v6348 = vpop.f32.mrb[0].mxu0
    %v6349 = vpop.f32.mrb[0].mxu0
    %6350 = vdwg.mxu0
    %6351 = vmatprep.subr.bf16.mxu0 0
    %6352 = vmatpush1.bf16.msra.mxu0 %v6283
    %6353 = vmatprep.subr.bf16.mxu0 0
    %6354 = vmatpush1.bf16.msra.mxu0 %v6284
    %6355 = vmatprep.subr.bf16.mxu0 0
    %6356 = vmatpush1.bf16.msra.mxu0 %v6285
    %6357 = vmatprep.subr.bf16.mxu0 0
    %6358 = vmatpush1.bf16.msra.mxu0 %v6286
    %6359 = vmatprep.subr.bf16.mxu0 0
    %6360 = vmatpush1.bf16.msra.mxu0 %v6287
    %6361 = vmatprep.subr.bf16.mxu0 0
    %6362 = vmatpush1.bf16.msra.mxu0 %v6288
    %6363 = vmatprep.subr.bf16.mxu0 0
    %6364 = vmatpush1.bf16.msra.mxu0 0
    %6365 = vmatprep.subr.bf16.mxu0 0
    %6366 = vmatpush1.bf16.msra.mxu0 0
    %6367 = vmatprep.subr.bf16.mxu0 0
    %6368 = vmatpush1.bf16.msra.mxu0 0
    %6369 = vmatprep.subr.bf16.mxu0 0
    %6370 = vmatpush1.bf16.msra.mxu0 0
    %6371 = vmatprep.subr.bf16.mxu0 0
    %6372 = vmatpush1.bf16.msra.mxu0 0
    %6373 = vmatprep.subr.bf16.mxu0 0
    %6374 = vmatpush1.bf16.msra.mxu0 0
    %6375 = vmatprep.subr.bf16.mxu0 0
    %6376 = vmatpush1.bf16.msra.mxu0 0
    %6377 = vmatprep.subr.bf16.mxu0 0
    %6378 = vmatpush1.bf16.msra.mxu0 0
    %6379 = vmatprep.subr.bf16.mxu0 0
    %6380 = vmatpush1.bf16.msra.mxu0 0
    %6381 = vmatprep.subr.bf16.mxu0 0
    %6382 = vmatpush1.bf16.msra.mxu0 0
    %6383 = vmatprep.mubr.bf16.mxu0 0
    %6384 = vmatmul.mubr.bf16.gmra.mrb[0].mxu0 %v1306
    %v6385 = vpop.f32.mrb[0].mxu0
    %v6386 = vadd.f32 %v6346, %v6385
    %v6387 = vpop.f32.mrb[0].mxu0
    %v6388 = vpop.f32.mrb[0].mxu0
    %v6389 = vpop.f32.mrb[0].mxu0
    %6390 = vdwg.mxu0
    %v6407 = vunpack.c.l.b16 %v6119
    %v6408 = vunpack.c.l.b16 %v6120
    %v6409 = vunpack.c.l.b16 %v6121
    %v6410 = vunpack.c.l.b16 %v6122
    %v6411 = vunpack.c.l.b16 %v6123
    %v6412 = vunpack.c.l.b16 %v6124
    %v6413 = vunpack.c.l.b16 %v6125
    %v6414 = vunpack.c.l.b16 %v6126
    %v6415 = vunpack.c.l.b16 %v6127
    %v6416 = vunpack.c.l.b16 %v6128
    %v6417 = vunpack.c.l.b16 %v6129
    %v6418 = vunpack.c.l.b16 %v6130
    %v6419 = vunpack.c.l.b16 %v6131
    %v6420 = vunpack.c.l.b16 %v6132
    %v6421 = vunpack.c.l.b16 %v6133
    %v6422 = vunpack.c.l.b16 %v6134
    %v6423 = vpack.c.b16 %v6408, %v6407
    %v6424 = vpack.c.b16 %v6410, %v6409
    %v6425 = vpack.c.b16 %v6412, %v6411
    %v6426 = vpack.c.b16 %v6414, %v6413
    %v6427 = vpack.c.b16 %v6416, %v6415
    %v6428 = vpack.c.b16 %v6418, %v6417
    %v6429 = vpack.c.b16 %v6420, %v6419
    %v6430 = vpack.c.b16 %v6422, %v6421
    %6439 = vmatprep.subr.bf16.mxu0 0
    %6440 = vmatpush1.bf16.msra.mxu0 %v6423
    %6441 = vmatprep.subr.bf16.mxu0 0
    %6442 = vmatpush1.bf16.msra.mxu0 %v6424
    %6443 = vmatprep.subr.bf16.mxu0 0
    %6444 = vmatpush1.bf16.msra.mxu0 %v6425
    %6445 = vmatprep.subr.bf16.mxu0 0
    %6446 = vmatpush1.bf16.msra.mxu0 %v6426
    %6447 = vmatprep.subr.bf16.mxu0 0
    %6448 = vmatpush1.bf16.msra.mxu0 %v6427
    %6449 = vmatprep.subr.bf16.mxu0 0
    %6450 = vmatpush1.bf16.msra.mxu0 %v6428
    %6451 = vmatprep.subr.bf16.mxu0 0
    %6452 = vmatpush1.bf16.msra.mxu0 %v6429
    %6453 = vmatprep.subr.bf16.mxu0 0
    %6454 = vmatpush1.bf16.msra.mxu0 %v6430
    %6455 = vmatprep.subr.bf16.mxu0 0
    %6456 = vmatpush1.bf16.msra.mxu0 0
    %6457 = vmatprep.subr.bf16.mxu0 0
    %6458 = vmatpush1.bf16.msra.mxu0 0
    %6459 = vmatprep.subr.bf16.mxu0 0
    %6460 = vmatpush1.bf16.msra.mxu0 0
    %6461 = vmatprep.subr.bf16.mxu0 0
    %6462 = vmatpush1.bf16.msra.mxu0 0
    %6463 = vmatprep.subr.bf16.mxu0 0
    %6464 = vmatpush1.bf16.msra.mxu0 0
    %6465 = vmatprep.subr.bf16.mxu0 0
    %6466 = vmatpush1.bf16.msra.mxu0 0
    %6467 = vmatprep.subr.bf16.mxu0 0
    %6468 = vmatpush1.bf16.msra.mxu0 0
    %6469 = vmatprep.subr.bf16.mxu0 0
    %6470 = vmatpush1.bf16.msra.mxu0 0
    %6471 = vmatprep.mubr.bf16.mxu0 0
    %6472 = vmatmul.mubr.bf16.gmra.mrb[0].mxu0 %v6118
    %v6473 = vpop.f32.mrb[0].mxu0
    %v6474 = vadd.f32 %v6386, %v6473
    %v6475 = vpop.f32.mrb[0].mxu0
    %v6476 = vpop.f32.mrb[0].mxu0
    %v6477 = vpop.f32.mrb[0].mxu0
    %6478 = vdwg.mxu0
    %v6479 = vld [vmem:[#allocation17] sm:$0x1]
    %v6481 = vlaneseq
    %v6482 = vshrl.u32 %v6481, 7
    %v6483 = vsub.s32 0, %v6482
    %v6484 = vrot.slane %v6479, %v6483
    %v6486 = vadd.f32 %v6474, %v6484
    %v6487 = vmax.f32 %v6486, 0.0
    %v6488 = vpack.c.bf16 %v6487, %v6487
    %v6489 = vld [vmem:[#allocation19] sm:$0xf]
    %v6490 = vld [vmem:[#allocation19 + $0x4] sm:$0xf]
    %v6491 = vld [vmem:[#allocation19 + $0x8] sm:$0xf]
    %v6492 = vld [vmem:[#allocation19 + $0xc] sm:$0xf]
    %v6493 = vld [vmem:[#allocation19 + $0x10] sm:$0xf]
    %v6494 = vld [vmem:[#allocation19 + $0x14] sm:$0xf]
    %v6495 = vld [vmem:[#allocation19 + $0x18] sm:$0xf]
    %v6496 = vld [vmem:[#allocation19 + $0x1c] sm:$0xf]
    %v6497 = vld [vmem:[#allocation19 + $0x20] sm:$0xf]
    %v6498 = vld [vmem:[#allocation19 + $0x24] sm:$0xf]
    %v6499 = vld [vmem:[#allocation19 + $0x28] sm:$0xf]
    %v6500 = vld [vmem:[#allocation19 + $0x2c] sm:$0xf]
    %v6501 = vld [vmem:[#allocation19 + $0x30] sm:$0xf]
    %v6502 = vld [vmem:[#allocation19 + $0x34] sm:$0xf]
    %v6503 = vld [vmem:[#allocation19 + $0x38] sm:$0xf]
    %v6504 = vld [vmem:[#allocation19 + $0x3c] sm:$0xf]
    %v6505 = vld [vmem:[#allocation20] sm:$0x1]
    %v6507 = vlaneseq
    %v6508 = vshrl.u32 %v6507, 7
    %v6509 = vsub.s32 0, %v6508
    %v6510 = vrot.slane %v6505, %v6509
    %v6528 = vunpack.c.l.b16 %v6489
    %v6529 = vunpack.c.l.b16 %v6490
    %v6530 = vunpack.c.l.b16 %v6491
    %v6531 = vunpack.c.l.b16 %v6492
    %v6532 = vunpack.c.l.b16 %v6493
    %v6533 = vunpack.c.l.b16 %v6494
    %v6534 = vunpack.c.l.b16 %v6495
    %v6535 = vunpack.c.l.b16 %v6496
    %v6536 = vunpack.c.l.b16 %v6497
    %v6537 = vunpack.c.l.b16 %v6498
    %v6538 = vunpack.c.l.b16 %v6499
    %v6539 = vunpack.c.l.b16 %v6500
    %v6540 = vunpack.c.l.b16 %v6501
    %v6541 = vunpack.c.l.b16 %v6502
    %v6542 = vunpack.c.l.b16 %v6503
    %v6543 = vunpack.c.l.b16 %v6504
    %v6544 = vpack.c.b16 %v6529, %v6528
    %v6545 = vpack.c.b16 %v6531, %v6530
    %v6546 = vpack.c.b16 %v6533, %v6532
    %v6547 = vpack.c.b16 %v6535, %v6534
    %v6548 = vpack.c.b16 %v6537, %v6536
    %v6549 = vpack.c.b16 %v6539, %v6538
    %v6550 = vpack.c.b16 %v6541, %v6540
    %v6551 = vpack.c.b16 %v6543, %v6542
    %6560 = vmatprep.subr.bf16.mxu0 0
    %6561 = vmatpush1.bf16.msra.mxu0 %v6544
    %6562 = vmatprep.subr.bf16.mxu0 0
    %6563 = vmatpush1.bf16.msra.mxu0 %v6545
    %6564 = vmatprep.subr.bf16.mxu0 0
    %6565 = vmatpush1.bf16.msra.mxu0 %v6546
    %6566 = vmatprep.subr.bf16.mxu0 0
    %6567 = vmatpush1.bf16.msra.mxu0 %v6547
    %6568 = vmatprep.subr.bf16.mxu0 0
    %6569 = vmatpush1.bf16.msra.mxu0 %v6548
    %6570 = vmatprep.subr.bf16.mxu0 0
    %6571 = vmatpush1.bf16.msra.mxu0 %v6549
    %6572 = vmatprep.subr.bf16.mxu0 0
    %6573 = vmatpush1.bf16.msra.mxu0 %v6550
    %6574 = vmatprep.subr.bf16.mxu0 0
    %6575 = vmatpush1.bf16.msra.mxu0 %v6551
    %6576 = vmatprep.subr.bf16.mxu0 0
    %6577 = vmatpush1.bf16.msra.mxu0 0
    %6578 = vmatprep.subr.bf16.mxu0 0
    %6579 = vmatpush1.bf16.msra.mxu0 0
    %6580 = vmatprep.subr.bf16.mxu0 0
    %6581 = vmatpush1.bf16.msra.mxu0 0
    %6582 = vmatprep.subr.bf16.mxu0 0
    %6583 = vmatpush1.bf16.msra.mxu0 0
    %6584 = vmatprep.subr.bf16.mxu0 0
    %6585 = vmatpush1.bf16.msra.mxu0 0
    %6586 = vmatprep.subr.bf16.mxu0 0
    %6587 = vmatpush1.bf16.msra.mxu0 0
    %6588 = vmatprep.subr.bf16.mxu0 0
    %6589 = vmatpush1.bf16.msra.mxu0 0
    %6590 = vmatprep.subr.bf16.mxu0 0
    %6591 = vmatpush1.bf16.msra.mxu0 0
    %6592 = vmatprep.mubr.bf16.mxu0 0
    %6593 = vmatmul.mubr.bf16.gmra.mrb[0].mxu0 %v6488
    %v6594 = vpop.f32.mrb[0].mxu0
    %v6595 = vadd.f32 %v6510, %v6594
    %v6596 = vpop.f32.mrb[0].mxu0
    %v6597 = vpop.f32.mrb[0].mxu0
    %v6598 = vpop.f32.mrb[0].mxu0
    %6599 = vdwg.mxu0
    %6600 = vst [vmem:[#allocation22] sm:$0xff] %v6595
    // Predicated region
    $region98: #{tpu_custom_call.1} parent=1 // pred_check
      _
    $region99: #{tpu_custom_call.1} parent=1 // pred_check_branch
      %6602 = sbr.rel (0) target = $region101
    $region100: #{tpu_custom_call.1} parent=1 // pred_region
      %s6604 = ssub.s32 128, 128
      %6605 = vsyncadd [#allocation4], %s6604
      %s6607 = sshll.u32 [#allocation22], 4
      %s6608 = int_to_ptr.vmem [resolvable:$true] %s6607
      %6610 = dma.vmem_to_hbm [thread:$0]  %s6608, 128, %s12, [#allocation4]
    $region101: #{tpu_custom_call.1} parent=1 // pred_fallthru
      _
    // Predicated region
    $region102: #{tpu_custom_call.1} parent=1 // pred_check
      _
    $region103: #{tpu_custom_call.1} parent=1 // pred_check_branch
      %6612 = sbr.rel (0) target = $region105
    $region104: #{tpu_custom_call.1} parent=1 // pred_region
      %6613 = dma.done [#allocation4], 128
    $region105: #{tpu_custom_call.1} parent=1 // pred_fallthru
      _
    %6614 = vsyncpa [#allocation3], 1
    %6615 = vsyncpa [#allocation6], 1
    %6616 = vsyncpa [#allocation9], 1
    %6617 = vsyncpa [#allocation12], 1
    %6618 = vsyncpa [#allocation15], 1
    %6619 = vsyncpa [#allocation18], 1
    %6620 = vsyncpa [#allocation21], 1
    %6621 = vsyncpa [#allocation4], 1

</llo_original>
